<compile_context>
chip_gen: v6e
topology: v6e:2x2x1
jax: 0.10.0
libtpu: 0.0.40
codegen_flags: <defaults>
</compile_context>

<pallas_src>
import jax
import jax.numpy as jnp
from jax import lax
from jax.experimental import pallas as pl
from jax.experimental.pallas import tpu as pltpu

KH = KW = 3                      # kernel_size=3, padding=1
VMEM_LIMIT = 48 * 1024 * 1024    # safe on v5e/v6e (128 MiB) and v7x (64 MiB)


# --------------------------------------------------------------- helpers ----
def _zero_border(zbuf, H, W, C):
    """Zero only the 1-pixel padding ring of the (H+2, W+2, C) scratch.

    Done every grid step (2 rows + 2 columns, cheap) so it stays correct even
    when the 'parallel' batch axis is split across TensorCores and a core's
    first iteration has program_id != 0 (scratch is per-core and persistent).
    """
    zero_row = jnp.zeros((1, W + 2, C), jnp.float32)
    zero_col = jnp.zeros((H + 2, 1, C), jnp.float32)
    zbuf[0:1, :, :] = zero_row
    zbuf[H + 1:H + 2, :, :] = zero_row
    zbuf[:, 0:1, :] = zero_col
    zbuf[:, W + 1:W + 2, :] = zero_col


def _conv3x3_acc(z, w_ref, bias, H, W, Cin, Cout):
    """'same' 3x3 conv over the zero-padded value z (H+2, W+2, Cin).

    One window relayout per kw (3 total); the 3 kh taps reuse it through free
    major-dim slices of the flattened column.  Returns (H*W, Cout) f32.
    """
    acc = jnp.zeros((H * W, Cout), jnp.float32) + bias
    for kw in range(KW):
        col = z[:, kw:kw + W, :].reshape((H + 2) * W, Cin)
        for kh in range(KH):
            patch = col[kh * W:kh * W + H * W, :]
            acc = acc + jnp.dot(patch, w_ref[kh, kw],
                                preferred_element_type=jnp.float32)
    return acc


# --------------------------------------------------------------- kernels ----
def _conv1_stats_kernel(x_ref, w_ref, b_ref, y_ref, sum_ref, m2_ref, zbuf):
    """conv1 (3x3, pad=1) fused with per-image BatchNorm partial statistics.

    x_ref: (H, W, Cin); w_ref: (3,3,Cin,Cout); b_ref: (1,Cout);
    y_ref: (H, W, Cout); sum_ref/m2_ref: (1, Cout) per-image partials;
    zbuf: VMEM scratch (H+2, W+2, Cin) zero-padded conv input."""
    H, W, Cin = x_ref.shape
    Cout = y_ref.shape[-1]
    _zero_border(zbuf, H, W, Cin)
    zbuf[1:H + 1, 1:W + 1, :] = x_ref[...]
    acc = _conv3x3_acc(zbuf[...], w_ref, b_ref[...], H, W, Cin, Cout)
    y_ref[...] = acc.reshape(H, W, Cout)
    # Per-image centered partial stats (merged across the batch in the
    # wrapper via Chan's parallel formula -> numerically stable).
    s = jnp.sum(acc, axis=0, keepdims=True)
    m = s * (1.0 / (H * W))
    sum_ref[...] = s
    m2_ref[...] = jnp.sum((acc - m) ** 2, axis=0, keepdims=True)


def _bn_relu_conv2_res_kernel(y1_ref, x_ref, w2_ref, b2_ref, scale_ref,
                              shift_ref, o_ref, zbuf):
    """relu(batchnorm(y1)) -> 3x3 conv2 -> + residual(x) -> relu, one image.

    y1_ref/o_ref: (H, W, Cout); x_ref: (H, W, Cres), Cres in {1, Cout}
    (channel broadcast happens at the add, matching x.expand_as(conv));
    w2_ref: (3,3,Cout,Cout); b2/scale/shift: (1, Cout);
    zbuf: VMEM scratch (H+2, W+2, Cout)."""
    H, W, Cout = y1_ref.shape
    a = jnp.maximum(y1_ref[...] * scale_ref[...] + shift_ref[...], 0.0)
    _zero_border(zbuf, H, W, Cout)
    zbuf[1:H + 1, 1:W + 1, :] = a
    acc = _conv3x3_acc(zbuf[...], w2_ref, b2_ref[...], H, W, Cout, Cout)
    conv = acc.reshape(H, W, Cout)
    o_ref[...] = jnp.maximum(conv + x_ref[...], 0.0)


# --------------------------------------------------------------- wrapper ----
def conv2dx2_res_forward(x_nchw, w1, b1, gamma, beta, w2, b2, eps=1e-5):
    N, Cin, H, W = x_nchw.shape
    Cout = w1.shape[-1]
    if Cin not in (1, Cout):
        raise ValueError(
            "x.expand_as(conv) requires in_channels in (1, out_channels); "
            f"got Cin={Cin}, Cout={Cout}")

    x = jnp.transpose(x_nchw, (0, 2, 3, 1)).astype(jnp.float32)      # NHWC
    b1r = b1.reshape(1, Cout).astype(jnp.float32)
    b2r = b2.reshape(1, Cout).astype(jnp.float32)

    cparams = pltpu.CompilerParams(dimension_semantics=("parallel",),
                                   vmem_limit_bytes=VMEM_LIMIT)

    # --- conv1 + fused per-image BN statistics (single pass over y1) --------
    y1, psum, pm2 = pl.pallas_call(
        _conv1_stats_kernel,
        out_shape=(jax.ShapeDtypeStruct((N, H, W, Cout), jnp.float32),
                   jax.ShapeDtypeStruct((N, 1, Cout), jnp.float32),
                   jax.ShapeDtypeStruct((N, 1, Cout), jnp.float32)),
        grid_spec=pltpu.PrefetchScalarGridSpec(
            num_scalar_prefetch=0, grid=(N,),
            in_specs=[pl.BlockSpec((None, H, W, Cin), lambda n: (n, 0, 0, 0)),
                      pl.BlockSpec((KH, KW, Cin, Cout),
                                   lambda n: (0, 0, 0, 0)),
                      pl.BlockSpec((1, Cout), lambda n: (0, 0))],
            out_specs=[pl.BlockSpec((None, H, W, Cout),
                                    lambda n: (n, 0, 0, 0)),
                       pl.BlockSpec((None, 1, Cout), lambda n: (n, 0, 0)),
                       pl.BlockSpec((None, 1, Cout), lambda n: (n, 0, 0))],
            scratch_shapes=[pltpu.VMEM((H + 2, W + 2, Cin), jnp.float32)]),
        compiler_params=cparams,
    )(x, w1.astype(jnp.float32), b1r)

    # --- merge per-image stats (Chan's parallel variance, biased) -----------
    cnt = H * W
    mean_i = psum.reshape(N, Cout) / cnt                       # (N, Cout)
    mean = jnp.mean(mean_i, axis=0)                            # (Cout,)
    m2 = (jnp.sum(pm2.reshape(N, Cout), axis=0)
          + cnt * jnp.sum((mean_i - mean[None, :]) ** 2, axis=0))
    var = m2 / (N * cnt)                                       # biased (BN train)
    inv = gamma.astype(jnp.float32) / jnp.sqrt(var + eps)
    scale = inv.reshape(1, Cout)
    shift = (beta.astype(jnp.float32) - mean * inv).reshape(1, Cout)

    # --- fused: bn -> relu -> conv2 -> + residual(x) -> relu -----------------
    out = pl.pallas_call(
        _bn_relu_conv2_res_kernel,
        out_shape=jax.ShapeDtypeStruct((N, H, W, Cout), jnp.float32),
        grid_spec=pltpu.PrefetchScalarGridSpec(
            num_scalar_prefetch=0, grid=(N,),
            in_specs=[pl.BlockSpec((None, H, W, Cout), lambda n: (n, 0, 0, 0)),
                      pl.BlockSpec((None, H, W, Cin), lambda n: (n, 0, 0, 0)),
                      pl.BlockSpec((KH, KW, Cout, Cout),
                                   lambda n: (0, 0, 0, 0)),
                      pl.BlockSpec((1, Cout), lambda n: (0, 0)),
                      pl.BlockSpec((1, Cout), lambda n: (0, 0)),
                      pl.BlockSpec((1, Cout), lambda n: (0, 0))],
            out_specs=pl.BlockSpec((None, H, W, Cout),
                                   lambda n: (n, 0, 0, 0)),
            scratch_shapes=[pltpu.VMEM((H + 2, W + 2, Cout), jnp.float32)]),
        compiler_params=cparams,
    )(y1, x, w2.astype(jnp.float32), b2r, scale, shift)

    return jnp.transpose(out, (0, 3, 1, 2))                    # back to NCHW


# ------------------------------------------------------------- reference ----
def ref_forward(x, w1, b1, gamma, beta, w2, b2, eps=1e-5):
    dn = ("NCHW", "OIHW", "NCHW")
    w1o = jnp.transpose(w1, (3, 2, 0, 1))
    w2o = jnp.transpose(w2, (3, 2, 0, 1))
    y = lax.conv_general_dilated(x, w1o, (1, 1), ((1, 1), (1, 1)),
                                 dimension_numbers=dn)
    y = y + b1[None, :, None, None]
    m = jnp.mean(y, axis=(0, 2, 3))
    v = jnp.mean((y - m[None, :, None, None]) ** 2, axis=(0, 2, 3))
    y = ((y - m[None, :, None, None]) / jnp.sqrt(v[None, :, None, None] + eps)
         * gamma[None, :, None, None] + beta[None, :, None, None])
    y = jnp.maximum(y, 0.0)
    z = lax.conv_general_dilated(y, w2o, (1, 1), ((1, 1), (1, 1)),
                                 dimension_numbers=dn)
    z = z + b2[None, :, None, None]
    return jnp.maximum(jnp.broadcast_to(x, z.shape) + z, 0.0)


# ------------------------------------------------------------------- main ----
if __name__ == "__main__":
    N, Cin, Cout, H, W = 2, 4, 4, 16, 16

    key = jax.random.PRNGKey(0)
    k0, k1, k2, k3, k4 = jax.random.split(key, 5)
    # Deterministic synthetic parameters (weights stored HWIO for the kernel).
    w1 = 0.1 * jax.random.normal(k0, (KH, KW, Cin, Cout), jnp.float32)
    b1 = 0.1 * jax.random.normal(k1, (Cout,), jnp.float32)
    w2 = 0.1 * jax.random.normal(k2, (KH, KW, Cout, Cout), jnp.float32)
    b2 = 0.1 * jax.random.normal(k3, (Cout,), jnp.float32)
    gamma = jnp.ones((Cout,), jnp.float32)   # BatchNorm2d default weight
    beta = jnp.zeros((Cout,), jnp.float32)   # BatchNorm2d default bias

    x = jax.random.normal(k4, (N, Cin, H, W), jnp.float32)

    out = conv2dx2_res_forward(x, w1, b1, gamma, beta, w2, b2)
    out = jax.block_until_ready(out)

    ref = ref_forward(x, w1, b1, gamma, beta, w2, b2)
    assert out.shape == (N, Cout, H, W)
    assert jnp.allclose(out, ref, atol=1e-4, rtol=1e-4), (
        float(jnp.max(jnp.abs(out - ref))))
    print("KERNEL_OK")
</pallas_src>

<mosaic_0001>
module attributes {stable_mosaic.version = 11 : i64} {
  func.func @_conv1_stats_kernel(%arg0: i32, %arg1: memref<1x16x16x4xf32, #tpu.memory_space<vmem>>, %arg2: memref<3x3x4x4xf32, #tpu.memory_space<vmem>>, %arg3: memref<1x4xf32, #tpu.memory_space<vmem>>, %arg4: memref<1x16x16x4xf32, #tpu.memory_space<vmem>>, %arg5: memref<1x1x4xf32, #tpu.memory_space<vmem>>, %arg6: memref<1x1x4xf32, #tpu.memory_space<vmem>>, %arg7: memref<18x18x4xf32, #tpu.memory_space<vmem>>) attributes {dimension_semantics = [#tpu.dimension_semantics<parallel>], iteration_bounds = array<i64: 2>, scalar_prefetch = 0 : i64, scratch_operands = 1 : i64, tpu.core_type = #tpu.core_type<tc>, window_params = [{transform_indices = @transform_0, window_bounds = array<i64: 1, 16, 16, 4>}, {pipeline_mode = #tpu.pipeline_mode<synchronous>, transform_indices = @transform_1, window_bounds = array<i64: 3, 3, 4, 4>}, {pipeline_mode = #tpu.pipeline_mode<synchronous>, transform_indices = @transform_2, window_bounds = array<i64: 1, 4>}, {transform_indices = @transform_3, window_bounds = array<i64: 1, 16, 16, 4>}, {transform_indices = @transform_4, window_bounds = array<i64: 1, 1, 4>}, {transform_indices = @transform_5, window_bounds = array<i64: 1, 1, 4>}]} {
    %cst = arith.constant 0.000000e+00 : f32
    %0 = vector.broadcast %cst : f32 to vector<1x18x4xf32>
    %cst_0 = arith.constant 0.000000e+00 : f32
    %1 = vector.broadcast %cst_0 : f32 to vector<18x1x4xf32>
    %c0 = arith.constant 0 : index
    %c0_1 = arith.constant 0 : index
    %c0_2 = arith.constant 0 : index
    %2 = vector.load %arg7[%c0, %c0_1, %c0_2] : memref<18x18x4xf32, #tpu.memory_space<vmem>>, vector<1x18x4xf32>
    tpu.vector_store %arg7[%c0, %c0_1, %c0_2], %0 {strides = array<i32>} : memref<18x18x4xf32, #tpu.memory_space<vmem>>, vector<1x18x4xf32>,
    %c17 = arith.constant 17 : index
    %c0_3 = arith.constant 0 : index
    %c0_4 = arith.constant 0 : index
    %3 = vector.load %arg7[%c17, %c0_3, %c0_4] : memref<18x18x4xf32, #tpu.memory_space<vmem>>, vector<1x18x4xf32>
    tpu.vector_store %arg7[%c17, %c0_3, %c0_4], %0 {strides = array<i32>} : memref<18x18x4xf32, #tpu.memory_space<vmem>>, vector<1x18x4xf32>,
    %c0_5 = arith.constant 0 : index
    %c0_6 = arith.constant 0 : index
    %c0_7 = arith.constant 0 : index
    %4 = vector.load %arg7[%c0_5, %c0_6, %c0_7] : memref<18x18x4xf32, #tpu.memory_space<vmem>>, vector<18x1x4xf32>
    tpu.vector_store %arg7[%c0_5, %c0_6, %c0_7], %1 {strides = array<i32>} : memref<18x18x4xf32, #tpu.memory_space<vmem>>, vector<18x1x4xf32>,
    %c0_8 = arith.constant 0 : index
    %c17_9 = arith.constant 17 : index
    %c0_10 = arith.constant 0 : index
    %5 = vector.load %arg7[%c0_8, %c17_9, %c0_10] : memref<18x18x4xf32, #tpu.memory_space<vmem>>, vector<18x1x4xf32>
    tpu.vector_store %arg7[%c0_8, %c17_9, %c0_10], %1 {strides = array<i32>} : memref<18x18x4xf32, #tpu.memory_space<vmem>>, vector<18x1x4xf32>,
    %c0_11 = arith.constant 0 : index
    %c0_12 = arith.constant 0 : index
    %c0_13 = arith.constant 0 : index
    %c0_14 = arith.constant 0 : index
    %6 = vector.load %arg1[%c0_11, %c0_12, %c0_13, %c0_14] : memref<1x16x16x4xf32, #tpu.memory_space<vmem>>, vector<1x16x16x4xf32>
    %7 = vector.shape_cast %6 : vector<1x16x16x4xf32> to vector<16x16x4xf32>
    %c1 = arith.constant 1 : index
    %c1_15 = arith.constant 1 : index
    %c0_16 = arith.constant 0 : index
    %8 = vector.load %arg7[%c1, %c1_15, %c0_16] : memref<18x18x4xf32, #tpu.memory_space<vmem>>, vector<16x16x4xf32>
    tpu.vector_store %arg7[%c1, %c1_15, %c0_16], %7 {strides = array<i32>} : memref<18x18x4xf32, #tpu.memory_space<vmem>>, vector<16x16x4xf32>,
    %c0_17 = arith.constant 0 : index
    %c0_18 = arith.constant 0 : index
    %c0_19 = arith.constant 0 : index
    %9 = vector.load %arg7[%c0_17, %c0_18, %c0_19] : memref<18x18x4xf32, #tpu.memory_space<vmem>>, vector<18x18x4xf32>
    %c0_20 = arith.constant 0 : index
    %c0_21 = arith.constant 0 : index
    %10 = vector.load %arg3[%c0_20, %c0_21] : memref<1x4xf32, #tpu.memory_space<vmem>>, vector<1x4xf32>
    %cst_22 = arith.constant 0.000000e+00 : f32
    %11 = vector.broadcast %cst_22 : f32 to vector<256x4xf32>
    %12 = vector.broadcast %10 : vector<1x4xf32> to vector<256x4xf32>
    %13 = arith.addf %11, %12 : vector<256x4xf32>
    %14 = vector.extract_strided_slice %9 {offsets = [0, 0, 0], sizes = [18, 16, 4], strides = [1, 1, 1]} : vector<18x18x4xf32> to vector<18x16x4xf32>
    %15 = vector.shape_cast %14 : vector<18x16x4xf32> to vector<288x4xf32>
    %16 = vector.extract_strided_slice %15 {offsets = [0, 0], sizes = [256, 4], strides = [1, 1]} : vector<288x4xf32> to vector<256x4xf32>
    %c0_23 = arith.constant 0 : index
    %c0_24 = arith.constant 0 : index
    %c0_25 = arith.constant 0 : index
    %c0_26 = arith.constant 0 : index
    %17 = vector.load %arg2[%c0_23, %c0_24, %c0_25, %c0_26] : memref<3x3x4x4xf32, #tpu.memory_space<vmem>>, vector<1x1x4x4xf32>
    %18 = vector.shape_cast %17 : vector<1x1x4x4xf32> to vector<4x4xf32>
    %cst_27 = arith.constant dense<0.000000e+00> : vector<256x4xf32>
    %19 = tpu.matmul %16, %18, %cst_27 {dimension_numbers = #tpu.dot_dimension_numbers<[1], [0], [0], [1], [0, 0, 1, 1], [], []>} : vector<256x4xf32>, vector<4x4xf32>, vector<256x4xf32> -> vector<256x4xf32>
    %20 = arith.addf %13, %19 : vector<256x4xf32>
    %21 = vector.extract_strided_slice %15 {offsets = [16, 0], sizes = [256, 4], strides = [1, 1]} : vector<288x4xf32> to vector<256x4xf32>
    %c1_28 = arith.constant 1 : index
    %c0_29 = arith.constant 0 : index
    %c0_30 = arith.constant 0 : index
    %c0_31 = arith.constant 0 : index
    %22 = vector.load %arg2[%c1_28, %c0_29, %c0_30, %c0_31] : memref<3x3x4x4xf32, #tpu.memory_space<vmem>>, vector<1x1x4x4xf32>
    %23 = vector.shape_cast %22 : vector<1x1x4x4xf32> to vector<4x4xf32>
    %cst_32 = arith.constant dense<0.000000e+00> : vector<256x4xf32>
    %24 = tpu.matmul %21, %23, %cst_32 {dimension_numbers = #tpu.dot_dimension_numbers<[1], [0], [0], [1], [0, 0, 1, 1], [], []>} : vector<256x4xf32>, vector<4x4xf32>, vector<256x4xf32> -> vector<256x4xf32>
    %25 = arith.addf %20, %24 : vector<256x4xf32>
    %26 = vector.extract_strided_slice %15 {offsets = [32, 0], sizes = [256, 4], strides = [1, 1]} : vector<288x4xf32> to vector<256x4xf32>
    %c2 = arith.constant 2 : index
    %c0_33 = arith.constant 0 : index
    %c0_34 = arith.constant 0 : index
    %c0_35 = arith.constant 0 : index
    %27 = vector.load %arg2[%c2, %c0_33, %c0_34, %c0_35] : memref<3x3x4x4xf32, #tpu.memory_space<vmem>>, vector<1x1x4x4xf32>
    %28 = vector.shape_cast %27 : vector<1x1x4x4xf32> to vector<4x4xf32>
    %cst_36 = arith.constant dense<0.000000e+00> : vector<256x4xf32>
    %29 = tpu.matmul %26, %28, %cst_36 {dimension_numbers = #tpu.dot_dimension_numbers<[1], [0], [0], [1], [0, 0, 1, 1], [], []>} : vector<256x4xf32>, vector<4x4xf32>, vector<256x4xf32> -> vector<256x4xf32>
    %30 = arith.addf %25, %29 : vector<256x4xf32>
    %31 = vector.extract_strided_slice %9 {offsets = [0, 1, 0], sizes = [18, 16, 4], strides = [1, 1, 1]} : vector<18x18x4xf32> to vector<18x16x4xf32>
    %32 = vector.shape_cast %31 : vector<18x16x4xf32> to vector<288x4xf32>
    %33 = vector.extract_strided_slice %32 {offsets = [0, 0], sizes = [256, 4], strides = [1, 1]} : vector<288x4xf32> to vector<256x4xf32>
    %c0_37 = arith.constant 0 : index
    %c1_38 = arith.constant 1 : index
    %c0_39 = arith.constant 0 : index
    %c0_40 = arith.constant 0 : index
    %34 = vector.load %arg2[%c0_37, %c1_38, %c0_39, %c0_40] : memref<3x3x4x4xf32, #tpu.memory_space<vmem>>, vector<1x1x4x4xf32>
    %35 = vector.shape_cast %34 : vector<1x1x4x4xf32> to vector<4x4xf32>
    %cst_41 = arith.constant dense<0.000000e+00> : vector<256x4xf32>
    %36 = tpu.matmul %33, %35, %cst_41 {dimension_numbers = #tpu.dot_dimension_numbers<[1], [0], [0], [1], [0, 0, 1, 1], [], []>} : vector<256x4xf32>, vector<4x4xf32>, vector<256x4xf32> -> vector<256x4xf32>
    %37 = arith.addf %30, %36 : vector<256x4xf32>
    %38 = vector.extract_strided_slice %32 {offsets = [16, 0], sizes = [256, 4], strides = [1, 1]} : vector<288x4xf32> to vector<256x4xf32>
    %c1_42 = arith.constant 1 : index
    %c1_43 = arith.constant 1 : index
    %c0_44 = arith.constant 0 : index
    %c0_45 = arith.constant 0 : index
    %39 = vector.load %arg2[%c1_42, %c1_43, %c0_44, %c0_45] : memref<3x3x4x4xf32, #tpu.memory_space<vmem>>, vector<1x1x4x4xf32>
    %40 = vector.shape_cast %39 : vector<1x1x4x4xf32> to vector<4x4xf32>
    %cst_46 = arith.constant dense<0.000000e+00> : vector<256x4xf32>
    %41 = tpu.matmul %38, %40, %cst_46 {dimension_numbers = #tpu.dot_dimension_numbers<[1], [0], [0], [1], [0, 0, 1, 1], [], []>} : vector<256x4xf32>, vector<4x4xf32>, vector<256x4xf32> -> vector<256x4xf32>
    %42 = arith.addf %37, %41 : vector<256x4xf32>
    %43 = vector.extract_strided_slice %32 {offsets = [32, 0], sizes = [256, 4], strides = [1, 1]} : vector<288x4xf32> to vector<256x4xf32>
    %c2_47 = arith.constant 2 : index
    %c1_48 = arith.constant 1 : index
    %c0_49 = arith.constant 0 : index
    %c0_50 = arith.constant 0 : index
    %44 = vector.load %arg2[%c2_47, %c1_48, %c0_49, %c0_50] : memref<3x3x4x4xf32, #tpu.memory_space<vmem>>, vector<1x1x4x4xf32>
    %45 = vector.shape_cast %44 : vector<1x1x4x4xf32> to vector<4x4xf32>
    %cst_51 = arith.constant dense<0.000000e+00> : vector<256x4xf32>
    %46 = tpu.matmul %43, %45, %cst_51 {dimension_numbers = #tpu.dot_dimension_numbers<[1], [0], [0], [1], [0, 0, 1, 1], [], []>} : vector<256x4xf32>, vector<4x4xf32>, vector<256x4xf32> -> vector<256x4xf32>
    %47 = arith.addf %42, %46 : vector<256x4xf32>
    %48 = vector.extract_strided_slice %9 {offsets = [0, 2, 0], sizes = [18, 16, 4], strides = [1, 1, 1]} : vector<18x18x4xf32> to vector<18x16x4xf32>
    %49 = vector.shape_cast %48 : vector<18x16x4xf32> to vector<288x4xf32>
    %50 = vector.extract_strided_slice %49 {offsets = [0, 0], sizes = [256, 4], strides = [1, 1]} : vector<288x4xf32> to vector<256x4xf32>
    %c0_52 = arith.constant 0 : index
    %c2_53 = arith.constant 2 : index
    %c0_54 = arith.constant 0 : index
    %c0_55 = arith.constant 0 : index
    %51 = vector.load %arg2[%c0_52, %c2_53, %c0_54, %c0_55] : memref<3x3x4x4xf32, #tpu.memory_space<vmem>>, vector<1x1x4x4xf32>
    %52 = vector.shape_cast %51 : vector<1x1x4x4xf32> to vector<4x4xf32>
    %cst_56 = arith.constant dense<0.000000e+00> : vector<256x4xf32>
    %53 = tpu.matmul %50, %52, %cst_56 {dimension_numbers = #tpu.dot_dimension_numbers<[1], [0], [0], [1], [0, 0, 1, 1], [], []>} : vector<256x4xf32>, vector<4x4xf32>, vector<256x4xf32> -> vector<256x4xf32>
    %54 = arith.addf %47, %53 : vector<256x4xf32>
    %55 = vector.extract_strided_slice %49 {offsets = [16, 0], sizes = [256, 4], strides = [1, 1]} : vector<288x4xf32> to vector<256x4xf32>
    %c1_57 = arith.constant 1 : index
    %c2_58 = arith.constant 2 : index
    %c0_59 = arith.constant 0 : index
    %c0_60 = arith.constant 0 : index
    %56 = vector.load %arg2[%c1_57, %c2_58, %c0_59, %c0_60] : memref<3x3x4x4xf32, #tpu.memory_space<vmem>>, vector<1x1x4x4xf32>
    %57 = vector.shape_cast %56 : vector<1x1x4x4xf32> to vector<4x4xf32>
    %cst_61 = arith.constant dense<0.000000e+00> : vector<256x4xf32>
    %58 = tpu.matmul %55, %57, %cst_61 {dimension_numbers = #tpu.dot_dimension_numbers<[1], [0], [0], [1], [0, 0, 1, 1], [], []>} : vector<256x4xf32>, vector<4x4xf32>, vector<256x4xf32> -> vector<256x4xf32>
    %59 = arith.addf %54, %58 : vector<256x4xf32>
    %60 = vector.extract_strided_slice %49 {offsets = [32, 0], sizes = [256, 4], strides = [1, 1]} : vector<288x4xf32> to vector<256x4xf32>
    %c2_62 = arith.constant 2 : index
    %c2_63 = arith.constant 2 : index
    %c0_64 = arith.constant 0 : index
    %c0_65 = arith.constant 0 : index
    %61 = vector.load %arg2[%c2_62, %c2_63, %c0_64, %c0_65] : memref<3x3x4x4xf32, #tpu.memory_space<vmem>>, vector<1x1x4x4xf32>
    %62 = vector.shape_cast %61 : vector<1x1x4x4xf32> to vector<4x4xf32>
    %cst_66 = arith.constant dense<0.000000e+00> : vector<256x4xf32>
    %63 = tpu.matmul %60, %62, %cst_66 {dimension_numbers = #tpu.dot_dimension_numbers<[1], [0], [0], [1], [0, 0, 1, 1], [], []>} : vector<256x4xf32>, vector<4x4xf32>, vector<256x4xf32> -> vector<256x4xf32>
    %64 = arith.addf %59, %63 : vector<256x4xf32>
    %65 = vector.shape_cast %64 : vector<256x4xf32> to vector<16x16x4xf32>
    %c0_67 = arith.constant 0 : index
    %c0_68 = arith.constant 0 : index
    %c0_69 = arith.constant 0 : index
    %c0_70 = arith.constant 0 : index
    %66 = vector.load %arg4[%c0_67, %c0_68, %c0_69, %c0_70] : memref<1x16x16x4xf32, #tpu.memory_space<vmem>>, vector<1x16x16x4xf32>
    %67 = vector.shape_cast %66 : vector<1x16x16x4xf32> to vector<16x16x4xf32>
    %68 = vector.shape_cast %65 : vector<16x16x4xf32> to vector<1x16x16x4xf32>
    tpu.vector_store %arg4[%c0_67, %c0_68, %c0_69, %c0_70], %68 {strides = array<i32>} : memref<1x16x16x4xf32, #tpu.memory_space<vmem>>, vector<1x16x16x4xf32>,
    %cst_71 = arith.constant dense<0.000000e+00> : vector<4xf32>
    %69 = vector.multi_reduction <add>, %64, %cst_71 [0] : vector<256x4xf32> to vector<4xf32>
    %70 = vector.shape_cast %69 : vector<4xf32> to vector<1x4xf32>
    %cst_72 = arith.constant 3.906250e-03 : f32
    %71 = vector.broadcast %cst_72 : f32 to vector<1x4xf32>
    %72 = arith.mulf %70, %71 : vector<1x4xf32>
    %c0_73 = arith.constant 0 : index
    %c0_74 = arith.constant 0 : index
    %c0_75 = arith.constant 0 : index
    %73 = vector.load %arg5[%c0_73, %c0_74, %c0_75] : memref<1x1x4xf32, #tpu.memory_space<vmem>>, vector<1x1x4xf32>
    %74 = vector.shape_cast %73 : vector<1x1x4xf32> to vector<1x4xf32>
    %75 = vector.shape_cast %70 : vector<1x4xf32> to vector<1x1x4xf32>
    tpu.vector_store %arg5[%c0_73, %c0_74, %c0_75], %75 {strides = array<i32>} : memref<1x1x4xf32, #tpu.memory_space<vmem>>, vector<1x1x4xf32>,
    %76 = vector.broadcast %72 : vector<1x4xf32> to vector<256x4xf32>
    %77 = arith.subf %64, %76 : vector<256x4xf32>
    %78 = arith.mulf %77, %77 : vector<256x4xf32>
    %cst_76 = arith.constant dense<0.000000e+00> : vector<4xf32>
    %79 = vector.multi_reduction <add>, %78, %cst_76 [0] : vector<256x4xf32> to vector<4xf32>
    %80 = vector.shape_cast %79 : vector<4xf32> to vector<1x4xf32>
    %c0_77 = arith.constant 0 : index
    %c0_78 = arith.constant 0 : index
    %c0_79 = arith.constant 0 : index
    %81 = vector.load %arg6[%c0_77, %c0_78, %c0_79] : memref<1x1x4xf32, #tpu.memory_space<vmem>>, vector<1x1x4xf32>
    %82 = vector.shape_cast %81 : vector<1x1x4xf32> to vector<1x4xf32>
    %83 = vector.shape_cast %80 : vector<1x4xf32> to vector<1x1x4xf32>
    tpu.vector_store %arg6[%c0_77, %c0_78, %c0_79], %83 {strides = array<i32>} : memref<1x1x4xf32, #tpu.memory_space<vmem>>, vector<1x1x4xf32>,
    return
  }
  func.func @transform_0(%arg0: i32) -> (i32, i32, i32, i32) {
    %c0_i32 = arith.constant 0 : i32
    %c0_i32_0 = arith.constant 0 : i32
    %c0_i32_1 = arith.constant 0 : i32
    %c0_i32_2 = arith.constant 0 : i32
    return %arg0, %c0_i32, %c0_i32_0, %c0_i32_1 : i32, i32, i32, i32
  }
  func.func @transform_1(%arg0: i32) -> (i32, i32, i32, i32) {
    %c0_i32 = arith.constant 0 : i32
    %c0_i32_0 = arith.constant 0 : i32
    %c0_i32_1 = arith.constant 0 : i32
    %c0_i32_2 = arith.constant 0 : i32
    %c0_i32_3 = arith.constant 0 : i32
    return %c0_i32, %c0_i32_0, %c0_i32_1, %c0_i32_2 : i32, i32, i32, i32
  }
  func.func @transform_2(%arg0: i32) -> (i32, i32) {
    %c0_i32 = arith.constant 0 : i32
    %c0_i32_0 = arith.constant 0 : i32
    %c0_i32_1 = arith.constant 0 : i32
    return %c0_i32, %c0_i32_0 : i32, i32
  }
  func.func @transform_3(%arg0: i32) -> (i32, i32, i32, i32) {
    %c0_i32 = arith.constant 0 : i32
    %c0_i32_0 = arith.constant 0 : i32
    %c0_i32_1 = arith.constant 0 : i32
    %c0_i32_2 = arith.constant 0 : i32
    return %arg0, %c0_i32, %c0_i32_0, %c0_i32_1 : i32, i32, i32, i32
  }
  func.func @transform_4(%arg0: i32) -> (i32, i32, i32) {
    %c0_i32 = arith.constant 0 : i32
    %c0_i32_0 = arith.constant 0 : i32
    %c0_i32_1 = arith.constant 0 : i32
    return %arg0, %c0_i32, %c0_i32_0 : i32, i32, i32
  }
  func.func @transform_5(%arg0: i32) -> (i32, i32, i32) {
    %c0_i32 = arith.constant 0 : i32
    %c0_i32_0 = arith.constant 0 : i32
    %c0_i32_1 = arith.constant 0 : i32
    return %arg0, %c0_i32, %c0_i32_0 : i32, i32, i32
  }
}

</mosaic_0001>

<llo_original>
// kernel: tpu_custom_call.1
$region0: #{tpu_custom_call.1}
  #allocation0 [shape = 'u32[]', space=smem, size = 0x4, offset = 0x4, fixed_abs, tag = 'smem constant byte address 0x4 - core index']
  #allocation1 [shape = 'u32[144,128]{1,0:T(1,128)}', space=vmem, size = 0x12000, scoped, tag = 'internal scratch']
  #allocation2 [shape = 'f32[18,18,4]{2,1,0:T(8,128)}', space=vmem, size = 0x36000, scoped, tag = 'scratch operand']
  %s0 = inlined_call_operand.vmem [shape: f32[2,16,16,4], index: 0, kind: input, shape index: {}]
  %s1 = inlined_call_operand.vmem [shape: f32[3,3,4,4], index: 1, kind: input, shape index: {}]
  %s2 = inlined_call_operand.vmem [shape: f32[1,4], index: 2, kind: input, shape index: {}]
  %s3 = inlined_call_operand.vmem [shape: f32[2,16,16,4], index: 3, kind: output, shape index: {0}]
  %s4 = inlined_call_operand.hbm [shape: f32[2,1,4], index: 4, kind: output, shape index: {1}]
  %s5 = inlined_call_operand.hbm [shape: f32[2,1,4], index: 5, kind: output, shape index: {2}]
  %6 = xla_tuple %s3, %s4, %s5
  %s7 = sld [smem:[#allocation0]]
  $region61: #{tpu_custom_call.1} parent=0
    _
  %s9 = ssub.s32 1, %s7
  %s10 = scalar_select 0, %s9, %s7
  $region1: #{tpu_custom_call.1} parent=0
    #allocation3 [shape = 'u8[1024]{0}', space=vmem, size = 0x400, scoped, tag = 'output window, operand 1']
    #allocation4 [shape = 's32[2]{0}', space=sflag, size = 0x8, scoped, tag = 'scoped memory for tpu_custom_call.1']
    #allocation5 [shape = 'u8[1024]{0}', space=vmem, size = 0x400, scoped, tag = 'output window, operand 2']
    #allocation6 [shape = 's32[2]{0}', space=sflag, size = 0x8, scoped, tag = 'scoped memory for tpu_custom_call.1']
    %11 = vsyncpa [#allocation4], 0
    %s12 = scalar_lea.sflag [#allocation4], 1
    %13 = vsyncpa %s12, 0
    %14 = vsyncpa [#allocation6], 0
    %s15 = scalar_lea.sflag [#allocation6], 1
    %16 = vsyncpa %s15, 0
    loop: start=0, step=1, limit=4
    $region2: #{tpu_custom_call.1} parent=1 // loop_pre_header
      _
    $region3: #{tpu_custom_call.1} parent=1 // loop_header
      %s18 = sphi 0, %s22
      %p19 = scmp.ge.s32.totalorder %s18, 4
      %s28 = sphi 0, %s30
      %s31 = sphi 0, %s28
      %s32 = sphi 0, %s31
      %s48 = sphi 0, %s32
      %s52 = sphi 0, %s52
      %s54 = sphi 0, %s52
      %s55 = sphi 0, %s54
      %s69 = sphi 0, %s55
      %s73 = sphi 0, %s73
      %s75 = sphi 0, %s73
      %s76 = sphi 0, %s75
      %s90 = sphi 0, %s76
      %s96 = sphi 0, %s98
      %s99 = sphi 0, %s96
      %s100 = sphi 0, %s99
      %s116 = sphi 0, %s100
      %s122 = sphi 0, %s124
      %s125 = sphi 0, %s122
      %s126 = sphi 0, %s125
      %s142 = sphi 0, %s126
      %s148 = sphi 0, %s150
      %s151 = sphi 0, %s148
      %s152 = sphi 0, %s151
      %s168 = sphi 0, %s152
    $region4: #{tpu_custom_call.1} parent=1 // loop_header_branch
      %21 = sbr.rel (%p19) target = $region8
    $region5: #{tpu_custom_call.1} parent=1 // loop_body
      %s23 = ssub.s32 %s18, 1
      %s24 = ssub.s32 %s18, 2
      %s25 = sadd.s32 %s18, 1
      %s26 = ssub.s32 %s18, %s25
      %p27 = scmp.eq.s32.totalorder %s26, 0
      %s29 = sadd.s32 %s28, 1
      %s30 = scalar_select %p27, %s28, %s29
      %p33 = pneg %p27
      %p34 = scmp.eq.s32.totalorder %s18, 1
      %p35 = por %p33, %p34
      %p36 = scmp.ne.s32.totalorder %s28, %s31
      %p37 = scmp.eq.s32.totalorder %s18, 0
      %p38 = por %p36, %p37
      %p39 = scmp.ne.s32.totalorder %s28, %s31
      %p40 = scmp.eq.s32.totalorder %s23, 1
      %p41 = por %p39, %p40
      %p42 = scmp.ne.s32.totalorder %s31, %s32
      %p43 = scmp.eq.s32.totalorder %s23, 0
      %p44 = por %p42, %p43
      %p45 = scmp.ne.s32.totalorder %s31, %s32
      %p46 = scmp.eq.s32.totalorder %s24, 1
      %p47 = por %p45, %p46
      %p49 = scmp.ne.s32.totalorder %s32, %s48
      %p50 = scmp.eq.s32.totalorder %s24, 0
      %p51 = por %p49, %p50
      %s53 = sadd.s32 %s52, 1
      %p56 = scmp.eq.s32.totalorder %s18, 1
      %p57 = scmp.ne.s32.totalorder %s52, %s54
      %p58 = scmp.eq.s32.totalorder %s18, 0
      %p59 = por %p57, %p58
      %p60 = scmp.ne.s32.totalorder %s52, %s54
      %p61 = scmp.eq.s32.totalorder %s23, 1
      %p62 = por %p60, %p61
      %p63 = scmp.ne.s32.totalorder %s54, %s55
      %p64 = scmp.eq.s32.totalorder %s23, 0
      %p65 = por %p63, %p64
      %p66 = scmp.ne.s32.totalorder %s54, %s55
      %p67 = scmp.eq.s32.totalorder %s24, 1
      %p68 = por %p66, %p67
      %p70 = scmp.ne.s32.totalorder %s55, %s69
      %p71 = scmp.eq.s32.totalorder %s24, 0
      %p72 = por %p70, %p71
      %s74 = sadd.s32 %s73, 1
      %p77 = scmp.eq.s32.totalorder %s18, 1
      %p78 = scmp.ne.s32.totalorder %s73, %s75
      %p79 = scmp.eq.s32.totalorder %s18, 0
      %p80 = por %p78, %p79
      %p81 = scmp.ne.s32.totalorder %s73, %s75
      %p82 = scmp.eq.s32.totalorder %s23, 1
      %p83 = por %p81, %p82
      %p84 = scmp.ne.s32.totalorder %s75, %s76
      %p85 = scmp.eq.s32.totalorder %s23, 0
      %p86 = por %p84, %p85
      %p87 = scmp.ne.s32.totalorder %s75, %s76
      %p88 = scmp.eq.s32.totalorder %s24, 1
      %p89 = por %p87, %p88
      %p91 = scmp.ne.s32.totalorder %s76, %s90
      %p92 = scmp.eq.s32.totalorder %s24, 0
      %p93 = por %p91, %p92
      %s94 = ssub.s32 %s18, %s25
      %p95 = scmp.eq.s32.totalorder %s94, 0
      %s97 = sadd.s32 %s96, 1
      %s98 = scalar_select %p95, %s96, %s97
      %p101 = pneg %p95
      %p102 = scmp.eq.s32.totalorder %s18, 1
      %p103 = por %p101, %p102
      %p104 = scmp.ne.s32.totalorder %s96, %s99
      %p105 = scmp.eq.s32.totalorder %s18, 0
      %p106 = por %p104, %p105
      %p107 = scmp.ne.s32.totalorder %s96, %s99
      %p108 = scmp.eq.s32.totalorder %s23, 1
      %p109 = por %p107, %p108
      %p110 = scmp.ne.s32.totalorder %s99, %s100
      %p111 = scmp.eq.s32.totalorder %s23, 0
      %p112 = por %p110, %p111
      %p113 = scmp.ne.s32.totalorder %s99, %s100
      %p114 = scmp.eq.s32.totalorder %s24, 1
      %p115 = por %p113, %p114
      %p117 = scmp.ne.s32.totalorder %s100, %s116
      %p118 = scmp.eq.s32.totalorder %s24, 0
      %p119 = por %p117, %p118
      %s120 = ssub.s32 %s18, %s25
      %p121 = scmp.eq.s32.totalorder %s120, 0
      %s123 = sadd.s32 %s122, 1
      %s124 = scalar_select %p121, %s122, %s123
      %p127 = pneg %p121
      %p128 = scmp.eq.s32.totalorder %s18, 1
      %p129 = por %p127, %p128
      %p130 = scmp.ne.s32.totalorder %s122, %s125
      %p131 = scmp.eq.s32.totalorder %s18, 0
      %p132 = por %p130, %p131
      %p133 = scmp.ne.s32.totalorder %s122, %s125
      %p134 = scmp.eq.s32.totalorder %s23, 1
      %p135 = por %p133, %p134
      %p136 = scmp.ne.s32.totalorder %s125, %s126
      %p137 = scmp.eq.s32.totalorder %s23, 0
      %p138 = por %p136, %p137
      %p139 = scmp.ne.s32.totalorder %s125, %s126
      %p140 = scmp.eq.s32.totalorder %s24, 1
      %p141 = por %p139, %p140
      %p143 = scmp.ne.s32.totalorder %s126, %s142
      %p144 = scmp.eq.s32.totalorder %s24, 0
      %p145 = por %p143, %p144
      %s146 = ssub.s32 %s18, %s25
      %p147 = scmp.eq.s32.totalorder %s146, 0
      %s149 = sadd.s32 %s148, 1
      %s150 = scalar_select %p147, %s148, %s149
      %p153 = pneg %p147
      %p154 = scmp.eq.s32.totalorder %s18, 1
      %p155 = por %p153, %p154
      %p156 = scmp.ne.s32.totalorder %s148, %s151
      %p157 = scmp.eq.s32.totalorder %s18, 0
      %p158 = por %p156, %p157
      %p159 = scmp.ne.s32.totalorder %s148, %s151
      %p160 = scmp.eq.s32.totalorder %s23, 1
      %p161 = por %p159, %p160
      %p162 = scmp.ne.s32.totalorder %s151, %s152
      %p163 = scmp.eq.s32.totalorder %s23, 0
      %p164 = por %p162, %p163
      %p165 = scmp.ne.s32.totalorder %s151, %s152
      %p166 = scmp.eq.s32.totalorder %s24, 1
      %p167 = por %p165, %p166
      %p169 = scmp.ne.s32.totalorder %s152, %s168
      %p170 = scmp.eq.s32.totalorder %s24, 0
      %p171 = por %p169, %p170
      %p172 = scmp.le.s32.totalorder 1, %s18
      %p173 = scmp.lt.s32.totalorder %s18, 3
      %p174 = pnand %p172, %p173
      %p175 = pneg %p174
      // Predicated region
      $region9: #{tpu_custom_call.1} parent=5 // pred_check
        _
      $region10: #{tpu_custom_call.1} parent=5 // pred_check_branch
        %177 = sbr.rel (%p174) target = $region12
      $region11: #{tpu_custom_call.1} parent=5 // pred_region
        %s178 = ssub.s32 %s18, 1
        // Predicated region
        $region13: #{tpu_custom_call.1} parent=11 // pred_check
          %p179 = pneg %p65
        $region14: #{tpu_custom_call.1} parent=11 // pred_check_branch
          %181 = sbr.rel (%p179) target = $region16
        $region15: #{tpu_custom_call.1} parent=11 // pred_region
          _
        $region16: #{tpu_custom_call.1} parent=11 // pred_fallthru
          _
        // Predicated region
        $region17: #{tpu_custom_call.1} parent=11 // pred_check
          %p182 = pneg %p86
        $region18: #{tpu_custom_call.1} parent=11 // pred_check_branch
          %184 = sbr.rel (%p182) target = $region20
        $region19: #{tpu_custom_call.1} parent=11 // pred_region
          _
        $region20: #{tpu_custom_call.1} parent=11 // pred_fallthru
          _
      $region12: #{tpu_custom_call.1} parent=5 // pred_fallthru
        _
      %p185 = scmp.lt.s32.totalorder %s18, 2
      // Predicated region
      $region21: #{tpu_custom_call.1} parent=5 // pred_check
        %p186 = pneg %p185
      $region22: #{tpu_custom_call.1} parent=5 // pred_check_branch
        %188 = sbr.rel (%p186) target = $region24
      $region23: #{tpu_custom_call.1} parent=5 // pred_region
        // Predicated region
        $region25: #{tpu_custom_call.1} parent=23 // pred_check
          %p189 = pneg %p38
        $region26: #{tpu_custom_call.1} parent=23 // pred_check_branch
          %191 = sbr.rel (%p189) target = $region28
        $region27: #{tpu_custom_call.1} parent=23 // pred_region
          %p192 = scmp.lt.s32.totalorder %s18, 1
          %s193 = scalar_select %p192, %s18, 1
          %s194 = smul.addr %s193, 32
          %s195 = smul.addr %s194, 8
          %s196 = scalar_lea.vmem %s0, %s195
        $region28: #{tpu_custom_call.1} parent=23 // pred_fallthru
          _
      $region24: #{tpu_custom_call.1} parent=5 // pred_fallthru
        _
      %p197 = scmp.le.s32.totalorder 1, %s18
      %p198 = scmp.lt.s32.totalorder %s18, 3
      %p199 = pnand %p197, %p198
      %p200 = pneg %p199
      // Predicated region
      $region29: #{tpu_custom_call.1} parent=5 // pred_check
        _
      $region30: #{tpu_custom_call.1} parent=5 // pred_check_branch
        %202 = sbr.rel (%p199) target = $region32
      $region31: #{tpu_custom_call.1} parent=5 // pred_region
        %s203 = ssub.s32 %s18, 1
        %p204 = scmp.lt.s32.totalorder %s23, 1
        %s205 = scalar_select %p204, %s23, 1
        %s206 = smul.addr %s205, 32
        %s207 = smul.addr %s206, 8
        %s208 = scalar_lea.vmem %s0, %s207
        %p209 = pneg %p44
        %p210 = pneg %p41
        %p211 = pneg %p65
        %p212 = pneg %p62
        %p213 = pneg %p86
        %p214 = pneg %p83
        %p215 = pneg %p112
        %p216 = pneg %p109
        %p217 = scmp.lt.s32.totalorder %s23, 1
        %s218 = scalar_select %p217, %s23, 1
        %s219 = smul.addr %s218, 32
        %s220 = smul.addr %s219, 8
        %s221 = scalar_lea.vmem %s3, %s220
        %p222 = pneg %p138
        %p223 = pneg %p135
        %s224 = sand.u32 %s125, 1
        %s225 = scalar_lea.sflag [#allocation4], %s224
        %s226 = sand.u32 %s125, 1
        %s227 = scalar_lea.vmem [#allocation3], %s226
        %p228 = pneg %p164
        %p229 = pneg %p161
        %s230 = sand.u32 %s151, 1
        %s231 = scalar_lea.sflag [#allocation6], %s230
        %s232 = sand.u32 %s151, 1
        %s233 = scalar_lea.vmem [#allocation5], %s232
        %p234 = scmp.lt.s32.totalorder %s23, 1
        %s235 = scalar_select %p234, %s23, 1
        %s236 = smul.addr %s235, 32
        %s237 = smul.addr %s236, 8
        %s238 = scalar_lea.vmem %s0, %s237
        %p239 = scmp.lt.s32.totalorder %s23, 1
        %s240 = scalar_select %p239, %s23, 1
        %s241 = smul.addr %s240, 32
        %s242 = smul.addr %s241, 8
        %s243 = scalar_lea.vmem %s3, %s242
        %vm244 = vcmask 31744
        %245 = vst.msk [vmem:[#allocation2] sm:$0xff] %vm244, 0.0
        %246 = vst.msk [vmem:[#allocation2 + $0x8] sm:$0xff] %vm244, 0.0
        %vm247 = vcmask 25600
        %248 = vst.msk [vmem:[#allocation2 + $0x10] sm:$0x3] %vm247, 0.0
        %s249 = scalar_lea.vmem [#allocation2], 408
        %250 = vst.msk [vmem:[%s249] sm:$0xff] %vm244, 0.0
        %251 = vst.msk [vmem:[%s249 + $0x8] sm:$0xff] %vm244, 0.0
        %252 = vst.msk [vmem:[%s249 + $0x10] sm:$0x3] %vm247, 0.0
        %vm253 = vcmask 24576
        %254 = vst.msk [vmem:[#allocation2] sm:$0x1] %vm253, 0.0
        %255 = vst.msk [vmem:[#allocation2 + $0x18] sm:$0x1] %vm253, 0.0
        %256 = vst.msk [vmem:[#allocation2 + $0x30] sm:$0x1] %vm253, 0.0
        %257 = vst.msk [vmem:[#allocation2 + $0x48] sm:$0x1] %vm253, 0.0
        %258 = vst.msk [vmem:[#allocation2 + $0x60] sm:$0x1] %vm253, 0.0
        %259 = vst.msk [vmem:[#allocation2 + $0x78] sm:$0x1] %vm253, 0.0
        %260 = vst.msk [vmem:[#allocation2 + $0x90] sm:$0x1] %vm253, 0.0
        %261 = vst.msk [vmem:[#allocation2 + $0xa8] sm:$0x1] %vm253, 0.0
        %262 = vst.msk [vmem:[#allocation2 + $0xc0] sm:$0x1] %vm253, 0.0
        %263 = vst.msk [vmem:[#allocation2 + $0xd8] sm:$0x1] %vm253, 0.0
        %264 = vst.msk [vmem:[#allocation2 + $0xf0] sm:$0x1] %vm253, 0.0
        %265 = vst.msk [vmem:[#allocation2 + $0x108] sm:$0x1] %vm253, 0.0
        %266 = vst.msk [vmem:[#allocation2 + $0x120] sm:$0x1] %vm253, 0.0
        %267 = vst.msk [vmem:[#allocation2 + $0x138] sm:$0x1] %vm253, 0.0
        %268 = vst.msk [vmem:[#allocation2 + $0x150] sm:$0x1] %vm253, 0.0
        %269 = vst.msk [vmem:[#allocation2 + $0x168] sm:$0x1] %vm253, 0.0
        %270 = vst.msk [vmem:[#allocation2 + $0x180] sm:$0x1] %vm253, 0.0
        %271 = vst.msk [vmem:[#allocation2 + $0x198] sm:$0x1] %vm253, 0.0
        %272 = vst.msk [vmem:[#allocation2 + $0x11] sm:$0x1] %vm253, 0.0
        %273 = vst.msk [vmem:[#allocation2 + $0x29] sm:$0x1] %vm253, 0.0
        %274 = vst.msk [vmem:[#allocation2 + $0x41] sm:$0x1] %vm253, 0.0
        %275 = vst.msk [vmem:[#allocation2 + $0x59] sm:$0x1] %vm253, 0.0
        %276 = vst.msk [vmem:[#allocation2 + $0x71] sm:$0x1] %vm253, 0.0
        %277 = vst.msk [vmem:[#allocation2 + $0x89] sm:$0x1] %vm253, 0.0
        %278 = vst.msk [vmem:[#allocation2 + $0xa1] sm:$0x1] %vm253, 0.0
        %279 = vst.msk [vmem:[#allocation2 + $0xb9] sm:$0x1] %vm253, 0.0
        %280 = vst.msk [vmem:[#allocation2 + $0xd1] sm:$0x1] %vm253, 0.0
        %281 = vst.msk [vmem:[#allocation2 + $0xe9] sm:$0x1] %vm253, 0.0
        %282 = vst.msk [vmem:[#allocation2 + $0x101] sm:$0x1] %vm253, 0.0
        %283 = vst.msk [vmem:[#allocation2 + $0x119] sm:$0x1] %vm253, 0.0
        %284 = vst.msk [vmem:[#allocation2 + $0x131] sm:$0x1] %vm253, 0.0
        %285 = vst.msk [vmem:[#allocation2 + $0x149] sm:$0x1] %vm253, 0.0
        %286 = vst.msk [vmem:[#allocation2 + $0x161] sm:$0x1] %vm253, 0.0
        %287 = vst.msk [vmem:[#allocation2 + $0x179] sm:$0x1] %vm253, 0.0
        %288 = vst.msk [vmem:[#allocation2 + $0x191] sm:$0x1] %vm253, 0.0
        %289 = vst.msk [vmem:[#allocation2 + $0x1a9] sm:$0x1] %vm253, 0.0
        %v290 = vld [vmem:[%s238] sm:$0xff]
        %v291 = vld [vmem:[%s238 + $0x8] sm:$0xff]
        %v292 = vld [vmem:[%s238 + $0x10] sm:$0xff]
        %v293 = vld [vmem:[%s238 + $0x18] sm:$0xff]
        %v294 = vld [vmem:[%s238 + $0x20] sm:$0xff]
        %v295 = vld [vmem:[%s238 + $0x28] sm:$0xff]
        %v296 = vld [vmem:[%s238 + $0x30] sm:$0xff]
        %v297 = vld [vmem:[%s238 + $0x38] sm:$0xff]
        %v298 = vld [vmem:[%s238 + $0x40] sm:$0xff]
        %v299 = vld [vmem:[%s238 + $0x48] sm:$0xff]
        %v300 = vld [vmem:[%s238 + $0x50] sm:$0xff]
        %v301 = vld [vmem:[%s238 + $0x58] sm:$0xff]
        %v302 = vld [vmem:[%s238 + $0x60] sm:$0xff]
        %v303 = vld [vmem:[%s238 + $0x68] sm:$0xff]
        %v304 = vld [vmem:[%s238 + $0x70] sm:$0xff]
        %v305 = vld [vmem:[%s238 + $0x78] sm:$0xff]
        %v306 = vld [vmem:[%s238 + $0x80] sm:$0xff]
        %v307 = vld [vmem:[%s238 + $0x88] sm:$0xff]
        %v308 = vld [vmem:[%s238 + $0x90] sm:$0xff]
        %v309 = vld [vmem:[%s238 + $0x98] sm:$0xff]
        %v310 = vld [vmem:[%s238 + $0xa0] sm:$0xff]
        %v311 = vld [vmem:[%s238 + $0xa8] sm:$0xff]
        %v312 = vld [vmem:[%s238 + $0xb0] sm:$0xff]
        %v313 = vld [vmem:[%s238 + $0xb8] sm:$0xff]
        %v314 = vld [vmem:[%s238 + $0xc0] sm:$0xff]
        %v315 = vld [vmem:[%s238 + $0xc8] sm:$0xff]
        %v316 = vld [vmem:[%s238 + $0xd0] sm:$0xff]
        %v317 = vld [vmem:[%s238 + $0xd8] sm:$0xff]
        %v318 = vld [vmem:[%s238 + $0xe0] sm:$0xff]
        %v319 = vld [vmem:[%s238 + $0xe8] sm:$0xff]
        %v320 = vld [vmem:[%s238 + $0xf0] sm:$0xff]
        %v321 = vld [vmem:[%s238 + $0xf8] sm:$0xff]
        %s322 = scalar_lea.vmem [#allocation2], 24
        %323 = vst.msk [vmem:[%s322 + $0x1] sm:$0xff] %vm244, %v290
        %324 = vst.msk [vmem:[%s322 + $0x9] sm:$0xff] %vm244, %v291
        %325 = vst.msk [vmem:[%s322 + $0x19] sm:$0xff] %vm244, %v292
        %326 = vst.msk [vmem:[%s322 + $0x21] sm:$0xff] %vm244, %v293
        %327 = vst.msk [vmem:[%s322 + $0x31] sm:$0xff] %vm244, %v294
        %328 = vst.msk [vmem:[%s322 + $0x39] sm:$0xff] %vm244, %v295
        %329 = vst.msk [vmem:[%s322 + $0x49] sm:$0xff] %vm244, %v296
        %330 = vst.msk [vmem:[%s322 + $0x51] sm:$0xff] %vm244, %v297
        %331 = vst.msk [vmem:[%s322 + $0x61] sm:$0xff] %vm244, %v298
        %332 = vst.msk [vmem:[%s322 + $0x69] sm:$0xff] %vm244, %v299
        %333 = vst.msk [vmem:[%s322 + $0x79] sm:$0xff] %vm244, %v300
        %334 = vst.msk [vmem:[%s322 + $0x81] sm:$0xff] %vm244, %v301
        %335 = vst.msk [vmem:[%s322 + $0x91] sm:$0xff] %vm244, %v302
        %336 = vst.msk [vmem:[%s322 + $0x99] sm:$0xff] %vm244, %v303
        %337 = vst.msk [vmem:[%s322 + $0xa9] sm:$0xff] %vm244, %v304
        %338 = vst.msk [vmem:[%s322 + $0xb1] sm:$0xff] %vm244, %v305
        %339 = vst.msk [vmem:[%s322 + $0xc1] sm:$0xff] %vm244, %v306
        %340 = vst.msk [vmem:[%s322 + $0xc9] sm:$0xff] %vm244, %v307
        %341 = vst.msk [vmem:[%s322 + $0xd9] sm:$0xff] %vm244, %v308
        %342 = vst.msk [vmem:[%s322 + $0xe1] sm:$0xff] %vm244, %v309
        %343 = vst.msk [vmem:[%s322 + $0xf1] sm:$0xff] %vm244, %v310
        %344 = vst.msk [vmem:[%s322 + $0xf9] sm:$0xff] %vm244, %v311
        %345 = vst.msk [vmem:[%s322 + $0x109] sm:$0xff] %vm244, %v312
        %346 = vst.msk [vmem:[%s322 + $0x111] sm:$0xff] %vm244, %v313
        %347 = vst.msk [vmem:[%s322 + $0x121] sm:$0xff] %vm244, %v314
        %348 = vst.msk [vmem:[%s322 + $0x129] sm:$0xff] %vm244, %v315
        %349 = vst.msk [vmem:[%s322 + $0x139] sm:$0xff] %vm244, %v316
        %350 = vst.msk [vmem:[%s322 + $0x141] sm:$0xff] %vm244, %v317
        %351 = vst.msk [vmem:[%s322 + $0x151] sm:$0xff] %vm244, %v318
        %352 = vst.msk [vmem:[%s322 + $0x159] sm:$0xff] %vm244, %v319
        %353 = vst.msk [vmem:[%s322 + $0x169] sm:$0xff] %vm244, %v320
        %354 = vst.msk [vmem:[%s322 + $0x171] sm:$0xff] %vm244, %v321
        %v355 = vld [vmem:[#allocation2] sm:$0xff]
        %v356 = vld [vmem:[#allocation2 + $0x8] sm:$0xff]
        %v357 = vld [vmem:[#allocation2 + $0x10] sm:$0x3]
        %v358 = vld [vmem:[#allocation2 + $0x18] sm:$0xff]
        %v359 = vld [vmem:[#allocation2 + $0x20] sm:$0xff]
        %v360 = vld [vmem:[#allocation2 + $0x28] sm:$0x3]
        %v361 = vld [vmem:[#allocation2 + $0x30] sm:$0xff]
        %v362 = vld [vmem:[#allocation2 + $0x38] sm:$0xff]
        %v363 = vld [vmem:[#allocation2 + $0x40] sm:$0x3]
        %v364 = vld [vmem:[#allocation2 + $0x48] sm:$0xff]
        %v365 = vld [vmem:[#allocation2 + $0x50] sm:$0xff]
        %v366 = vld [vmem:[#allocation2 + $0x58] sm:$0x3]
        %v367 = vld [vmem:[#allocation2 + $0x60] sm:$0xff]
        %v368 = vld [vmem:[#allocation2 + $0x68] sm:$0xff]
        %v369 = vld [vmem:[#allocation2 + $0x70] sm:$0x3]
        %v370 = vld [vmem:[#allocation2 + $0x78] sm:$0xff]
        %v371 = vld [vmem:[#allocation2 + $0x80] sm:$0xff]
        %v372 = vld [vmem:[#allocation2 + $0x88] sm:$0x3]
        %v373 = vld [vmem:[#allocation2 + $0x90] sm:$0xff]
        %v374 = vld [vmem:[#allocation2 + $0x98] sm:$0xff]
        %v375 = vld [vmem:[#allocation2 + $0xa0] sm:$0x3]
        %v376 = vld [vmem:[#allocation2 + $0xa8] sm:$0xff]
        %v377 = vld [vmem:[#allocation2 + $0xb0] sm:$0xff]
        %v378 = vld [vmem:[#allocation2 + $0xb8] sm:$0x3]
        %v379 = vld [vmem:[#allocation2 + $0xc0] sm:$0xff]
        %v380 = vld [vmem:[#allocation2 + $0xc8] sm:$0xff]
        %v381 = vld [vmem:[#allocation2 + $0xd0] sm:$0x3]
        %v382 = vld [vmem:[#allocation2 + $0xd8] sm:$0xff]
        %v383 = vld [vmem:[#allocation2 + $0xe0] sm:$0xff]
        %v384 = vld [vmem:[#allocation2 + $0xe8] sm:$0x3]
        %v385 = vld [vmem:[#allocation2 + $0xf0] sm:$0xff]
        %v386 = vld [vmem:[#allocation2 + $0xf8] sm:$0xff]
        %v387 = vld [vmem:[#allocation2 + $0x100] sm:$0x3]
        %v388 = vld [vmem:[#allocation2 + $0x108] sm:$0xff]
        %v389 = vld [vmem:[#allocation2 + $0x110] sm:$0xff]
        %v390 = vld [vmem:[#allocation2 + $0x118] sm:$0x3]
        %v391 = vld [vmem:[#allocation2 + $0x120] sm:$0xff]
        %v392 = vld [vmem:[#allocation2 + $0x128] sm:$0xff]
        %v393 = vld [vmem:[#allocation2 + $0x130] sm:$0x3]
        %v394 = vld [vmem:[#allocation2 + $0x138] sm:$0xff]
        %v395 = vld [vmem:[#allocation2 + $0x140] sm:$0xff]
        %v396 = vld [vmem:[#allocation2 + $0x148] sm:$0x3]
        %v397 = vld [vmem:[#allocation2 + $0x150] sm:$0xff]
        %v398 = vld [vmem:[#allocation2 + $0x158] sm:$0xff]
        %v399 = vld [vmem:[#allocation2 + $0x160] sm:$0x3]
        %v400 = vld [vmem:[#allocation2 + $0x168] sm:$0xff]
        %v401 = vld [vmem:[#allocation2 + $0x170] sm:$0xff]
        %v402 = vld [vmem:[#allocation2 + $0x178] sm:$0x3]
        %v403 = vld [vmem:[#allocation2 + $0x180] sm:$0xff]
        %v404 = vld [vmem:[#allocation2 + $0x188] sm:$0xff]
        %v405 = vld [vmem:[#allocation2 + $0x190] sm:$0x3]
        %v406 = vld [vmem:[#allocation2 + $0x198] sm:$0xff]
        %v407 = vld [vmem:[#allocation2 + $0x1a0] sm:$0xff]
        %v408 = vld [vmem:[#allocation2 + $0x1a8] sm:$0x3]
        %v409 = vld [vmem:[%s2] sm:$0x1]
        %v411 = vlaneseq
        %v412 = vshrl.u32 %v411, 7
        %v413 = vsub.s32 0, %v412
        %v414 = vrot.slane %v409, %v413
        %v416 = vadd.f32 %v414, 0.0
        %v417 = vld [vmem:[%s1] sm:$0xf]
        %v419 = vsel %vm244, %v355, 0
        %v422 = vsel %vm244, %v356, 0
        %v425 = vsel %vm244, %v358, 0
        %v428 = vsel %vm244, %v359, 0
        %v431 = vsel %vm244, %v361, 0
        %v434 = vsel %vm244, %v362, 0
        %v437 = vsel %vm244, %v364, 0
        %v440 = vsel %vm244, %v365, 0
        %v443 = vsel %vm244, %v367, 0
        %v446 = vsel %vm244, %v368, 0
        %v449 = vsel %vm244, %v370, 0
        %v452 = vsel %vm244, %v371, 0
        %v455 = vsel %vm244, %v373, 0
        %v458 = vsel %vm244, %v374, 0
        %v461 = vsel %vm244, %v376, 0
        %v464 = vsel %vm244, %v377, 0
        %v467 = vsel %vm244, %v379, 0
        %v470 = vsel %vm244, %v380, 0
        %v473 = vsel %vm244, %v382, 0
        %v476 = vsel %vm244, %v383, 0
        %v479 = vsel %vm244, %v385, 0
        %v482 = vsel %vm244, %v386, 0
        %v485 = vsel %vm244, %v388, 0
        %v488 = vsel %vm244, %v389, 0
        %v491 = vsel %vm244, %v391, 0
        %v494 = vsel %vm244, %v392, 0
        %v497 = vsel %vm244, %v394, 0
        %v500 = vsel %vm244, %v395, 0
        %v503 = vsel %vm244, %v397, 0
        %v506 = vsel %vm244, %v398, 0
        %v509 = vsel %vm244, %v400, 0
        %v512 = vsel %vm244, %v401, 0
        %vm514 = vcmask 1043456
        %v516 = vsel %vm514, %v417, 0
        %518 = vmatprep.subr.mxu0 0.0
        %519 = vmatpush1.msra.mxu0 0.0
        %520 = vmatprep.subr.mxu0 0.0
        %521 = vmatpush1.msra.mxu0 0.0
        %522 = vmatprep.subr.mxu0 0.0
        %523 = vmatpush1.msra.mxu0 0.0
        %524 = vmatprep.subr.mxu0 0.0
        %525 = vmatpush1.msra.mxu0 0.0
        %526 = vmatprep.subr.mxu0 0.0
        %527 = vmatpush1.msra.mxu0 0.0
        %528 = vmatprep.subr.mxu0 0.0
        %529 = vmatpush1.msra.mxu0 0.0
        %530 = vmatprep.subr.mxu0 0.0
        %531 = vmatpush1.msra.mxu0 0.0
        %532 = vmatprep.subr.mxu0 0.0
        %533 = vmatpush1.msra.mxu0 0.0
        %534 = vmatprep.subr.mxu0 0.0
        %535 = vmatpush1.msra.mxu0 0.0
        %536 = vmatprep.subr.mxu0 0.0
        %537 = vmatpush1.msra.mxu0 0.0
        %538 = vmatprep.subr.mxu0 0.0
        %539 = vmatpush1.msra.mxu0 0.0
        %540 = vmatprep.subr.mxu0 0.0
        %541 = vmatpush1.msra.mxu0 0.0
        %542 = vmatprep.subr.mxu0 0.0
        %543 = vmatpush1.msra.mxu0 0.0
        %544 = vmatprep.subr.mxu0 0.0
        %545 = vmatpush1.msra.mxu0 0.0
        %546 = vmatprep.subr.mxu0 0.0
        %547 = vmatpush1.msra.mxu0 0.0
        %548 = vmatprep.subr.mxu0 0.0
        %549 = vmatpush1.msra.mxu0 %v516
        %550 = vmatprep.subr.mxu0 0.0
        %551 = vmatpush2.msra.mxu0 0.0
        %552 = vmatprep.subr.mxu0 0.0
        %553 = vmatpush2.msra.mxu0 0.0
        %554 = vmatprep.subr.mxu0 0.0
        %555 = vmatpush2.msra.mxu0 0.0
        %556 = vmatprep.subr.mxu0 0.0
        %557 = vmatpush2.msra.mxu0 0.0
        %558 = vmatprep.subr.mxu0 0.0
        %559 = vmatpush2.msra.mxu0 0.0
        %560 = vmatprep.subr.mxu0 0.0
        %561 = vmatpush2.msra.mxu0 0.0
        %562 = vmatprep.subr.mxu0 0.0
        %563 = vmatpush2.msra.mxu0 0.0
        %564 = vmatprep.subr.mxu0 0.0
        %565 = vmatpush2.msra.mxu0 0.0
        %566 = vmatprep.subr.mxu0 0.0
        %567 = vmatpush2.msra.mxu0 0.0
        %568 = vmatprep.subr.mxu0 0.0
        %569 = vmatpush2.msra.mxu0 0.0
        %570 = vmatprep.subr.mxu0 0.0
        %571 = vmatpush2.msra.mxu0 0.0
        %572 = vmatprep.subr.mxu0 0.0
        %573 = vmatpush2.msra.mxu0 0.0
        %574 = vmatprep.subr.mxu0 0.0
        %575 = vmatpush2.msra.mxu0 0.0
        %576 = vmatprep.subr.mxu0 0.0
        %577 = vmatpush2.msra.mxu0 0.0
        %578 = vmatprep.subr.mxu0 0.0
        %579 = vmatpush2.msra.mxu0 0.0
        %580 = vmatprep.subr.mxu0 0.0
        %581 = vmatpush2.msra.mxu0 0.0
        %582 = vmatprep.mubr.f32.mxu0 0.0
        %583 = vmatmul.mubr.f32.gmra.mxu0 %v419
        %v584 = vpop.f32.mrf.mxu0
        %v585 = vadd.f32 0.0, %v584
        %v586 = vpop.f32.mrf.mxu0
        %587 = vmatprep.mubr.f32.mxu0 0.0
        %588 = vmatmul.mubr.f32.gmra.mxu0 %v422
        %v589 = vpop.f32.mrf.mxu0
        %v590 = vadd.f32 0.0, %v589
        %v591 = vpop.f32.mrf.mxu0
        %592 = vmatprep.mubr.f32.mxu0 0.0
        %593 = vmatmul.mubr.f32.gmra.mxu0 %v425
        %v594 = vpop.f32.mrf.mxu0
        %v595 = vadd.f32 0.0, %v594
        %v596 = vpop.f32.mrf.mxu0
        %597 = vmatprep.mubr.f32.mxu0 0.0
        %598 = vmatmul.mubr.f32.gmra.mxu0 %v428
        %v599 = vpop.f32.mrf.mxu0
        %v600 = vadd.f32 0.0, %v599
        %v601 = vpop.f32.mrf.mxu0
        %602 = vmatprep.mubr.f32.mxu0 0.0
        %603 = vmatmul.mubr.f32.gmra.mxu0 %v431
        %v604 = vpop.f32.mrf.mxu0
        %v605 = vadd.f32 0.0, %v604
        %v606 = vpop.f32.mrf.mxu0
        %607 = vmatprep.mubr.f32.mxu0 0.0
        %608 = vmatmul.mubr.f32.gmra.mxu0 %v434
        %v609 = vpop.f32.mrf.mxu0
        %v610 = vadd.f32 0.0, %v609
        %v611 = vpop.f32.mrf.mxu0
        %612 = vmatprep.mubr.f32.mxu0 0.0
        %613 = vmatmul.mubr.f32.gmra.mxu0 %v437
        %v614 = vpop.f32.mrf.mxu0
        %v615 = vadd.f32 0.0, %v614
        %v616 = vpop.f32.mrf.mxu0
        %617 = vmatprep.mubr.f32.mxu0 0.0
        %618 = vmatmul.mubr.f32.gmra.mxu0 %v440
        %v619 = vpop.f32.mrf.mxu0
        %v620 = vadd.f32 0.0, %v619
        %v621 = vpop.f32.mrf.mxu0
        %622 = vmatprep.mubr.f32.mxu0 0.0
        %623 = vmatmul.mubr.f32.gmra.mxu0 %v443
        %v624 = vpop.f32.mrf.mxu0
        %v625 = vadd.f32 0.0, %v624
        %v626 = vpop.f32.mrf.mxu0
        %627 = vmatprep.mubr.f32.mxu0 0.0
        %628 = vmatmul.mubr.f32.gmra.mxu0 %v446
        %v629 = vpop.f32.mrf.mxu0
        %v630 = vadd.f32 0.0, %v629
        %v631 = vpop.f32.mrf.mxu0
        %632 = vmatprep.mubr.f32.mxu0 0.0
        %633 = vmatmul.mubr.f32.gmra.mxu0 %v449
        %v634 = vpop.f32.mrf.mxu0
        %v635 = vadd.f32 0.0, %v634
        %v636 = vpop.f32.mrf.mxu0
        %637 = vmatprep.mubr.f32.mxu0 0.0
        %638 = vmatmul.mubr.f32.gmra.mxu0 %v452
        %v639 = vpop.f32.mrf.mxu0
        %v640 = vadd.f32 0.0, %v639
        %v641 = vpop.f32.mrf.mxu0
        %642 = vmatprep.mubr.f32.mxu0 0.0
        %643 = vmatmul.mubr.f32.gmra.mxu0 %v455
        %v644 = vpop.f32.mrf.mxu0
        %v645 = vadd.f32 0.0, %v644
        %v646 = vpop.f32.mrf.mxu0
        %647 = vmatprep.mubr.f32.mxu0 0.0
        %648 = vmatmul.mubr.f32.gmra.mxu0 %v458
        %v649 = vpop.f32.mrf.mxu0
        %v650 = vadd.f32 0.0, %v649
        %v651 = vpop.f32.mrf.mxu0
        %652 = vmatprep.mubr.f32.mxu0 0.0
        %653 = vmatmul.mubr.f32.gmra.mxu0 %v461
        %v654 = vpop.f32.mrf.mxu0
        %v655 = vadd.f32 0.0, %v654
        %v656 = vpop.f32.mrf.mxu0
        %657 = vmatprep.mubr.f32.mxu0 0.0
        %658 = vmatmul.mubr.f32.gmra.mxu0 %v464
        %v659 = vpop.f32.mrf.mxu0
        %v660 = vadd.f32 0.0, %v659
        %v661 = vpop.f32.mrf.mxu0
        %662 = vmatprep.mubr.f32.mxu0 0.0
        %663 = vmatmul.mubr.f32.gmra.mxu0 %v467
        %v664 = vpop.f32.mrf.mxu0
        %v665 = vadd.f32 0.0, %v664
        %v666 = vpop.f32.mrf.mxu0
        %667 = vmatprep.mubr.f32.mxu0 0.0
        %668 = vmatmul.mubr.f32.gmra.mxu0 %v470
        %v669 = vpop.f32.mrf.mxu0
        %v670 = vadd.f32 0.0, %v669
        %v671 = vpop.f32.mrf.mxu0
        %672 = vmatprep.mubr.f32.mxu0 0.0
        %673 = vmatmul.mubr.f32.gmra.mxu0 %v473
        %v674 = vpop.f32.mrf.mxu0
        %v675 = vadd.f32 0.0, %v674
        %v676 = vpop.f32.mrf.mxu0
        %677 = vmatprep.mubr.f32.mxu0 0.0
        %678 = vmatmul.mubr.f32.gmra.mxu0 %v476
        %v679 = vpop.f32.mrf.mxu0
        %v680 = vadd.f32 0.0, %v679
        %v681 = vpop.f32.mrf.mxu0
        %682 = vmatprep.mubr.f32.mxu0 0.0
        %683 = vmatmul.mubr.f32.gmra.mxu0 %v479
        %v684 = vpop.f32.mrf.mxu0
        %v685 = vadd.f32 0.0, %v684
        %v686 = vpop.f32.mrf.mxu0
        %687 = vmatprep.mubr.f32.mxu0 0.0
        %688 = vmatmul.mubr.f32.gmra.mxu0 %v482
        %v689 = vpop.f32.mrf.mxu0
        %v690 = vadd.f32 0.0, %v689
        %v691 = vpop.f32.mrf.mxu0
        %692 = vmatprep.mubr.f32.mxu0 0.0
        %693 = vmatmul.mubr.f32.gmra.mxu0 %v485
        %v694 = vpop.f32.mrf.mxu0
        %v695 = vadd.f32 0.0, %v694
        %v696 = vpop.f32.mrf.mxu0
        %697 = vmatprep.mubr.f32.mxu0 0.0
        %698 = vmatmul.mubr.f32.gmra.mxu0 %v488
        %v699 = vpop.f32.mrf.mxu0
        %v700 = vadd.f32 0.0, %v699
        %v701 = vpop.f32.mrf.mxu0
        %702 = vmatprep.mubr.f32.mxu0 0.0
        %703 = vmatmul.mubr.f32.gmra.mxu0 %v491
        %v704 = vpop.f32.mrf.mxu0
        %v705 = vadd.f32 0.0, %v704
        %v706 = vpop.f32.mrf.mxu0
        %707 = vmatprep.mubr.f32.mxu0 0.0
        %708 = vmatmul.mubr.f32.gmra.mxu0 %v494
        %v709 = vpop.f32.mrf.mxu0
        %v710 = vadd.f32 0.0, %v709
        %v711 = vpop.f32.mrf.mxu0
        %712 = vmatprep.mubr.f32.mxu0 0.0
        %713 = vmatmul.mubr.f32.gmra.mxu0 %v497
        %v714 = vpop.f32.mrf.mxu0
        %v715 = vadd.f32 0.0, %v714
        %v716 = vpop.f32.mrf.mxu0
        %717 = vmatprep.mubr.f32.mxu0 0.0
        %718 = vmatmul.mubr.f32.gmra.mxu0 %v500
        %v719 = vpop.f32.mrf.mxu0
        %v720 = vadd.f32 0.0, %v719
        %v721 = vpop.f32.mrf.mxu0
        %722 = vmatprep.mubr.f32.mxu0 0.0
        %723 = vmatmul.mubr.f32.gmra.mxu0 %v503
        %v724 = vpop.f32.mrf.mxu0
        %v725 = vadd.f32 0.0, %v724
        %v726 = vpop.f32.mrf.mxu0
        %727 = vmatprep.mubr.f32.mxu0 0.0
        %728 = vmatmul.mubr.f32.gmra.mxu0 %v506
        %v729 = vpop.f32.mrf.mxu0
        %v730 = vadd.f32 0.0, %v729
        %v731 = vpop.f32.mrf.mxu0
        %732 = vmatprep.mubr.f32.mxu0 0.0
        %733 = vmatmul.mubr.f32.gmra.mxu0 %v509
        %v734 = vpop.f32.mrf.mxu0
        %v735 = vadd.f32 0.0, %v734
        %v736 = vpop.f32.mrf.mxu0
        %737 = vmatprep.mubr.f32.mxu0 0.0
        %738 = vmatmul.mubr.f32.gmra.mxu0 %v512
        %v739 = vpop.f32.mrf.mxu0
        %v740 = vadd.f32 0.0, %v739
        %v741 = vpop.f32.mrf.mxu0
        %742 = vdwg.mxu0
        %v743 = vadd.f32 %v416, %v585
        %v744 = vadd.f32 %v416, %v590
        %v745 = vadd.f32 %v416, %v595
        %v746 = vadd.f32 %v416, %v600
        %v747 = vadd.f32 %v416, %v605
        %v748 = vadd.f32 %v416, %v610
        %v749 = vadd.f32 %v416, %v615
        %v750 = vadd.f32 %v416, %v620
        %v751 = vadd.f32 %v416, %v625
        %v752 = vadd.f32 %v416, %v630
        %v753 = vadd.f32 %v416, %v635
        %v754 = vadd.f32 %v416, %v640
        %v755 = vadd.f32 %v416, %v645
        %v756 = vadd.f32 %v416, %v650
        %v757 = vadd.f32 %v416, %v655
        %v758 = vadd.f32 %v416, %v660
        %v759 = vadd.f32 %v416, %v665
        %v760 = vadd.f32 %v416, %v670
        %v761 = vadd.f32 %v416, %v675
        %v762 = vadd.f32 %v416, %v680
        %v763 = vadd.f32 %v416, %v685
        %v764 = vadd.f32 %v416, %v690
        %v765 = vadd.f32 %v416, %v695
        %v766 = vadd.f32 %v416, %v700
        %v767 = vadd.f32 %v416, %v705
        %v768 = vadd.f32 %v416, %v710
        %v769 = vadd.f32 %v416, %v715
        %v770 = vadd.f32 %v416, %v720
        %v771 = vadd.f32 %v416, %v725
        %v772 = vadd.f32 %v416, %v730
        %v773 = vadd.f32 %v416, %v735
        %v774 = vadd.f32 %v416, %v740
        %s775 = scalar_lea.vmem %s1, 12
        %v776 = vld [vmem:[%s775] sm:$0xf]
        %v778 = vsel %vm244, %v403, 0
        %v781 = vsel %vm244, %v404, 0
        %v784 = vsel %vm514, %v776, 0
        %786 = vmatprep.subr.mxu0 0.0
        %787 = vmatpush1.msra.mxu0 0.0
        %788 = vmatprep.subr.mxu0 0.0
        %789 = vmatpush1.msra.mxu0 0.0
        %790 = vmatprep.subr.mxu0 0.0
        %791 = vmatpush1.msra.mxu0 0.0
        %792 = vmatprep.subr.mxu0 0.0
        %793 = vmatpush1.msra.mxu0 0.0
        %794 = vmatprep.subr.mxu0 0.0
        %795 = vmatpush1.msra.mxu0 0.0
        %796 = vmatprep.subr.mxu0 0.0
        %797 = vmatpush1.msra.mxu0 0.0
        %798 = vmatprep.subr.mxu0 0.0
        %799 = vmatpush1.msra.mxu0 0.0
        %800 = vmatprep.subr.mxu0 0.0
        %801 = vmatpush1.msra.mxu0 0.0
        %802 = vmatprep.subr.mxu0 0.0
        %803 = vmatpush1.msra.mxu0 0.0
        %804 = vmatprep.subr.mxu0 0.0
        %805 = vmatpush1.msra.mxu0 0.0
        %806 = vmatprep.subr.mxu0 0.0
        %807 = vmatpush1.msra.mxu0 0.0
        %808 = vmatprep.subr.mxu0 0.0
        %809 = vmatpush1.msra.mxu0 0.0
        %810 = vmatprep.subr.mxu0 0.0
        %811 = vmatpush1.msra.mxu0 0.0
        %812 = vmatprep.subr.mxu0 0.0
        %813 = vmatpush1.msra.mxu0 0.0
        %814 = vmatprep.subr.mxu0 0.0
        %815 = vmatpush1.msra.mxu0 0.0
        %816 = vmatprep.subr.mxu0 0.0
        %817 = vmatpush1.msra.mxu0 %v784
        %818 = vmatprep.subr.mxu0 0.0
        %819 = vmatpush2.msra.mxu0 0.0
        %820 = vmatprep.subr.mxu0 0.0
        %821 = vmatpush2.msra.mxu0 0.0
        %822 = vmatprep.subr.mxu0 0.0
        %823 = vmatpush2.msra.mxu0 0.0
        %824 = vmatprep.subr.mxu0 0.0
        %825 = vmatpush2.msra.mxu0 0.0
        %826 = vmatprep.subr.mxu0 0.0
        %827 = vmatpush2.msra.mxu0 0.0
        %828 = vmatprep.subr.mxu0 0.0
        %829 = vmatpush2.msra.mxu0 0.0
        %830 = vmatprep.subr.mxu0 0.0
        %831 = vmatpush2.msra.mxu0 0.0
        %832 = vmatprep.subr.mxu0 0.0
        %833 = vmatpush2.msra.mxu0 0.0
        %834 = vmatprep.subr.mxu0 0.0
        %835 = vmatpush2.msra.mxu0 0.0
        %836 = vmatprep.subr.mxu0 0.0
        %837 = vmatpush2.msra.mxu0 0.0
        %838 = vmatprep.subr.mxu0 0.0
        %839 = vmatpush2.msra.mxu0 0.0
        %840 = vmatprep.subr.mxu0 0.0
        %841 = vmatpush2.msra.mxu0 0.0
        %842 = vmatprep.subr.mxu0 0.0
        %843 = vmatpush2.msra.mxu0 0.0
        %844 = vmatprep.subr.mxu0 0.0
        %845 = vmatpush2.msra.mxu0 0.0
        %846 = vmatprep.subr.mxu0 0.0
        %847 = vmatpush2.msra.mxu0 0.0
        %848 = vmatprep.subr.mxu0 0.0
        %849 = vmatpush2.msra.mxu0 0.0
        %850 = vmatprep.mubr.f32.mxu0 0.0
        %851 = vmatmul.mubr.f32.gmra.mxu0 %v425
        %v852 = vpop.f32.mrf.mxu0
        %v853 = vadd.f32 0.0, %v852
        %v854 = vpop.f32.mrf.mxu0
        %855 = vmatprep.mubr.f32.mxu0 0.0
        %856 = vmatmul.mubr.f32.gmra.mxu0 %v428
        %v857 = vpop.f32.mrf.mxu0
        %v858 = vadd.f32 0.0, %v857
        %v859 = vpop.f32.mrf.mxu0
        %860 = vmatprep.mubr.f32.mxu0 0.0
        %861 = vmatmul.mubr.f32.gmra.mxu0 %v431
        %v862 = vpop.f32.mrf.mxu0
        %v863 = vadd.f32 0.0, %v862
        %v864 = vpop.f32.mrf.mxu0
        %865 = vmatprep.mubr.f32.mxu0 0.0
        %866 = vmatmul.mubr.f32.gmra.mxu0 %v434
        %v867 = vpop.f32.mrf.mxu0
        %v868 = vadd.f32 0.0, %v867
        %v869 = vpop.f32.mrf.mxu0
        %870 = vmatprep.mubr.f32.mxu0 0.0
        %871 = vmatmul.mubr.f32.gmra.mxu0 %v437
        %v872 = vpop.f32.mrf.mxu0
        %v873 = vadd.f32 0.0, %v872
        %v874 = vpop.f32.mrf.mxu0
        %875 = vmatprep.mubr.f32.mxu0 0.0
        %876 = vmatmul.mubr.f32.gmra.mxu0 %v440
        %v877 = vpop.f32.mrf.mxu0
        %v878 = vadd.f32 0.0, %v877
        %v879 = vpop.f32.mrf.mxu0
        %880 = vmatprep.mubr.f32.mxu0 0.0
        %881 = vmatmul.mubr.f32.gmra.mxu0 %v443
        %v882 = vpop.f32.mrf.mxu0
        %v883 = vadd.f32 0.0, %v882
        %v884 = vpop.f32.mrf.mxu0
        %885 = vmatprep.mubr.f32.mxu0 0.0
        %886 = vmatmul.mubr.f32.gmra.mxu0 %v446
        %v887 = vpop.f32.mrf.mxu0
        %v888 = vadd.f32 0.0, %v887
        %v889 = vpop.f32.mrf.mxu0
        %890 = vmatprep.mubr.f32.mxu0 0.0
        %891 = vmatmul.mubr.f32.gmra.mxu0 %v449
        %v892 = vpop.f32.mrf.mxu0
        %v893 = vadd.f32 0.0, %v892
        %v894 = vpop.f32.mrf.mxu0
        %895 = vmatprep.mubr.f32.mxu0 0.0
        %896 = vmatmul.mubr.f32.gmra.mxu0 %v452
        %v897 = vpop.f32.mrf.mxu0
        %v898 = vadd.f32 0.0, %v897
        %v899 = vpop.f32.mrf.mxu0
        %900 = vmatprep.mubr.f32.mxu0 0.0
        %901 = vmatmul.mubr.f32.gmra.mxu0 %v455
        %v902 = vpop.f32.mrf.mxu0
        %v903 = vadd.f32 0.0, %v902
        %v904 = vpop.f32.mrf.mxu0
        %905 = vmatprep.mubr.f32.mxu0 0.0
        %906 = vmatmul.mubr.f32.gmra.mxu0 %v458
        %v907 = vpop.f32.mrf.mxu0
        %v908 = vadd.f32 0.0, %v907
        %v909 = vpop.f32.mrf.mxu0
        %910 = vmatprep.mubr.f32.mxu0 0.0
        %911 = vmatmul.mubr.f32.gmra.mxu0 %v461
        %v912 = vpop.f32.mrf.mxu0
        %v913 = vadd.f32 0.0, %v912
        %v914 = vpop.f32.mrf.mxu0
        %915 = vmatprep.mubr.f32.mxu0 0.0
        %916 = vmatmul.mubr.f32.gmra.mxu0 %v464
        %v917 = vpop.f32.mrf.mxu0
        %v918 = vadd.f32 0.0, %v917
        %v919 = vpop.f32.mrf.mxu0
        %920 = vmatprep.mubr.f32.mxu0 0.0
        %921 = vmatmul.mubr.f32.gmra.mxu0 %v467
        %v922 = vpop.f32.mrf.mxu0
        %v923 = vadd.f32 0.0, %v922
        %v924 = vpop.f32.mrf.mxu0
        %925 = vmatprep.mubr.f32.mxu0 0.0
        %926 = vmatmul.mubr.f32.gmra.mxu0 %v470
        %v927 = vpop.f32.mrf.mxu0
        %v928 = vadd.f32 0.0, %v927
        %v929 = vpop.f32.mrf.mxu0
        %930 = vmatprep.mubr.f32.mxu0 0.0
        %931 = vmatmul.mubr.f32.gmra.mxu0 %v473
        %v932 = vpop.f32.mrf.mxu0
        %v933 = vadd.f32 0.0, %v932
        %v934 = vpop.f32.mrf.mxu0
        %935 = vmatprep.mubr.f32.mxu0 0.0
        %936 = vmatmul.mubr.f32.gmra.mxu0 %v476
        %v937 = vpop.f32.mrf.mxu0
        %v938 = vadd.f32 0.0, %v937
        %v939 = vpop.f32.mrf.mxu0
        %940 = vmatprep.mubr.f32.mxu0 0.0
        %941 = vmatmul.mubr.f32.gmra.mxu0 %v479
        %v942 = vpop.f32.mrf.mxu0
        %v943 = vadd.f32 0.0, %v942
        %v944 = vpop.f32.mrf.mxu0
        %945 = vmatprep.mubr.f32.mxu0 0.0
        %946 = vmatmul.mubr.f32.gmra.mxu0 %v482
        %v947 = vpop.f32.mrf.mxu0
        %v948 = vadd.f32 0.0, %v947
        %v949 = vpop.f32.mrf.mxu0
        %950 = vmatprep.mubr.f32.mxu0 0.0
        %951 = vmatmul.mubr.f32.gmra.mxu0 %v485
        %v952 = vpop.f32.mrf.mxu0
        %v953 = vadd.f32 0.0, %v952
        %v954 = vpop.f32.mrf.mxu0
        %955 = vmatprep.mubr.f32.mxu0 0.0
        %956 = vmatmul.mubr.f32.gmra.mxu0 %v488
        %v957 = vpop.f32.mrf.mxu0
        %v958 = vadd.f32 0.0, %v957
        %v959 = vpop.f32.mrf.mxu0
        %960 = vmatprep.mubr.f32.mxu0 0.0
        %961 = vmatmul.mubr.f32.gmra.mxu0 %v491
        %v962 = vpop.f32.mrf.mxu0
        %v963 = vadd.f32 0.0, %v962
        %v964 = vpop.f32.mrf.mxu0
        %965 = vmatprep.mubr.f32.mxu0 0.0
        %966 = vmatmul.mubr.f32.gmra.mxu0 %v494
        %v967 = vpop.f32.mrf.mxu0
        %v968 = vadd.f32 0.0, %v967
        %v969 = vpop.f32.mrf.mxu0
        %970 = vmatprep.mubr.f32.mxu0 0.0
        %971 = vmatmul.mubr.f32.gmra.mxu0 %v497
        %v972 = vpop.f32.mrf.mxu0
        %v973 = vadd.f32 0.0, %v972
        %v974 = vpop.f32.mrf.mxu0
        %975 = vmatprep.mubr.f32.mxu0 0.0
        %976 = vmatmul.mubr.f32.gmra.mxu0 %v500
        %v977 = vpop.f32.mrf.mxu0
        %v978 = vadd.f32 0.0, %v977
        %v979 = vpop.f32.mrf.mxu0
        %980 = vmatprep.mubr.f32.mxu0 0.0
        %981 = vmatmul.mubr.f32.gmra.mxu0 %v503
        %v982 = vpop.f32.mrf.mxu0
        %v983 = vadd.f32 0.0, %v982
        %v984 = vpop.f32.mrf.mxu0
        %985 = vmatprep.mubr.f32.mxu0 0.0
        %986 = vmatmul.mubr.f32.gmra.mxu0 %v506
        %v987 = vpop.f32.mrf.mxu0
        %v988 = vadd.f32 0.0, %v987
        %v989 = vpop.f32.mrf.mxu0
        %990 = vmatprep.mubr.f32.mxu0 0.0
        %991 = vmatmul.mubr.f32.gmra.mxu0 %v509
        %v992 = vpop.f32.mrf.mxu0
        %v993 = vadd.f32 0.0, %v992
        %v994 = vpop.f32.mrf.mxu0
        %995 = vmatprep.mubr.f32.mxu0 0.0
        %996 = vmatmul.mubr.f32.gmra.mxu0 %v512
        %v997 = vpop.f32.mrf.mxu0
        %v998 = vadd.f32 0.0, %v997
        %v999 = vpop.f32.mrf.mxu0
        %1000 = vmatprep.mubr.f32.mxu0 0.0
        %1001 = vmatmul.mubr.f32.gmra.mxu0 %v778
        %v1002 = vpop.f32.mrf.mxu0
        %v1003 = vadd.f32 0.0, %v1002
        %v1004 = vpop.f32.mrf.mxu0
        %1005 = vmatprep.mubr.f32.mxu0 0.0
        %1006 = vmatmul.mubr.f32.gmra.mxu0 %v781
        %v1007 = vpop.f32.mrf.mxu0
        %v1008 = vadd.f32 0.0, %v1007
        %v1009 = vpop.f32.mrf.mxu0
        %1010 = vdwg.mxu0
        %v1011 = vadd.f32 %v743, %v853
        %v1012 = vadd.f32 %v744, %v858
        %v1013 = vadd.f32 %v745, %v863
        %v1014 = vadd.f32 %v746, %v868
        %v1015 = vadd.f32 %v747, %v873
        %v1016 = vadd.f32 %v748, %v878
        %v1017 = vadd.f32 %v749, %v883
        %v1018 = vadd.f32 %v750, %v888
        %v1019 = vadd.f32 %v751, %v893
        %v1020 = vadd.f32 %v752, %v898
        %v1021 = vadd.f32 %v753, %v903
        %v1022 = vadd.f32 %v754, %v908
        %v1023 = vadd.f32 %v755, %v913
        %v1024 = vadd.f32 %v756, %v918
        %v1025 = vadd.f32 %v757, %v923
        %v1026 = vadd.f32 %v758, %v928
        %v1027 = vadd.f32 %v759, %v933
        %v1028 = vadd.f32 %v760, %v938
        %v1029 = vadd.f32 %v761, %v943
        %v1030 = vadd.f32 %v762, %v948
        %v1031 = vadd.f32 %v763, %v953
        %v1032 = vadd.f32 %v764, %v958
        %v1033 = vadd.f32 %v765, %v963
        %v1034 = vadd.f32 %v766, %v968
        %v1035 = vadd.f32 %v767, %v973
        %v1036 = vadd.f32 %v768, %v978
        %v1037 = vadd.f32 %v769, %v983
        %v1038 = vadd.f32 %v770, %v988
        %v1039 = vadd.f32 %v771, %v993
        %v1040 = vadd.f32 %v772, %v998
        %v1041 = vadd.f32 %v773, %v1003
        %v1042 = vadd.f32 %v774, %v1008
        %s1043 = scalar_lea.vmem %s1, 24
        %v1044 = vld [vmem:[%s1043] sm:$0xf]
        %v1046 = vsel %vm244, %v406, 0
        %v1049 = vsel %vm244, %v407, 0
        %v1052 = vsel %vm514, %v1044, 0
        %1054 = vmatprep.subr.mxu0 0.0
        %1055 = vmatpush1.msra.mxu0 0.0
        %1056 = vmatprep.subr.mxu0 0.0
        %1057 = vmatpush1.msra.mxu0 0.0
        %1058 = vmatprep.subr.mxu0 0.0
        %1059 = vmatpush1.msra.mxu0 0.0
        %1060 = vmatprep.subr.mxu0 0.0
        %1061 = vmatpush1.msra.mxu0 0.0
        %1062 = vmatprep.subr.mxu0 0.0
        %1063 = vmatpush1.msra.mxu0 0.0
        %1064 = vmatprep.subr.mxu0 0.0
        %1065 = vmatpush1.msra.mxu0 0.0
        %1066 = vmatprep.subr.mxu0 0.0
        %1067 = vmatpush1.msra.mxu0 0.0
        %1068 = vmatprep.subr.mxu0 0.0
        %1069 = vmatpush1.msra.mxu0 0.0
        %1070 = vmatprep.subr.mxu0 0.0
        %1071 = vmatpush1.msra.mxu0 0.0
        %1072 = vmatprep.subr.mxu0 0.0
        %1073 = vmatpush1.msra.mxu0 0.0
        %1074 = vmatprep.subr.mxu0 0.0
        %1075 = vmatpush1.msra.mxu0 0.0
        %1076 = vmatprep.subr.mxu0 0.0
        %1077 = vmatpush1.msra.mxu0 0.0
        %1078 = vmatprep.subr.mxu0 0.0
        %1079 = vmatpush1.msra.mxu0 0.0
        %1080 = vmatprep.subr.mxu0 0.0
        %1081 = vmatpush1.msra.mxu0 0.0
        %1082 = vmatprep.subr.mxu0 0.0
        %1083 = vmatpush1.msra.mxu0 0.0
        %1084 = vmatprep.subr.mxu0 0.0
        %1085 = vmatpush1.msra.mxu0 %v1052
        %1086 = vmatprep.subr.mxu0 0.0
        %1087 = vmatpush2.msra.mxu0 0.0
        %1088 = vmatprep.subr.mxu0 0.0
        %1089 = vmatpush2.msra.mxu0 0.0
        %1090 = vmatprep.subr.mxu0 0.0
        %1091 = vmatpush2.msra.mxu0 0.0
        %1092 = vmatprep.subr.mxu0 0.0
        %1093 = vmatpush2.msra.mxu0 0.0
        %1094 = vmatprep.subr.mxu0 0.0
        %1095 = vmatpush2.msra.mxu0 0.0
        %1096 = vmatprep.subr.mxu0 0.0
        %1097 = vmatpush2.msra.mxu0 0.0
        %1098 = vmatprep.subr.mxu0 0.0
        %1099 = vmatpush2.msra.mxu0 0.0
        %1100 = vmatprep.subr.mxu0 0.0
        %1101 = vmatpush2.msra.mxu0 0.0
        %1102 = vmatprep.subr.mxu0 0.0
        %1103 = vmatpush2.msra.mxu0 0.0
        %1104 = vmatprep.subr.mxu0 0.0
        %1105 = vmatpush2.msra.mxu0 0.0
        %1106 = vmatprep.subr.mxu0 0.0
        %1107 = vmatpush2.msra.mxu0 0.0
        %1108 = vmatprep.subr.mxu0 0.0
        %1109 = vmatpush2.msra.mxu0 0.0
        %1110 = vmatprep.subr.mxu0 0.0
        %1111 = vmatpush2.msra.mxu0 0.0
        %1112 = vmatprep.subr.mxu0 0.0
        %1113 = vmatpush2.msra.mxu0 0.0
        %1114 = vmatprep.subr.mxu0 0.0
        %1115 = vmatpush2.msra.mxu0 0.0
        %1116 = vmatprep.subr.mxu0 0.0
        %1117 = vmatpush2.msra.mxu0 0.0
        %1118 = vmatprep.mubr.f32.mxu0 0.0
        %1119 = vmatmul.mubr.f32.gmra.mxu0 %v431
        %v1120 = vpop.f32.mrf.mxu0
        %v1121 = vadd.f32 0.0, %v1120
        %v1122 = vpop.f32.mrf.mxu0
        %1123 = vmatprep.mubr.f32.mxu0 0.0
        %1124 = vmatmul.mubr.f32.gmra.mxu0 %v434
        %v1125 = vpop.f32.mrf.mxu0
        %v1126 = vadd.f32 0.0, %v1125
        %v1127 = vpop.f32.mrf.mxu0
        %1128 = vmatprep.mubr.f32.mxu0 0.0
        %1129 = vmatmul.mubr.f32.gmra.mxu0 %v437
        %v1130 = vpop.f32.mrf.mxu0
        %v1131 = vadd.f32 0.0, %v1130
        %v1132 = vpop.f32.mrf.mxu0
        %1133 = vmatprep.mubr.f32.mxu0 0.0
        %1134 = vmatmul.mubr.f32.gmra.mxu0 %v440
        %v1135 = vpop.f32.mrf.mxu0
        %v1136 = vadd.f32 0.0, %v1135
        %v1137 = vpop.f32.mrf.mxu0
        %1138 = vmatprep.mubr.f32.mxu0 0.0
        %1139 = vmatmul.mubr.f32.gmra.mxu0 %v443
        %v1140 = vpop.f32.mrf.mxu0
        %v1141 = vadd.f32 0.0, %v1140
        %v1142 = vpop.f32.mrf.mxu0
        %1143 = vmatprep.mubr.f32.mxu0 0.0
        %1144 = vmatmul.mubr.f32.gmra.mxu0 %v446
        %v1145 = vpop.f32.mrf.mxu0
        %v1146 = vadd.f32 0.0, %v1145
        %v1147 = vpop.f32.mrf.mxu0
        %1148 = vmatprep.mubr.f32.mxu0 0.0
        %1149 = vmatmul.mubr.f32.gmra.mxu0 %v449
        %v1150 = vpop.f32.mrf.mxu0
        %v1151 = vadd.f32 0.0, %v1150
        %v1152 = vpop.f32.mrf.mxu0
        %1153 = vmatprep.mubr.f32.mxu0 0.0
        %1154 = vmatmul.mubr.f32.gmra.mxu0 %v452
        %v1155 = vpop.f32.mrf.mxu0
        %v1156 = vadd.f32 0.0, %v1155
        %v1157 = vpop.f32.mrf.mxu0
        %1158 = vmatprep.mubr.f32.mxu0 0.0
        %1159 = vmatmul.mubr.f32.gmra.mxu0 %v455
        %v1160 = vpop.f32.mrf.mxu0
        %v1161 = vadd.f32 0.0, %v1160
        %v1162 = vpop.f32.mrf.mxu0
        %1163 = vmatprep.mubr.f32.mxu0 0.0
        %1164 = vmatmul.mubr.f32.gmra.mxu0 %v458
        %v1165 = vpop.f32.mrf.mxu0
        %v1166 = vadd.f32 0.0, %v1165
        %v1167 = vpop.f32.mrf.mxu0
        %1168 = vmatprep.mubr.f32.mxu0 0.0
        %1169 = vmatmul.mubr.f32.gmra.mxu0 %v461
        %v1170 = vpop.f32.mrf.mxu0
        %v1171 = vadd.f32 0.0, %v1170
        %v1172 = vpop.f32.mrf.mxu0
        %1173 = vmatprep.mubr.f32.mxu0 0.0
        %1174 = vmatmul.mubr.f32.gmra.mxu0 %v464
        %v1175 = vpop.f32.mrf.mxu0
        %v1176 = vadd.f32 0.0, %v1175
        %v1177 = vpop.f32.mrf.mxu0
        %1178 = vmatprep.mubr.f32.mxu0 0.0
        %1179 = vmatmul.mubr.f32.gmra.mxu0 %v467
        %v1180 = vpop.f32.mrf.mxu0
        %v1181 = vadd.f32 0.0, %v1180
        %v1182 = vpop.f32.mrf.mxu0
        %1183 = vmatprep.mubr.f32.mxu0 0.0
        %1184 = vmatmul.mubr.f32.gmra.mxu0 %v470
        %v1185 = vpop.f32.mrf.mxu0
        %v1186 = vadd.f32 0.0, %v1185
        %v1187 = vpop.f32.mrf.mxu0
        %1188 = vmatprep.mubr.f32.mxu0 0.0
        %1189 = vmatmul.mubr.f32.gmra.mxu0 %v473
        %v1190 = vpop.f32.mrf.mxu0
        %v1191 = vadd.f32 0.0, %v1190
        %v1192 = vpop.f32.mrf.mxu0
        %1193 = vmatprep.mubr.f32.mxu0 0.0
        %1194 = vmatmul.mubr.f32.gmra.mxu0 %v476
        %v1195 = vpop.f32.mrf.mxu0
        %v1196 = vadd.f32 0.0, %v1195
        %v1197 = vpop.f32.mrf.mxu0
        %1198 = vmatprep.mubr.f32.mxu0 0.0
        %1199 = vmatmul.mubr.f32.gmra.mxu0 %v479
        %v1200 = vpop.f32.mrf.mxu0
        %v1201 = vadd.f32 0.0, %v1200
        %v1202 = vpop.f32.mrf.mxu0
        %1203 = vmatprep.mubr.f32.mxu0 0.0
        %1204 = vmatmul.mubr.f32.gmra.mxu0 %v482
        %v1205 = vpop.f32.mrf.mxu0
        %v1206 = vadd.f32 0.0, %v1205
        %v1207 = vpop.f32.mrf.mxu0
        %1208 = vmatprep.mubr.f32.mxu0 0.0
        %1209 = vmatmul.mubr.f32.gmra.mxu0 %v485
        %v1210 = vpop.f32.mrf.mxu0
        %v1211 = vadd.f32 0.0, %v1210
        %v1212 = vpop.f32.mrf.mxu0
        %1213 = vmatprep.mubr.f32.mxu0 0.0
        %1214 = vmatmul.mubr.f32.gmra.mxu0 %v488
        %v1215 = vpop.f32.mrf.mxu0
        %v1216 = vadd.f32 0.0, %v1215
        %v1217 = vpop.f32.mrf.mxu0
        %1218 = vmatprep.mubr.f32.mxu0 0.0
        %1219 = vmatmul.mubr.f32.gmra.mxu0 %v491
        %v1220 = vpop.f32.mrf.mxu0
        %v1221 = vadd.f32 0.0, %v1220
        %v1222 = vpop.f32.mrf.mxu0
        %1223 = vmatprep.mubr.f32.mxu0 0.0
        %1224 = vmatmul.mubr.f32.gmra.mxu0 %v494
        %v1225 = vpop.f32.mrf.mxu0
        %v1226 = vadd.f32 0.0, %v1225
        %v1227 = vpop.f32.mrf.mxu0
        %1228 = vmatprep.mubr.f32.mxu0 0.0
        %1229 = vmatmul.mubr.f32.gmra.mxu0 %v497
        %v1230 = vpop.f32.mrf.mxu0
        %v1231 = vadd.f32 0.0, %v1230
        %v1232 = vpop.f32.mrf.mxu0
        %1233 = vmatprep.mubr.f32.mxu0 0.0
        %1234 = vmatmul.mubr.f32.gmra.mxu0 %v500
        %v1235 = vpop.f32.mrf.mxu0
        %v1236 = vadd.f32 0.0, %v1235
        %v1237 = vpop.f32.mrf.mxu0
        %1238 = vmatprep.mubr.f32.mxu0 0.0
        %1239 = vmatmul.mubr.f32.gmra.mxu0 %v503
        %v1240 = vpop.f32.mrf.mxu0
        %v1241 = vadd.f32 0.0, %v1240
        %v1242 = vpop.f32.mrf.mxu0
        %1243 = vmatprep.mubr.f32.mxu0 0.0
        %1244 = vmatmul.mubr.f32.gmra.mxu0 %v506
        %v1245 = vpop.f32.mrf.mxu0
        %v1246 = vadd.f32 0.0, %v1245
        %v1247 = vpop.f32.mrf.mxu0
        %1248 = vmatprep.mubr.f32.mxu0 0.0
        %1249 = vmatmul.mubr.f32.gmra.mxu0 %v509
        %v1250 = vpop.f32.mrf.mxu0
        %v1251 = vadd.f32 0.0, %v1250
        %v1252 = vpop.f32.mrf.mxu0
        %1253 = vmatprep.mubr.f32.mxu0 0.0
        %1254 = vmatmul.mubr.f32.gmra.mxu0 %v512
        %v1255 = vpop.f32.mrf.mxu0
        %v1256 = vadd.f32 0.0, %v1255
        %v1257 = vpop.f32.mrf.mxu0
        %1258 = vmatprep.mubr.f32.mxu0 0.0
        %1259 = vmatmul.mubr.f32.gmra.mxu0 %v778
        %v1260 = vpop.f32.mrf.mxu0
        %v1261 = vadd.f32 0.0, %v1260
        %v1262 = vpop.f32.mrf.mxu0
        %1263 = vmatprep.mubr.f32.mxu0 0.0
        %1264 = vmatmul.mubr.f32.gmra.mxu0 %v781
        %v1265 = vpop.f32.mrf.mxu0
        %v1266 = vadd.f32 0.0, %v1265
        %v1267 = vpop.f32.mrf.mxu0
        %1268 = vmatprep.mubr.f32.mxu0 0.0
        %1269 = vmatmul.mubr.f32.gmra.mxu0 %v1046
        %v1270 = vpop.f32.mrf.mxu0
        %v1271 = vadd.f32 0.0, %v1270
        %v1272 = vpop.f32.mrf.mxu0
        %1273 = vmatprep.mubr.f32.mxu0 0.0
        %1274 = vmatmul.mubr.f32.gmra.mxu0 %v1049
        %v1275 = vpop.f32.mrf.mxu0
        %v1276 = vadd.f32 0.0, %v1275
        %v1277 = vpop.f32.mrf.mxu0
        %1278 = vdwg.mxu0
        %v1279 = vadd.f32 %v1011, %v1121
        %v1280 = vadd.f32 %v1012, %v1126
        %v1281 = vadd.f32 %v1013, %v1131
        %v1282 = vadd.f32 %v1014, %v1136
        %v1283 = vadd.f32 %v1015, %v1141
        %v1284 = vadd.f32 %v1016, %v1146
        %v1285 = vadd.f32 %v1017, %v1151
        %v1286 = vadd.f32 %v1018, %v1156
        %v1287 = vadd.f32 %v1019, %v1161
        %v1288 = vadd.f32 %v1020, %v1166
        %v1289 = vadd.f32 %v1021, %v1171
        %v1290 = vadd.f32 %v1022, %v1176
        %v1291 = vadd.f32 %v1023, %v1181
        %v1292 = vadd.f32 %v1024, %v1186
        %v1293 = vadd.f32 %v1025, %v1191
        %v1294 = vadd.f32 %v1026, %v1196
        %v1295 = vadd.f32 %v1027, %v1201
        %v1296 = vadd.f32 %v1028, %v1206
        %v1297 = vadd.f32 %v1029, %v1211
        %v1298 = vadd.f32 %v1030, %v1216
        %v1299 = vadd.f32 %v1031, %v1221
        %v1300 = vadd.f32 %v1032, %v1226
        %v1301 = vadd.f32 %v1033, %v1231
        %v1302 = vadd.f32 %v1034, %v1236
        %v1303 = vadd.f32 %v1035, %v1241
        %v1304 = vadd.f32 %v1036, %v1246
        %v1305 = vadd.f32 %v1037, %v1251
        %v1306 = vadd.f32 %v1038, %v1256
        %v1307 = vadd.f32 %v1039, %v1261
        %v1308 = vadd.f32 %v1040, %v1266
        %v1309 = vadd.f32 %v1041, %v1271
        %v1310 = vadd.f32 %v1042, %v1276
        %vm1329 = vcmask 1046528
        %v1330 = vrot.slane %v355, 1
        %v1331 = vrot.slane %v356, 1
        %v1332 = vsel %vm1329, %v1330, %v1331
        %v1333 = vrot.slane %v357, 1
        %v1334 = vsel %vm1329, %v1331, %v1333
        %v1335 = vrot.slane %v358, 1
        %v1336 = vrot.slane %v359, 1
        %v1337 = vsel %vm1329, %v1335, %v1336
        %v1338 = vrot.slane %v360, 1
        %v1339 = vsel %vm1329, %v1336, %v1338
        %v1340 = vrot.slane %v361, 1
        %v1341 = vrot.slane %v362, 1
        %v1342 = vsel %vm1329, %v1340, %v1341
        %v1343 = vrot.slane %v363, 1
        %v1344 = vsel %vm1329, %v1341, %v1343
        %v1345 = vrot.slane %v364, 1
        %v1346 = vrot.slane %v365, 1
        %v1347 = vsel %vm1329, %v1345, %v1346
        %v1348 = vrot.slane %v366, 1
        %v1349 = vsel %vm1329, %v1346, %v1348
        %v1350 = vrot.slane %v367, 1
        %v1351 = vrot.slane %v368, 1
        %v1352 = vsel %vm1329, %v1350, %v1351
        %v1353 = vrot.slane %v369, 1
        %v1354 = vsel %vm1329, %v1351, %v1353
        %v1355 = vrot.slane %v370, 1
        %v1356 = vrot.slane %v371, 1
        %v1357 = vsel %vm1329, %v1355, %v1356
        %v1358 = vrot.slane %v372, 1
        %v1359 = vsel %vm1329, %v1356, %v1358
        %v1360 = vrot.slane %v373, 1
        %v1361 = vrot.slane %v374, 1
        %v1362 = vsel %vm1329, %v1360, %v1361
        %v1363 = vrot.slane %v375, 1
        %v1364 = vsel %vm1329, %v1361, %v1363
        %v1365 = vrot.slane %v376, 1
        %v1366 = vrot.slane %v377, 1
        %v1367 = vsel %vm1329, %v1365, %v1366
        %v1368 = vrot.slane %v378, 1
        %v1369 = vsel %vm1329, %v1366, %v1368
        %v1370 = vrot.slane %v379, 1
        %v1371 = vrot.slane %v380, 1
        %v1372 = vsel %vm1329, %v1370, %v1371
        %v1373 = vrot.slane %v381, 1
        %v1374 = vsel %vm1329, %v1371, %v1373
        %v1375 = vrot.slane %v382, 1
        %v1376 = vrot.slane %v383, 1
        %v1377 = vsel %vm1329, %v1375, %v1376
        %v1378 = vrot.slane %v384, 1
        %v1379 = vsel %vm1329, %v1376, %v1378
        %v1380 = vrot.slane %v385, 1
        %v1381 = vrot.slane %v386, 1
        %v1382 = vsel %vm1329, %v1380, %v1381
        %v1383 = vrot.slane %v387, 1
        %v1384 = vsel %vm1329, %v1381, %v1383
        %v1385 = vrot.slane %v388, 1
        %v1386 = vrot.slane %v389, 1
        %v1387 = vsel %vm1329, %v1385, %v1386
        %v1388 = vrot.slane %v390, 1
        %v1389 = vsel %vm1329, %v1386, %v1388
        %v1390 = vrot.slane %v391, 1
        %v1391 = vrot.slane %v392, 1
        %v1392 = vsel %vm1329, %v1390, %v1391
        %v1393 = vrot.slane %v393, 1
        %v1394 = vsel %vm1329, %v1391, %v1393
        %v1395 = vrot.slane %v394, 1
        %v1396 = vrot.slane %v395, 1
        %v1397 = vsel %vm1329, %v1395, %v1396
        %v1398 = vrot.slane %v396, 1
        %v1399 = vsel %vm1329, %v1396, %v1398
        %v1400 = vrot.slane %v397, 1
        %v1401 = vrot.slane %v398, 1
        %v1402 = vsel %vm1329, %v1400, %v1401
        %v1403 = vrot.slane %v399, 1
        %v1404 = vsel %vm1329, %v1401, %v1403
        %v1405 = vrot.slane %v400, 1
        %v1406 = vrot.slane %v401, 1
        %v1407 = vsel %vm1329, %v1405, %v1406
        %v1408 = vrot.slane %v402, 1
        %v1409 = vsel %vm1329, %v1406, %v1408
        %v1410 = vrot.slane %v403, 1
        %v1411 = vrot.slane %v404, 1
        %v1412 = vsel %vm1329, %v1410, %v1411
        %v1413 = vrot.slane %v405, 1
        %v1414 = vsel %vm1329, %v1411, %v1413
        %v1415 = vrot.slane %v406, 1
        %v1416 = vrot.slane %v407, 1
        %v1417 = vsel %vm1329, %v1415, %v1416
        %v1418 = vrot.slane %v408, 1
        %v1419 = vsel %vm1329, %v1416, %v1418
        %s1420 = scalar_lea.vmem %s1, 4
        %v1421 = vld [vmem:[%s1420] sm:$0xf]
        %v1422 = vsel %vm244, %v1332, 0
        %v1424 = vsel %vm244, %v1334, 0
        %v1426 = vsel %vm244, %v1337, 0
        %v1428 = vsel %vm244, %v1339, 0
        %v1430 = vsel %vm244, %v1342, 0
        %v1432 = vsel %vm244, %v1344, 0
        %v1434 = vsel %vm244, %v1347, 0
        %v1436 = vsel %vm244, %v1349, 0
        %v1438 = vsel %vm244, %v1352, 0
        %v1440 = vsel %vm244, %v1354, 0
        %v1442 = vsel %vm244, %v1357, 0
        %v1444 = vsel %vm244, %v1359, 0
        %v1446 = vsel %vm244, %v1362, 0
        %v1448 = vsel %vm244, %v1364, 0
        %v1450 = vsel %vm244, %v1367, 0
        %v1452 = vsel %vm244, %v1369, 0
        %v1454 = vsel %vm244, %v1372, 0
        %v1456 = vsel %vm244, %v1374, 0
        %v1458 = vsel %vm244, %v1377, 0
        %v1460 = vsel %vm244, %v1379, 0
        %v1462 = vsel %vm244, %v1382, 0
        %v1464 = vsel %vm244, %v1384, 0
        %v1466 = vsel %vm244, %v1387, 0
        %v1468 = vsel %vm244, %v1389, 0
        %v1470 = vsel %vm244, %v1392, 0
        %v1472 = vsel %vm244, %v1394, 0
        %v1474 = vsel %vm244, %v1397, 0
        %v1476 = vsel %vm244, %v1399, 0
        %v1478 = vsel %vm244, %v1402, 0
        %v1480 = vsel %vm244, %v1404, 0
        %v1482 = vsel %vm244, %v1407, 0
        %v1484 = vsel %vm244, %v1409, 0
        %v1487 = vsel %vm514, %v1421, 0
        %1489 = vmatprep.subr.mxu0 0.0
        %1490 = vmatpush1.msra.mxu0 0.0
        %1491 = vmatprep.subr.mxu0 0.0
        %1492 = vmatpush1.msra.mxu0 0.0
        %1493 = vmatprep.subr.mxu0 0.0
        %1494 = vmatpush1.msra.mxu0 0.0
        %1495 = vmatprep.subr.mxu0 0.0
        %1496 = vmatpush1.msra.mxu0 0.0
        %1497 = vmatprep.subr.mxu0 0.0
        %1498 = vmatpush1.msra.mxu0 0.0
        %1499 = vmatprep.subr.mxu0 0.0
        %1500 = vmatpush1.msra.mxu0 0.0
        %1501 = vmatprep.subr.mxu0 0.0
        %1502 = vmatpush1.msra.mxu0 0.0
        %1503 = vmatprep.subr.mxu0 0.0
        %1504 = vmatpush1.msra.mxu0 0.0
        %1505 = vmatprep.subr.mxu0 0.0
        %1506 = vmatpush1.msra.mxu0 0.0
        %1507 = vmatprep.subr.mxu0 0.0
        %1508 = vmatpush1.msra.mxu0 0.0
        %1509 = vmatprep.subr.mxu0 0.0
        %1510 = vmatpush1.msra.mxu0 0.0
        %1511 = vmatprep.subr.mxu0 0.0
        %1512 = vmatpush1.msra.mxu0 0.0
        %1513 = vmatprep.subr.mxu0 0.0
        %1514 = vmatpush1.msra.mxu0 0.0
        %1515 = vmatprep.subr.mxu0 0.0
        %1516 = vmatpush1.msra.mxu0 0.0
        %1517 = vmatprep.subr.mxu0 0.0
        %1518 = vmatpush1.msra.mxu0 0.0
        %1519 = vmatprep.subr.mxu0 0.0
        %1520 = vmatpush1.msra.mxu0 %v1487
        %1521 = vmatprep.subr.mxu0 0.0
        %1522 = vmatpush2.msra.mxu0 0.0
        %1523 = vmatprep.subr.mxu0 0.0
        %1524 = vmatpush2.msra.mxu0 0.0
        %1525 = vmatprep.subr.mxu0 0.0
        %1526 = vmatpush2.msra.mxu0 0.0
        %1527 = vmatprep.subr.mxu0 0.0
        %1528 = vmatpush2.msra.mxu0 0.0
        %1529 = vmatprep.subr.mxu0 0.0
        %1530 = vmatpush2.msra.mxu0 0.0
        %1531 = vmatprep.subr.mxu0 0.0
        %1532 = vmatpush2.msra.mxu0 0.0
        %1533 = vmatprep.subr.mxu0 0.0
        %1534 = vmatpush2.msra.mxu0 0.0
        %1535 = vmatprep.subr.mxu0 0.0
        %1536 = vmatpush2.msra.mxu0 0.0
        %1537 = vmatprep.subr.mxu0 0.0
        %1538 = vmatpush2.msra.mxu0 0.0
        %1539 = vmatprep.subr.mxu0 0.0
        %1540 = vmatpush2.msra.mxu0 0.0
        %1541 = vmatprep.subr.mxu0 0.0
        %1542 = vmatpush2.msra.mxu0 0.0
        %1543 = vmatprep.subr.mxu0 0.0
        %1544 = vmatpush2.msra.mxu0 0.0
        %1545 = vmatprep.subr.mxu0 0.0
        %1546 = vmatpush2.msra.mxu0 0.0
        %1547 = vmatprep.subr.mxu0 0.0
        %1548 = vmatpush2.msra.mxu0 0.0
        %1549 = vmatprep.subr.mxu0 0.0
        %1550 = vmatpush2.msra.mxu0 0.0
        %1551 = vmatprep.subr.mxu0 0.0
        %1552 = vmatpush2.msra.mxu0 0.0
        %1553 = vmatprep.mubr.f32.mxu0 0.0
        %1554 = vmatmul.mubr.f32.gmra.mxu0 %v1422
        %v1555 = vpop.f32.mrf.mxu0
        %v1556 = vadd.f32 0.0, %v1555
        %v1557 = vpop.f32.mrf.mxu0
        %1558 = vmatprep.mubr.f32.mxu0 0.0
        %1559 = vmatmul.mubr.f32.gmra.mxu0 %v1424
        %v1560 = vpop.f32.mrf.mxu0
        %v1561 = vadd.f32 0.0, %v1560
        %v1562 = vpop.f32.mrf.mxu0
        %1563 = vmatprep.mubr.f32.mxu0 0.0
        %1564 = vmatmul.mubr.f32.gmra.mxu0 %v1426
        %v1565 = vpop.f32.mrf.mxu0
        %v1566 = vadd.f32 0.0, %v1565
        %v1567 = vpop.f32.mrf.mxu0
        %1568 = vmatprep.mubr.f32.mxu0 0.0
        %1569 = vmatmul.mubr.f32.gmra.mxu0 %v1428
        %v1570 = vpop.f32.mrf.mxu0
        %v1571 = vadd.f32 0.0, %v1570
        %v1572 = vpop.f32.mrf.mxu0
        %1573 = vmatprep.mubr.f32.mxu0 0.0
        %1574 = vmatmul.mubr.f32.gmra.mxu0 %v1430
        %v1575 = vpop.f32.mrf.mxu0
        %v1576 = vadd.f32 0.0, %v1575
        %v1577 = vpop.f32.mrf.mxu0
        %1578 = vmatprep.mubr.f32.mxu0 0.0
        %1579 = vmatmul.mubr.f32.gmra.mxu0 %v1432
        %v1580 = vpop.f32.mrf.mxu0
        %v1581 = vadd.f32 0.0, %v1580
        %v1582 = vpop.f32.mrf.mxu0
        %1583 = vmatprep.mubr.f32.mxu0 0.0
        %1584 = vmatmul.mubr.f32.gmra.mxu0 %v1434
        %v1585 = vpop.f32.mrf.mxu0
        %v1586 = vadd.f32 0.0, %v1585
        %v1587 = vpop.f32.mrf.mxu0
        %1588 = vmatprep.mubr.f32.mxu0 0.0
        %1589 = vmatmul.mubr.f32.gmra.mxu0 %v1436
        %v1590 = vpop.f32.mrf.mxu0
        %v1591 = vadd.f32 0.0, %v1590
        %v1592 = vpop.f32.mrf.mxu0
        %1593 = vmatprep.mubr.f32.mxu0 0.0
        %1594 = vmatmul.mubr.f32.gmra.mxu0 %v1438
        %v1595 = vpop.f32.mrf.mxu0
        %v1596 = vadd.f32 0.0, %v1595
        %v1597 = vpop.f32.mrf.mxu0
        %1598 = vmatprep.mubr.f32.mxu0 0.0
        %1599 = vmatmul.mubr.f32.gmra.mxu0 %v1440
        %v1600 = vpop.f32.mrf.mxu0
        %v1601 = vadd.f32 0.0, %v1600
        %v1602 = vpop.f32.mrf.mxu0
        %1603 = vmatprep.mubr.f32.mxu0 0.0
        %1604 = vmatmul.mubr.f32.gmra.mxu0 %v1442
        %v1605 = vpop.f32.mrf.mxu0
        %v1606 = vadd.f32 0.0, %v1605
        %v1607 = vpop.f32.mrf.mxu0
        %1608 = vmatprep.mubr.f32.mxu0 0.0
        %1609 = vmatmul.mubr.f32.gmra.mxu0 %v1444
        %v1610 = vpop.f32.mrf.mxu0
        %v1611 = vadd.f32 0.0, %v1610
        %v1612 = vpop.f32.mrf.mxu0
        %1613 = vmatprep.mubr.f32.mxu0 0.0
        %1614 = vmatmul.mubr.f32.gmra.mxu0 %v1446
        %v1615 = vpop.f32.mrf.mxu0
        %v1616 = vadd.f32 0.0, %v1615
        %v1617 = vpop.f32.mrf.mxu0
        %1618 = vmatprep.mubr.f32.mxu0 0.0
        %1619 = vmatmul.mubr.f32.gmra.mxu0 %v1448
        %v1620 = vpop.f32.mrf.mxu0
        %v1621 = vadd.f32 0.0, %v1620
        %v1622 = vpop.f32.mrf.mxu0
        %1623 = vmatprep.mubr.f32.mxu0 0.0
        %1624 = vmatmul.mubr.f32.gmra.mxu0 %v1450
        %v1625 = vpop.f32.mrf.mxu0
        %v1626 = vadd.f32 0.0, %v1625
        %v1627 = vpop.f32.mrf.mxu0
        %1628 = vmatprep.mubr.f32.mxu0 0.0
        %1629 = vmatmul.mubr.f32.gmra.mxu0 %v1452
        %v1630 = vpop.f32.mrf.mxu0
        %v1631 = vadd.f32 0.0, %v1630
        %v1632 = vpop.f32.mrf.mxu0
        %1633 = vmatprep.mubr.f32.mxu0 0.0
        %1634 = vmatmul.mubr.f32.gmra.mxu0 %v1454
        %v1635 = vpop.f32.mrf.mxu0
        %v1636 = vadd.f32 0.0, %v1635
        %v1637 = vpop.f32.mrf.mxu0
        %1638 = vmatprep.mubr.f32.mxu0 0.0
        %1639 = vmatmul.mubr.f32.gmra.mxu0 %v1456
        %v1640 = vpop.f32.mrf.mxu0
        %v1641 = vadd.f32 0.0, %v1640
        %v1642 = vpop.f32.mrf.mxu0
        %1643 = vmatprep.mubr.f32.mxu0 0.0
        %1644 = vmatmul.mubr.f32.gmra.mxu0 %v1458
        %v1645 = vpop.f32.mrf.mxu0
        %v1646 = vadd.f32 0.0, %v1645
        %v1647 = vpop.f32.mrf.mxu0
        %1648 = vmatprep.mubr.f32.mxu0 0.0
        %1649 = vmatmul.mubr.f32.gmra.mxu0 %v1460
        %v1650 = vpop.f32.mrf.mxu0
        %v1651 = vadd.f32 0.0, %v1650
        %v1652 = vpop.f32.mrf.mxu0
        %1653 = vmatprep.mubr.f32.mxu0 0.0
        %1654 = vmatmul.mubr.f32.gmra.mxu0 %v1462
        %v1655 = vpop.f32.mrf.mxu0
        %v1656 = vadd.f32 0.0, %v1655
        %v1657 = vpop.f32.mrf.mxu0
        %1658 = vmatprep.mubr.f32.mxu0 0.0
        %1659 = vmatmul.mubr.f32.gmra.mxu0 %v1464
        %v1660 = vpop.f32.mrf.mxu0
        %v1661 = vadd.f32 0.0, %v1660
        %v1662 = vpop.f32.mrf.mxu0
        %1663 = vmatprep.mubr.f32.mxu0 0.0
        %1664 = vmatmul.mubr.f32.gmra.mxu0 %v1466
        %v1665 = vpop.f32.mrf.mxu0
        %v1666 = vadd.f32 0.0, %v1665
        %v1667 = vpop.f32.mrf.mxu0
        %1668 = vmatprep.mubr.f32.mxu0 0.0
        %1669 = vmatmul.mubr.f32.gmra.mxu0 %v1468
        %v1670 = vpop.f32.mrf.mxu0
        %v1671 = vadd.f32 0.0, %v1670
        %v1672 = vpop.f32.mrf.mxu0
        %1673 = vmatprep.mubr.f32.mxu0 0.0
        %1674 = vmatmul.mubr.f32.gmra.mxu0 %v1470
        %v1675 = vpop.f32.mrf.mxu0
        %v1676 = vadd.f32 0.0, %v1675
        %v1677 = vpop.f32.mrf.mxu0
        %1678 = vmatprep.mubr.f32.mxu0 0.0
        %1679 = vmatmul.mubr.f32.gmra.mxu0 %v1472
        %v1680 = vpop.f32.mrf.mxu0
        %v1681 = vadd.f32 0.0, %v1680
        %v1682 = vpop.f32.mrf.mxu0
        %1683 = vmatprep.mubr.f32.mxu0 0.0
        %1684 = vmatmul.mubr.f32.gmra.mxu0 %v1474
        %v1685 = vpop.f32.mrf.mxu0
        %v1686 = vadd.f32 0.0, %v1685
        %v1687 = vpop.f32.mrf.mxu0
        %1688 = vmatprep.mubr.f32.mxu0 0.0
        %1689 = vmatmul.mubr.f32.gmra.mxu0 %v1476
        %v1690 = vpop.f32.mrf.mxu0
        %v1691 = vadd.f32 0.0, %v1690
        %v1692 = vpop.f32.mrf.mxu0
        %1693 = vmatprep.mubr.f32.mxu0 0.0
        %1694 = vmatmul.mubr.f32.gmra.mxu0 %v1478
        %v1695 = vpop.f32.mrf.mxu0
        %v1696 = vadd.f32 0.0, %v1695
        %v1697 = vpop.f32.mrf.mxu0
        %1698 = vmatprep.mubr.f32.mxu0 0.0
        %1699 = vmatmul.mubr.f32.gmra.mxu0 %v1480
        %v1700 = vpop.f32.mrf.mxu0
        %v1701 = vadd.f32 0.0, %v1700
        %v1702 = vpop.f32.mrf.mxu0
        %1703 = vmatprep.mubr.f32.mxu0 0.0
        %1704 = vmatmul.mubr.f32.gmra.mxu0 %v1482
        %v1705 = vpop.f32.mrf.mxu0
        %v1706 = vadd.f32 0.0, %v1705
        %v1707 = vpop.f32.mrf.mxu0
        %1708 = vmatprep.mubr.f32.mxu0 0.0
        %1709 = vmatmul.mubr.f32.gmra.mxu0 %v1484
        %v1710 = vpop.f32.mrf.mxu0
        %v1711 = vadd.f32 0.0, %v1710
        %v1712 = vpop.f32.mrf.mxu0
        %1713 = vdwg.mxu0
        %v1714 = vadd.f32 %v1279, %v1556
        %v1715 = vadd.f32 %v1280, %v1561
        %v1716 = vadd.f32 %v1281, %v1566
        %v1717 = vadd.f32 %v1282, %v1571
        %v1718 = vadd.f32 %v1283, %v1576
        %v1719 = vadd.f32 %v1284, %v1581
        %v1720 = vadd.f32 %v1285, %v1586
        %v1721 = vadd.f32 %v1286, %v1591
        %v1722 = vadd.f32 %v1287, %v1596
        %v1723 = vadd.f32 %v1288, %v1601
        %v1724 = vadd.f32 %v1289, %v1606
        %v1725 = vadd.f32 %v1290, %v1611
        %v1726 = vadd.f32 %v1291, %v1616
        %v1727 = vadd.f32 %v1292, %v1621
        %v1728 = vadd.f32 %v1293, %v1626
        %v1729 = vadd.f32 %v1294, %v1631
        %v1730 = vadd.f32 %v1295, %v1636
        %v1731 = vadd.f32 %v1296, %v1641
        %v1732 = vadd.f32 %v1297, %v1646
        %v1733 = vadd.f32 %v1298, %v1651
        %v1734 = vadd.f32 %v1299, %v1656
        %v1735 = vadd.f32 %v1300, %v1661
        %v1736 = vadd.f32 %v1301, %v1666
        %v1737 = vadd.f32 %v1302, %v1671
        %v1738 = vadd.f32 %v1303, %v1676
        %v1739 = vadd.f32 %v1304, %v1681
        %v1740 = vadd.f32 %v1305, %v1686
        %v1741 = vadd.f32 %v1306, %v1691
        %v1742 = vadd.f32 %v1307, %v1696
        %v1743 = vadd.f32 %v1308, %v1701
        %v1744 = vadd.f32 %v1309, %v1706
        %v1745 = vadd.f32 %v1310, %v1711
        %s1746 = scalar_lea.vmem %s1, 16
        %v1747 = vld [vmem:[%s1746] sm:$0xf]
        %v1748 = vsel %vm244, %v1412, 0
        %v1750 = vsel %vm244, %v1414, 0
        %v1753 = vsel %vm514, %v1747, 0
        %1755 = vmatprep.subr.mxu0 0.0
        %1756 = vmatpush1.msra.mxu0 0.0
        %1757 = vmatprep.subr.mxu0 0.0
        %1758 = vmatpush1.msra.mxu0 0.0
        %1759 = vmatprep.subr.mxu0 0.0
        %1760 = vmatpush1.msra.mxu0 0.0
        %1761 = vmatprep.subr.mxu0 0.0
        %1762 = vmatpush1.msra.mxu0 0.0
        %1763 = vmatprep.subr.mxu0 0.0
        %1764 = vmatpush1.msra.mxu0 0.0
        %1765 = vmatprep.subr.mxu0 0.0
        %1766 = vmatpush1.msra.mxu0 0.0
        %1767 = vmatprep.subr.mxu0 0.0
        %1768 = vmatpush1.msra.mxu0 0.0
        %1769 = vmatprep.subr.mxu0 0.0
        %1770 = vmatpush1.msra.mxu0 0.0
        %1771 = vmatprep.subr.mxu0 0.0
        %1772 = vmatpush1.msra.mxu0 0.0
        %1773 = vmatprep.subr.mxu0 0.0
        %1774 = vmatpush1.msra.mxu0 0.0
        %1775 = vmatprep.subr.mxu0 0.0
        %1776 = vmatpush1.msra.mxu0 0.0
        %1777 = vmatprep.subr.mxu0 0.0
        %1778 = vmatpush1.msra.mxu0 0.0
        %1779 = vmatprep.subr.mxu0 0.0
        %1780 = vmatpush1.msra.mxu0 0.0
        %1781 = vmatprep.subr.mxu0 0.0
        %1782 = vmatpush1.msra.mxu0 0.0
        %1783 = vmatprep.subr.mxu0 0.0
        %1784 = vmatpush1.msra.mxu0 0.0
        %1785 = vmatprep.subr.mxu0 0.0
        %1786 = vmatpush1.msra.mxu0 %v1753
        %1787 = vmatprep.subr.mxu0 0.0
        %1788 = vmatpush2.msra.mxu0 0.0
        %1789 = vmatprep.subr.mxu0 0.0
        %1790 = vmatpush2.msra.mxu0 0.0
        %1791 = vmatprep.subr.mxu0 0.0
        %1792 = vmatpush2.msra.mxu0 0.0
        %1793 = vmatprep.subr.mxu0 0.0
        %1794 = vmatpush2.msra.mxu0 0.0
        %1795 = vmatprep.subr.mxu0 0.0
        %1796 = vmatpush2.msra.mxu0 0.0
        %1797 = vmatprep.subr.mxu0 0.0
        %1798 = vmatpush2.msra.mxu0 0.0
        %1799 = vmatprep.subr.mxu0 0.0
        %1800 = vmatpush2.msra.mxu0 0.0
        %1801 = vmatprep.subr.mxu0 0.0
        %1802 = vmatpush2.msra.mxu0 0.0
        %1803 = vmatprep.subr.mxu0 0.0
        %1804 = vmatpush2.msra.mxu0 0.0
        %1805 = vmatprep.subr.mxu0 0.0
        %1806 = vmatpush2.msra.mxu0 0.0
        %1807 = vmatprep.subr.mxu0 0.0
        %1808 = vmatpush2.msra.mxu0 0.0
        %1809 = vmatprep.subr.mxu0 0.0
        %1810 = vmatpush2.msra.mxu0 0.0
        %1811 = vmatprep.subr.mxu0 0.0
        %1812 = vmatpush2.msra.mxu0 0.0
        %1813 = vmatprep.subr.mxu0 0.0
        %1814 = vmatpush2.msra.mxu0 0.0
        %1815 = vmatprep.subr.mxu0 0.0
        %1816 = vmatpush2.msra.mxu0 0.0
        %1817 = vmatprep.subr.mxu0 0.0
        %1818 = vmatpush2.msra.mxu0 0.0
        %1819 = vmatprep.mubr.f32.mxu0 0.0
        %1820 = vmatmul.mubr.f32.gmra.mxu0 %v1426
        %v1821 = vpop.f32.mrf.mxu0
        %v1822 = vadd.f32 0.0, %v1821
        %v1823 = vpop.f32.mrf.mxu0
        %1824 = vmatprep.mubr.f32.mxu0 0.0
        %1825 = vmatmul.mubr.f32.gmra.mxu0 %v1428
        %v1826 = vpop.f32.mrf.mxu0
        %v1827 = vadd.f32 0.0, %v1826
        %v1828 = vpop.f32.mrf.mxu0
        %1829 = vmatprep.mubr.f32.mxu0 0.0
        %1830 = vmatmul.mubr.f32.gmra.mxu0 %v1430
        %v1831 = vpop.f32.mrf.mxu0
        %v1832 = vadd.f32 0.0, %v1831
        %v1833 = vpop.f32.mrf.mxu0
        %1834 = vmatprep.mubr.f32.mxu0 0.0
        %1835 = vmatmul.mubr.f32.gmra.mxu0 %v1432
        %v1836 = vpop.f32.mrf.mxu0
        %v1837 = vadd.f32 0.0, %v1836
        %v1838 = vpop.f32.mrf.mxu0
        %1839 = vmatprep.mubr.f32.mxu0 0.0
        %1840 = vmatmul.mubr.f32.gmra.mxu0 %v1434
        %v1841 = vpop.f32.mrf.mxu0
        %v1842 = vadd.f32 0.0, %v1841
        %v1843 = vpop.f32.mrf.mxu0
        %1844 = vmatprep.mubr.f32.mxu0 0.0
        %1845 = vmatmul.mubr.f32.gmra.mxu0 %v1436
        %v1846 = vpop.f32.mrf.mxu0
        %v1847 = vadd.f32 0.0, %v1846
        %v1848 = vpop.f32.mrf.mxu0
        %1849 = vmatprep.mubr.f32.mxu0 0.0
        %1850 = vmatmul.mubr.f32.gmra.mxu0 %v1438
        %v1851 = vpop.f32.mrf.mxu0
        %v1852 = vadd.f32 0.0, %v1851
        %v1853 = vpop.f32.mrf.mxu0
        %1854 = vmatprep.mubr.f32.mxu0 0.0
        %1855 = vmatmul.mubr.f32.gmra.mxu0 %v1440
        %v1856 = vpop.f32.mrf.mxu0
        %v1857 = vadd.f32 0.0, %v1856
        %v1858 = vpop.f32.mrf.mxu0
        %1859 = vmatprep.mubr.f32.mxu0 0.0
        %1860 = vmatmul.mubr.f32.gmra.mxu0 %v1442
        %v1861 = vpop.f32.mrf.mxu0
        %v1862 = vadd.f32 0.0, %v1861
        %v1863 = vpop.f32.mrf.mxu0
        %1864 = vmatprep.mubr.f32.mxu0 0.0
        %1865 = vmatmul.mubr.f32.gmra.mxu0 %v1444
        %v1866 = vpop.f32.mrf.mxu0
        %v1867 = vadd.f32 0.0, %v1866
        %v1868 = vpop.f32.mrf.mxu0
        %1869 = vmatprep.mubr.f32.mxu0 0.0
        %1870 = vmatmul.mubr.f32.gmra.mxu0 %v1446
        %v1871 = vpop.f32.mrf.mxu0
        %v1872 = vadd.f32 0.0, %v1871
        %v1873 = vpop.f32.mrf.mxu0
        %1874 = vmatprep.mubr.f32.mxu0 0.0
        %1875 = vmatmul.mubr.f32.gmra.mxu0 %v1448
        %v1876 = vpop.f32.mrf.mxu0
        %v1877 = vadd.f32 0.0, %v1876
        %v1878 = vpop.f32.mrf.mxu0
        %1879 = vmatprep.mubr.f32.mxu0 0.0
        %1880 = vmatmul.mubr.f32.gmra.mxu0 %v1450
        %v1881 = vpop.f32.mrf.mxu0
        %v1882 = vadd.f32 0.0, %v1881
        %v1883 = vpop.f32.mrf.mxu0
        %1884 = vmatprep.mubr.f32.mxu0 0.0
        %1885 = vmatmul.mubr.f32.gmra.mxu0 %v1452
        %v1886 = vpop.f32.mrf.mxu0
        %v1887 = vadd.f32 0.0, %v1886
        %v1888 = vpop.f32.mrf.mxu0
        %1889 = vmatprep.mubr.f32.mxu0 0.0
        %1890 = vmatmul.mubr.f32.gmra.mxu0 %v1454
        %v1891 = vpop.f32.mrf.mxu0
        %v1892 = vadd.f32 0.0, %v1891
        %v1893 = vpop.f32.mrf.mxu0
        %1894 = vmatprep.mubr.f32.mxu0 0.0
        %1895 = vmatmul.mubr.f32.gmra.mxu0 %v1456
        %v1896 = vpop.f32.mrf.mxu0
        %v1897 = vadd.f32 0.0, %v1896
        %v1898 = vpop.f32.mrf.mxu0
        %1899 = vmatprep.mubr.f32.mxu0 0.0
        %1900 = vmatmul.mubr.f32.gmra.mxu0 %v1458
        %v1901 = vpop.f32.mrf.mxu0
        %v1902 = vadd.f32 0.0, %v1901
        %v1903 = vpop.f32.mrf.mxu0
        %1904 = vmatprep.mubr.f32.mxu0 0.0
        %1905 = vmatmul.mubr.f32.gmra.mxu0 %v1460
        %v1906 = vpop.f32.mrf.mxu0
        %v1907 = vadd.f32 0.0, %v1906
        %v1908 = vpop.f32.mrf.mxu0
        %1909 = vmatprep.mubr.f32.mxu0 0.0
        %1910 = vmatmul.mubr.f32.gmra.mxu0 %v1462
        %v1911 = vpop.f32.mrf.mxu0
        %v1912 = vadd.f32 0.0, %v1911
        %v1913 = vpop.f32.mrf.mxu0
        %1914 = vmatprep.mubr.f32.mxu0 0.0
        %1915 = vmatmul.mubr.f32.gmra.mxu0 %v1464
        %v1916 = vpop.f32.mrf.mxu0
        %v1917 = vadd.f32 0.0, %v1916
        %v1918 = vpop.f32.mrf.mxu0
        %1919 = vmatprep.mubr.f32.mxu0 0.0
        %1920 = vmatmul.mubr.f32.gmra.mxu0 %v1466
        %v1921 = vpop.f32.mrf.mxu0
        %v1922 = vadd.f32 0.0, %v1921
        %v1923 = vpop.f32.mrf.mxu0
        %1924 = vmatprep.mubr.f32.mxu0 0.0
        %1925 = vmatmul.mubr.f32.gmra.mxu0 %v1468
        %v1926 = vpop.f32.mrf.mxu0
        %v1927 = vadd.f32 0.0, %v1926
        %v1928 = vpop.f32.mrf.mxu0
        %1929 = vmatprep.mubr.f32.mxu0 0.0
        %1930 = vmatmul.mubr.f32.gmra.mxu0 %v1470
        %v1931 = vpop.f32.mrf.mxu0
        %v1932 = vadd.f32 0.0, %v1931
        %v1933 = vpop.f32.mrf.mxu0
        %1934 = vmatprep.mubr.f32.mxu0 0.0
        %1935 = vmatmul.mubr.f32.gmra.mxu0 %v1472
        %v1936 = vpop.f32.mrf.mxu0
        %v1937 = vadd.f32 0.0, %v1936
        %v1938 = vpop.f32.mrf.mxu0
        %1939 = vmatprep.mubr.f32.mxu0 0.0
        %1940 = vmatmul.mubr.f32.gmra.mxu0 %v1474
        %v1941 = vpop.f32.mrf.mxu0
        %v1942 = vadd.f32 0.0, %v1941
        %v1943 = vpop.f32.mrf.mxu0
        %1944 = vmatprep.mubr.f32.mxu0 0.0
        %1945 = vmatmul.mubr.f32.gmra.mxu0 %v1476
        %v1946 = vpop.f32.mrf.mxu0
        %v1947 = vadd.f32 0.0, %v1946
        %v1948 = vpop.f32.mrf.mxu0
        %1949 = vmatprep.mubr.f32.mxu0 0.0
        %1950 = vmatmul.mubr.f32.gmra.mxu0 %v1478
        %v1951 = vpop.f32.mrf.mxu0
        %v1952 = vadd.f32 0.0, %v1951
        %v1953 = vpop.f32.mrf.mxu0
        %1954 = vmatprep.mubr.f32.mxu0 0.0
        %1955 = vmatmul.mubr.f32.gmra.mxu0 %v1480
        %v1956 = vpop.f32.mrf.mxu0
        %v1957 = vadd.f32 0.0, %v1956
        %v1958 = vpop.f32.mrf.mxu0
        %1959 = vmatprep.mubr.f32.mxu0 0.0
        %1960 = vmatmul.mubr.f32.gmra.mxu0 %v1482
        %v1961 = vpop.f32.mrf.mxu0
        %v1962 = vadd.f32 0.0, %v1961
        %v1963 = vpop.f32.mrf.mxu0
        %1964 = vmatprep.mubr.f32.mxu0 0.0
        %1965 = vmatmul.mubr.f32.gmra.mxu0 %v1484
        %v1966 = vpop.f32.mrf.mxu0
        %v1967 = vadd.f32 0.0, %v1966
        %v1968 = vpop.f32.mrf.mxu0
        %1969 = vmatprep.mubr.f32.mxu0 0.0
        %1970 = vmatmul.mubr.f32.gmra.mxu0 %v1748
        %v1971 = vpop.f32.mrf.mxu0
        %v1972 = vadd.f32 0.0, %v1971
        %v1973 = vpop.f32.mrf.mxu0
        %1974 = vmatprep.mubr.f32.mxu0 0.0
        %1975 = vmatmul.mubr.f32.gmra.mxu0 %v1750
        %v1976 = vpop.f32.mrf.mxu0
        %v1977 = vadd.f32 0.0, %v1976
        %v1978 = vpop.f32.mrf.mxu0
        %1979 = vdwg.mxu0
        %v1980 = vadd.f32 %v1714, %v1822
        %v1981 = vadd.f32 %v1715, %v1827
        %v1982 = vadd.f32 %v1716, %v1832
        %v1983 = vadd.f32 %v1717, %v1837
        %v1984 = vadd.f32 %v1718, %v1842
        %v1985 = vadd.f32 %v1719, %v1847
        %v1986 = vadd.f32 %v1720, %v1852
        %v1987 = vadd.f32 %v1721, %v1857
        %v1988 = vadd.f32 %v1722, %v1862
        %v1989 = vadd.f32 %v1723, %v1867
        %v1990 = vadd.f32 %v1724, %v1872
        %v1991 = vadd.f32 %v1725, %v1877
        %v1992 = vadd.f32 %v1726, %v1882
        %v1993 = vadd.f32 %v1727, %v1887
        %v1994 = vadd.f32 %v1728, %v1892
        %v1995 = vadd.f32 %v1729, %v1897
        %v1996 = vadd.f32 %v1730, %v1902
        %v1997 = vadd.f32 %v1731, %v1907
        %v1998 = vadd.f32 %v1732, %v1912
        %v1999 = vadd.f32 %v1733, %v1917
        %v2000 = vadd.f32 %v1734, %v1922
        %v2001 = vadd.f32 %v1735, %v1927
        %v2002 = vadd.f32 %v1736, %v1932
        %v2003 = vadd.f32 %v1737, %v1937
        %v2004 = vadd.f32 %v1738, %v1942
        %v2005 = vadd.f32 %v1739, %v1947
        %v2006 = vadd.f32 %v1740, %v1952
        %v2007 = vadd.f32 %v1741, %v1957
        %v2008 = vadd.f32 %v1742, %v1962
        %v2009 = vadd.f32 %v1743, %v1967
        %v2010 = vadd.f32 %v1744, %v1972
        %v2011 = vadd.f32 %v1745, %v1977
        %s2012 = scalar_lea.vmem %s1, 28
        %v2013 = vld [vmem:[%s2012] sm:$0xf]
        %v2014 = vsel %vm244, %v1417, 0
        %v2016 = vsel %vm244, %v1419, 0
        %v2019 = vsel %vm514, %v2013, 0
        %2021 = vmatprep.subr.mxu0 0.0
        %2022 = vmatpush1.msra.mxu0 0.0
        %2023 = vmatprep.subr.mxu0 0.0
        %2024 = vmatpush1.msra.mxu0 0.0
        %2025 = vmatprep.subr.mxu0 0.0
        %2026 = vmatpush1.msra.mxu0 0.0
        %2027 = vmatprep.subr.mxu0 0.0
        %2028 = vmatpush1.msra.mxu0 0.0
        %2029 = vmatprep.subr.mxu0 0.0
        %2030 = vmatpush1.msra.mxu0 0.0
        %2031 = vmatprep.subr.mxu0 0.0
        %2032 = vmatpush1.msra.mxu0 0.0
        %2033 = vmatprep.subr.mxu0 0.0
        %2034 = vmatpush1.msra.mxu0 0.0
        %2035 = vmatprep.subr.mxu0 0.0
        %2036 = vmatpush1.msra.mxu0 0.0
        %2037 = vmatprep.subr.mxu0 0.0
        %2038 = vmatpush1.msra.mxu0 0.0
        %2039 = vmatprep.subr.mxu0 0.0
        %2040 = vmatpush1.msra.mxu0 0.0
        %2041 = vmatprep.subr.mxu0 0.0
        %2042 = vmatpush1.msra.mxu0 0.0
        %2043 = vmatprep.subr.mxu0 0.0
        %2044 = vmatpush1.msra.mxu0 0.0
        %2045 = vmatprep.subr.mxu0 0.0
        %2046 = vmatpush1.msra.mxu0 0.0
        %2047 = vmatprep.subr.mxu0 0.0
        %2048 = vmatpush1.msra.mxu0 0.0
        %2049 = vmatprep.subr.mxu0 0.0
        %2050 = vmatpush1.msra.mxu0 0.0
        %2051 = vmatprep.subr.mxu0 0.0
        %2052 = vmatpush1.msra.mxu0 %v2019
        %2053 = vmatprep.subr.mxu0 0.0
        %2054 = vmatpush2.msra.mxu0 0.0
        %2055 = vmatprep.subr.mxu0 0.0
        %2056 = vmatpush2.msra.mxu0 0.0
        %2057 = vmatprep.subr.mxu0 0.0
        %2058 = vmatpush2.msra.mxu0 0.0
        %2059 = vmatprep.subr.mxu0 0.0
        %2060 = vmatpush2.msra.mxu0 0.0
        %2061 = vmatprep.subr.mxu0 0.0
        %2062 = vmatpush2.msra.mxu0 0.0
        %2063 = vmatprep.subr.mxu0 0.0
        %2064 = vmatpush2.msra.mxu0 0.0
        %2065 = vmatprep.subr.mxu0 0.0
        %2066 = vmatpush2.msra.mxu0 0.0
        %2067 = vmatprep.subr.mxu0 0.0
        %2068 = vmatpush2.msra.mxu0 0.0
        %2069 = vmatprep.subr.mxu0 0.0
        %2070 = vmatpush2.msra.mxu0 0.0
        %2071 = vmatprep.subr.mxu0 0.0
        %2072 = vmatpush2.msra.mxu0 0.0
        %2073 = vmatprep.subr.mxu0 0.0
        %2074 = vmatpush2.msra.mxu0 0.0
        %2075 = vmatprep.subr.mxu0 0.0
        %2076 = vmatpush2.msra.mxu0 0.0
        %2077 = vmatprep.subr.mxu0 0.0
        %2078 = vmatpush2.msra.mxu0 0.0
        %2079 = vmatprep.subr.mxu0 0.0
        %2080 = vmatpush2.msra.mxu0 0.0
        %2081 = vmatprep.subr.mxu0 0.0
        %2082 = vmatpush2.msra.mxu0 0.0
        %2083 = vmatprep.subr.mxu0 0.0
        %2084 = vmatpush2.msra.mxu0 0.0
        %2085 = vmatprep.mubr.f32.mxu0 0.0
        %2086 = vmatmul.mubr.f32.gmra.mxu0 %v1430
        %v2087 = vpop.f32.mrf.mxu0
        %v2088 = vadd.f32 0.0, %v2087
        %v2089 = vpop.f32.mrf.mxu0
        %2090 = vmatprep.mubr.f32.mxu0 0.0
        %2091 = vmatmul.mubr.f32.gmra.mxu0 %v1432
        %v2092 = vpop.f32.mrf.mxu0
        %v2093 = vadd.f32 0.0, %v2092
        %v2094 = vpop.f32.mrf.mxu0
        %2095 = vmatprep.mubr.f32.mxu0 0.0
        %2096 = vmatmul.mubr.f32.gmra.mxu0 %v1434
        %v2097 = vpop.f32.mrf.mxu0
        %v2098 = vadd.f32 0.0, %v2097
        %v2099 = vpop.f32.mrf.mxu0
        %2100 = vmatprep.mubr.f32.mxu0 0.0
        %2101 = vmatmul.mubr.f32.gmra.mxu0 %v1436
        %v2102 = vpop.f32.mrf.mxu0
        %v2103 = vadd.f32 0.0, %v2102
        %v2104 = vpop.f32.mrf.mxu0
        %2105 = vmatprep.mubr.f32.mxu0 0.0
        %2106 = vmatmul.mubr.f32.gmra.mxu0 %v1438
        %v2107 = vpop.f32.mrf.mxu0
        %v2108 = vadd.f32 0.0, %v2107
        %v2109 = vpop.f32.mrf.mxu0
        %2110 = vmatprep.mubr.f32.mxu0 0.0
        %2111 = vmatmul.mubr.f32.gmra.mxu0 %v1440
        %v2112 = vpop.f32.mrf.mxu0
        %v2113 = vadd.f32 0.0, %v2112
        %v2114 = vpop.f32.mrf.mxu0
        %2115 = vmatprep.mubr.f32.mxu0 0.0
        %2116 = vmatmul.mubr.f32.gmra.mxu0 %v1442
        %v2117 = vpop.f32.mrf.mxu0
        %v2118 = vadd.f32 0.0, %v2117
        %v2119 = vpop.f32.mrf.mxu0
        %2120 = vmatprep.mubr.f32.mxu0 0.0
        %2121 = vmatmul.mubr.f32.gmra.mxu0 %v1444
        %v2122 = vpop.f32.mrf.mxu0
        %v2123 = vadd.f32 0.0, %v2122
        %v2124 = vpop.f32.mrf.mxu0
        %2125 = vmatprep.mubr.f32.mxu0 0.0
        %2126 = vmatmul.mubr.f32.gmra.mxu0 %v1446
        %v2127 = vpop.f32.mrf.mxu0
        %v2128 = vadd.f32 0.0, %v2127
        %v2129 = vpop.f32.mrf.mxu0
        %2130 = vmatprep.mubr.f32.mxu0 0.0
        %2131 = vmatmul.mubr.f32.gmra.mxu0 %v1448
        %v2132 = vpop.f32.mrf.mxu0
        %v2133 = vadd.f32 0.0, %v2132
        %v2134 = vpop.f32.mrf.mxu0
        %2135 = vmatprep.mubr.f32.mxu0 0.0
        %2136 = vmatmul.mubr.f32.gmra.mxu0 %v1450
        %v2137 = vpop.f32.mrf.mxu0
        %v2138 = vadd.f32 0.0, %v2137
        %v2139 = vpop.f32.mrf.mxu0
        %2140 = vmatprep.mubr.f32.mxu0 0.0
        %2141 = vmatmul.mubr.f32.gmra.mxu0 %v1452
        %v2142 = vpop.f32.mrf.mxu0
        %v2143 = vadd.f32 0.0, %v2142
        %v2144 = vpop.f32.mrf.mxu0
        %2145 = vmatprep.mubr.f32.mxu0 0.0
        %2146 = vmatmul.mubr.f32.gmra.mxu0 %v1454
        %v2147 = vpop.f32.mrf.mxu0
        %v2148 = vadd.f32 0.0, %v2147
        %v2149 = vpop.f32.mrf.mxu0
        %2150 = vmatprep.mubr.f32.mxu0 0.0
        %2151 = vmatmul.mubr.f32.gmra.mxu0 %v1456
        %v2152 = vpop.f32.mrf.mxu0
        %v2153 = vadd.f32 0.0, %v2152
        %v2154 = vpop.f32.mrf.mxu0
        %2155 = vmatprep.mubr.f32.mxu0 0.0
        %2156 = vmatmul.mubr.f32.gmra.mxu0 %v1458
        %v2157 = vpop.f32.mrf.mxu0
        %v2158 = vadd.f32 0.0, %v2157
        %v2159 = vpop.f32.mrf.mxu0
        %2160 = vmatprep.mubr.f32.mxu0 0.0
        %2161 = vmatmul.mubr.f32.gmra.mxu0 %v1460
        %v2162 = vpop.f32.mrf.mxu0
        %v2163 = vadd.f32 0.0, %v2162
        %v2164 = vpop.f32.mrf.mxu0
        %2165 = vmatprep.mubr.f32.mxu0 0.0
        %2166 = vmatmul.mubr.f32.gmra.mxu0 %v1462
        %v2167 = vpop.f32.mrf.mxu0
        %v2168 = vadd.f32 0.0, %v2167
        %v2169 = vpop.f32.mrf.mxu0
        %2170 = vmatprep.mubr.f32.mxu0 0.0
        %2171 = vmatmul.mubr.f32.gmra.mxu0 %v1464
        %v2172 = vpop.f32.mrf.mxu0
        %v2173 = vadd.f32 0.0, %v2172
        %v2174 = vpop.f32.mrf.mxu0
        %2175 = vmatprep.mubr.f32.mxu0 0.0
        %2176 = vmatmul.mubr.f32.gmra.mxu0 %v1466
        %v2177 = vpop.f32.mrf.mxu0
        %v2178 = vadd.f32 0.0, %v2177
        %v2179 = vpop.f32.mrf.mxu0
        %2180 = vmatprep.mubr.f32.mxu0 0.0
        %2181 = vmatmul.mubr.f32.gmra.mxu0 %v1468
        %v2182 = vpop.f32.mrf.mxu0
        %v2183 = vadd.f32 0.0, %v2182
        %v2184 = vpop.f32.mrf.mxu0
        %2185 = vmatprep.mubr.f32.mxu0 0.0
        %2186 = vmatmul.mubr.f32.gmra.mxu0 %v1470
        %v2187 = vpop.f32.mrf.mxu0
        %v2188 = vadd.f32 0.0, %v2187
        %v2189 = vpop.f32.mrf.mxu0
        %2190 = vmatprep.mubr.f32.mxu0 0.0
        %2191 = vmatmul.mubr.f32.gmra.mxu0 %v1472
        %v2192 = vpop.f32.mrf.mxu0
        %v2193 = vadd.f32 0.0, %v2192
        %v2194 = vpop.f32.mrf.mxu0
        %2195 = vmatprep.mubr.f32.mxu0 0.0
        %2196 = vmatmul.mubr.f32.gmra.mxu0 %v1474
        %v2197 = vpop.f32.mrf.mxu0
        %v2198 = vadd.f32 0.0, %v2197
        %v2199 = vpop.f32.mrf.mxu0
        %2200 = vmatprep.mubr.f32.mxu0 0.0
        %2201 = vmatmul.mubr.f32.gmra.mxu0 %v1476
        %v2202 = vpop.f32.mrf.mxu0
        %v2203 = vadd.f32 0.0, %v2202
        %v2204 = vpop.f32.mrf.mxu0
        %2205 = vmatprep.mubr.f32.mxu0 0.0
        %2206 = vmatmul.mubr.f32.gmra.mxu0 %v1478
        %v2207 = vpop.f32.mrf.mxu0
        %v2208 = vadd.f32 0.0, %v2207
        %v2209 = vpop.f32.mrf.mxu0
        %2210 = vmatprep.mubr.f32.mxu0 0.0
        %2211 = vmatmul.mubr.f32.gmra.mxu0 %v1480
        %v2212 = vpop.f32.mrf.mxu0
        %v2213 = vadd.f32 0.0, %v2212
        %v2214 = vpop.f32.mrf.mxu0
        %2215 = vmatprep.mubr.f32.mxu0 0.0
        %2216 = vmatmul.mubr.f32.gmra.mxu0 %v1482
        %v2217 = vpop.f32.mrf.mxu0
        %v2218 = vadd.f32 0.0, %v2217
        %v2219 = vpop.f32.mrf.mxu0
        %2220 = vmatprep.mubr.f32.mxu0 0.0
        %2221 = vmatmul.mubr.f32.gmra.mxu0 %v1484
        %v2222 = vpop.f32.mrf.mxu0
        %v2223 = vadd.f32 0.0, %v2222
        %v2224 = vpop.f32.mrf.mxu0
        %2225 = vmatprep.mubr.f32.mxu0 0.0
        %2226 = vmatmul.mubr.f32.gmra.mxu0 %v1748
        %v2227 = vpop.f32.mrf.mxu0
        %v2228 = vadd.f32 0.0, %v2227
        %v2229 = vpop.f32.mrf.mxu0
        %2230 = vmatprep.mubr.f32.mxu0 0.0
        %2231 = vmatmul.mubr.f32.gmra.mxu0 %v1750
        %v2232 = vpop.f32.mrf.mxu0
        %v2233 = vadd.f32 0.0, %v2232
        %v2234 = vpop.f32.mrf.mxu0
        %2235 = vmatprep.mubr.f32.mxu0 0.0
        %2236 = vmatmul.mubr.f32.gmra.mxu0 %v2014
        %v2237 = vpop.f32.mrf.mxu0
        %v2238 = vadd.f32 0.0, %v2237
        %v2239 = vpop.f32.mrf.mxu0
        %2240 = vmatprep.mubr.f32.mxu0 0.0
        %2241 = vmatmul.mubr.f32.gmra.mxu0 %v2016
        %v2242 = vpop.f32.mrf.mxu0
        %v2243 = vadd.f32 0.0, %v2242
        %v2244 = vpop.f32.mrf.mxu0
        %2245 = vdwg.mxu0
        %v2246 = vadd.f32 %v1980, %v2088
        %v2247 = vadd.f32 %v1981, %v2093
        %v2248 = vadd.f32 %v1982, %v2098
        %v2249 = vadd.f32 %v1983, %v2103
        %v2250 = vadd.f32 %v1984, %v2108
        %v2251 = vadd.f32 %v1985, %v2113
        %v2252 = vadd.f32 %v1986, %v2118
        %v2253 = vadd.f32 %v1987, %v2123
        %v2254 = vadd.f32 %v1988, %v2128
        %v2255 = vadd.f32 %v1989, %v2133
        %v2256 = vadd.f32 %v1990, %v2138
        %v2257 = vadd.f32 %v1991, %v2143
        %v2258 = vadd.f32 %v1992, %v2148
        %v2259 = vadd.f32 %v1993, %v2153
        %v2260 = vadd.f32 %v1994, %v2158
        %v2261 = vadd.f32 %v1995, %v2163
        %v2262 = vadd.f32 %v1996, %v2168
        %v2263 = vadd.f32 %v1997, %v2173
        %v2264 = vadd.f32 %v1998, %v2178
        %v2265 = vadd.f32 %v1999, %v2183
        %v2266 = vadd.f32 %v2000, %v2188
        %v2267 = vadd.f32 %v2001, %v2193
        %v2268 = vadd.f32 %v2002, %v2198
        %v2269 = vadd.f32 %v2003, %v2203
        %v2270 = vadd.f32 %v2004, %v2208
        %v2271 = vadd.f32 %v2005, %v2213
        %v2272 = vadd.f32 %v2006, %v2218
        %v2273 = vadd.f32 %v2007, %v2223
        %v2274 = vadd.f32 %v2008, %v2228
        %v2275 = vadd.f32 %v2009, %v2233
        %v2276 = vadd.f32 %v2010, %v2238
        %v2277 = vadd.f32 %v2011, %v2243
        %vm2278 = vcmask 1045504
        %v2279 = vrot.slane %v355, 2
        %v2280 = vrot.slane %v356, 2
        %v2281 = vsel %vm2278, %v2279, %v2280
        %v2282 = vrot.slane %v357, 2
        %v2283 = vsel %vm2278, %v2280, %v2282
        %v2284 = vrot.slane %v358, 2
        %v2285 = vrot.slane %v359, 2
        %v2286 = vsel %vm2278, %v2284, %v2285
        %v2287 = vrot.slane %v360, 2
        %v2288 = vsel %vm2278, %v2285, %v2287
        %v2289 = vrot.slane %v361, 2
        %v2290 = vrot.slane %v362, 2
        %v2291 = vsel %vm2278, %v2289, %v2290
        %v2292 = vrot.slane %v363, 2
        %v2293 = vsel %vm2278, %v2290, %v2292
        %v2294 = vrot.slane %v364, 2
        %v2295 = vrot.slane %v365, 2
        %v2296 = vsel %vm2278, %v2294, %v2295
        %v2297 = vrot.slane %v366, 2
        %v2298 = vsel %vm2278, %v2295, %v2297
        %v2299 = vrot.slane %v367, 2
        %v2300 = vrot.slane %v368, 2
        %v2301 = vsel %vm2278, %v2299, %v2300
        %v2302 = vrot.slane %v369, 2
        %v2303 = vsel %vm2278, %v2300, %v2302
        %v2304 = vrot.slane %v370, 2
        %v2305 = vrot.slane %v371, 2
        %v2306 = vsel %vm2278, %v2304, %v2305
        %v2307 = vrot.slane %v372, 2
        %v2308 = vsel %vm2278, %v2305, %v2307
        %v2309 = vrot.slane %v373, 2
        %v2310 = vrot.slane %v374, 2
        %v2311 = vsel %vm2278, %v2309, %v2310
        %v2312 = vrot.slane %v375, 2
        %v2313 = vsel %vm2278, %v2310, %v2312
        %v2314 = vrot.slane %v376, 2
        %v2315 = vrot.slane %v377, 2
        %v2316 = vsel %vm2278, %v2314, %v2315
        %v2317 = vrot.slane %v378, 2
        %v2318 = vsel %vm2278, %v2315, %v2317
        %v2319 = vrot.slane %v379, 2
        %v2320 = vrot.slane %v380, 2
        %v2321 = vsel %vm2278, %v2319, %v2320
        %v2322 = vrot.slane %v381, 2
        %v2323 = vsel %vm2278, %v2320, %v2322
        %v2324 = vrot.slane %v382, 2
        %v2325 = vrot.slane %v383, 2
        %v2326 = vsel %vm2278, %v2324, %v2325
        %v2327 = vrot.slane %v384, 2
        %v2328 = vsel %vm2278, %v2325, %v2327
        %v2329 = vrot.slane %v385, 2
        %v2330 = vrot.slane %v386, 2
        %v2331 = vsel %vm2278, %v2329, %v2330
        %v2332 = vrot.slane %v387, 2
        %v2333 = vsel %vm2278, %v2330, %v2332
        %v2334 = vrot.slane %v388, 2
        %v2335 = vrot.slane %v389, 2
        %v2336 = vsel %vm2278, %v2334, %v2335
        %v2337 = vrot.slane %v390, 2
        %v2338 = vsel %vm2278, %v2335, %v2337
        %v2339 = vrot.slane %v391, 2
        %v2340 = vrot.slane %v392, 2
        %v2341 = vsel %vm2278, %v2339, %v2340
        %v2342 = vrot.slane %v393, 2
        %v2343 = vsel %vm2278, %v2340, %v2342
        %v2344 = vrot.slane %v394, 2
        %v2345 = vrot.slane %v395, 2
        %v2346 = vsel %vm2278, %v2344, %v2345
        %v2347 = vrot.slane %v396, 2
        %v2348 = vsel %vm2278, %v2345, %v2347
        %v2349 = vrot.slane %v397, 2
        %v2350 = vrot.slane %v398, 2
        %v2351 = vsel %vm2278, %v2349, %v2350
        %v2352 = vrot.slane %v399, 2
        %v2353 = vsel %vm2278, %v2350, %v2352
        %v2354 = vrot.slane %v400, 2
        %v2355 = vrot.slane %v401, 2
        %v2356 = vsel %vm2278, %v2354, %v2355
        %v2357 = vrot.slane %v402, 2
        %v2358 = vsel %vm2278, %v2355, %v2357
        %v2359 = vrot.slane %v403, 2
        %v2360 = vrot.slane %v404, 2
        %v2361 = vsel %vm2278, %v2359, %v2360
        %v2362 = vrot.slane %v405, 2
        %v2363 = vsel %vm2278, %v2360, %v2362
        %v2364 = vrot.slane %v406, 2
        %v2365 = vrot.slane %v407, 2
        %v2366 = vsel %vm2278, %v2364, %v2365
        %v2367 = vrot.slane %v408, 2
        %v2368 = vsel %vm2278, %v2365, %v2367
        %s2369 = scalar_lea.vmem %s1, 8
        %v2370 = vld [vmem:[%s2369] sm:$0xf]
        %v2371 = vsel %vm244, %v2281, 0
        %v2373 = vsel %vm244, %v2283, 0
        %v2375 = vsel %vm244, %v2286, 0
        %v2377 = vsel %vm244, %v2288, 0
        %v2379 = vsel %vm244, %v2291, 0
        %v2381 = vsel %vm244, %v2293, 0
        %v2383 = vsel %vm244, %v2296, 0
        %v2385 = vsel %vm244, %v2298, 0
        %v2387 = vsel %vm244, %v2301, 0
        %v2389 = vsel %vm244, %v2303, 0
        %v2391 = vsel %vm244, %v2306, 0
        %v2393 = vsel %vm244, %v2308, 0
        %v2395 = vsel %vm244, %v2311, 0
        %v2397 = vsel %vm244, %v2313, 0
        %v2399 = vsel %vm244, %v2316, 0
        %v2401 = vsel %vm244, %v2318, 0
        %v2403 = vsel %vm244, %v2321, 0
        %v2405 = vsel %vm244, %v2323, 0
        %v2407 = vsel %vm244, %v2326, 0
        %v2409 = vsel %vm244, %v2328, 0
        %v2411 = vsel %vm244, %v2331, 0
        %v2413 = vsel %vm244, %v2333, 0
        %v2415 = vsel %vm244, %v2336, 0
        %v2417 = vsel %vm244, %v2338, 0
        %v2419 = vsel %vm244, %v2341, 0
        %v2421 = vsel %vm244, %v2343, 0
        %v2423 = vsel %vm244, %v2346, 0
        %v2425 = vsel %vm244, %v2348, 0
        %v2427 = vsel %vm244, %v2351, 0
        %v2429 = vsel %vm244, %v2353, 0
        %v2431 = vsel %vm244, %v2356, 0
        %v2433 = vsel %vm244, %v2358, 0
        %v2436 = vsel %vm514, %v2370, 0
        %2438 = vmatprep.subr.mxu0 0.0
        %2439 = vmatpush1.msra.mxu0 0.0
        %2440 = vmatprep.subr.mxu0 0.0
        %2441 = vmatpush1.msra.mxu0 0.0
        %2442 = vmatprep.subr.mxu0 0.0
        %2443 = vmatpush1.msra.mxu0 0.0
        %2444 = vmatprep.subr.mxu0 0.0
        %2445 = vmatpush1.msra.mxu0 0.0
        %2446 = vmatprep.subr.mxu0 0.0
        %2447 = vmatpush1.msra.mxu0 0.0
        %2448 = vmatprep.subr.mxu0 0.0
        %2449 = vmatpush1.msra.mxu0 0.0
        %2450 = vmatprep.subr.mxu0 0.0
        %2451 = vmatpush1.msra.mxu0 0.0
        %2452 = vmatprep.subr.mxu0 0.0
        %2453 = vmatpush1.msra.mxu0 0.0
        %2454 = vmatprep.subr.mxu0 0.0
        %2455 = vmatpush1.msra.mxu0 0.0
        %2456 = vmatprep.subr.mxu0 0.0
        %2457 = vmatpush1.msra.mxu0 0.0
        %2458 = vmatprep.subr.mxu0 0.0
        %2459 = vmatpush1.msra.mxu0 0.0
        %2460 = vmatprep.subr.mxu0 0.0
        %2461 = vmatpush1.msra.mxu0 0.0
        %2462 = vmatprep.subr.mxu0 0.0
        %2463 = vmatpush1.msra.mxu0 0.0
        %2464 = vmatprep.subr.mxu0 0.0
        %2465 = vmatpush1.msra.mxu0 0.0
        %2466 = vmatprep.subr.mxu0 0.0
        %2467 = vmatpush1.msra.mxu0 0.0
        %2468 = vmatprep.subr.mxu0 0.0
        %2469 = vmatpush1.msra.mxu0 %v2436
        %2470 = vmatprep.subr.mxu0 0.0
        %2471 = vmatpush2.msra.mxu0 0.0
        %2472 = vmatprep.subr.mxu0 0.0
        %2473 = vmatpush2.msra.mxu0 0.0
        %2474 = vmatprep.subr.mxu0 0.0
        %2475 = vmatpush2.msra.mxu0 0.0
        %2476 = vmatprep.subr.mxu0 0.0
        %2477 = vmatpush2.msra.mxu0 0.0
        %2478 = vmatprep.subr.mxu0 0.0
        %2479 = vmatpush2.msra.mxu0 0.0
        %2480 = vmatprep.subr.mxu0 0.0
        %2481 = vmatpush2.msra.mxu0 0.0
        %2482 = vmatprep.subr.mxu0 0.0
        %2483 = vmatpush2.msra.mxu0 0.0
        %2484 = vmatprep.subr.mxu0 0.0
        %2485 = vmatpush2.msra.mxu0 0.0
        %2486 = vmatprep.subr.mxu0 0.0
        %2487 = vmatpush2.msra.mxu0 0.0
        %2488 = vmatprep.subr.mxu0 0.0
        %2489 = vmatpush2.msra.mxu0 0.0
        %2490 = vmatprep.subr.mxu0 0.0
        %2491 = vmatpush2.msra.mxu0 0.0
        %2492 = vmatprep.subr.mxu0 0.0
        %2493 = vmatpush2.msra.mxu0 0.0
        %2494 = vmatprep.subr.mxu0 0.0
        %2495 = vmatpush2.msra.mxu0 0.0
        %2496 = vmatprep.subr.mxu0 0.0
        %2497 = vmatpush2.msra.mxu0 0.0
        %2498 = vmatprep.subr.mxu0 0.0
        %2499 = vmatpush2.msra.mxu0 0.0
        %2500 = vmatprep.subr.mxu0 0.0
        %2501 = vmatpush2.msra.mxu0 0.0
        %2502 = vmatprep.mubr.f32.mxu0 0.0
        %2503 = vmatmul.mubr.f32.gmra.mxu0 %v2371
        %v2504 = vpop.f32.mrf.mxu0
        %v2505 = vadd.f32 0.0, %v2504
        %v2506 = vpop.f32.mrf.mxu0
        %2507 = vmatprep.mubr.f32.mxu0 0.0
        %2508 = vmatmul.mubr.f32.gmra.mxu0 %v2373
        %v2509 = vpop.f32.mrf.mxu0
        %v2510 = vadd.f32 0.0, %v2509
        %v2511 = vpop.f32.mrf.mxu0
        %2512 = vmatprep.mubr.f32.mxu0 0.0
        %2513 = vmatmul.mubr.f32.gmra.mxu0 %v2375
        %v2514 = vpop.f32.mrf.mxu0
        %v2515 = vadd.f32 0.0, %v2514
        %v2516 = vpop.f32.mrf.mxu0
        %2517 = vmatprep.mubr.f32.mxu0 0.0
        %2518 = vmatmul.mubr.f32.gmra.mxu0 %v2377
        %v2519 = vpop.f32.mrf.mxu0
        %v2520 = vadd.f32 0.0, %v2519
        %v2521 = vpop.f32.mrf.mxu0
        %2522 = vmatprep.mubr.f32.mxu0 0.0
        %2523 = vmatmul.mubr.f32.gmra.mxu0 %v2379
        %v2524 = vpop.f32.mrf.mxu0
        %v2525 = vadd.f32 0.0, %v2524
        %v2526 = vpop.f32.mrf.mxu0
        %2527 = vmatprep.mubr.f32.mxu0 0.0
        %2528 = vmatmul.mubr.f32.gmra.mxu0 %v2381
        %v2529 = vpop.f32.mrf.mxu0
        %v2530 = vadd.f32 0.0, %v2529
        %v2531 = vpop.f32.mrf.mxu0
        %2532 = vmatprep.mubr.f32.mxu0 0.0
        %2533 = vmatmul.mubr.f32.gmra.mxu0 %v2383
        %v2534 = vpop.f32.mrf.mxu0
        %v2535 = vadd.f32 0.0, %v2534
        %v2536 = vpop.f32.mrf.mxu0
        %2537 = vmatprep.mubr.f32.mxu0 0.0
        %2538 = vmatmul.mubr.f32.gmra.mxu0 %v2385
        %v2539 = vpop.f32.mrf.mxu0
        %v2540 = vadd.f32 0.0, %v2539
        %v2541 = vpop.f32.mrf.mxu0
        %2542 = vmatprep.mubr.f32.mxu0 0.0
        %2543 = vmatmul.mubr.f32.gmra.mxu0 %v2387
        %v2544 = vpop.f32.mrf.mxu0
        %v2545 = vadd.f32 0.0, %v2544
        %v2546 = vpop.f32.mrf.mxu0
        %2547 = vmatprep.mubr.f32.mxu0 0.0
        %2548 = vmatmul.mubr.f32.gmra.mxu0 %v2389
        %v2549 = vpop.f32.mrf.mxu0
        %v2550 = vadd.f32 0.0, %v2549
        %v2551 = vpop.f32.mrf.mxu0
        %2552 = vmatprep.mubr.f32.mxu0 0.0
        %2553 = vmatmul.mubr.f32.gmra.mxu0 %v2391
        %v2554 = vpop.f32.mrf.mxu0
        %v2555 = vadd.f32 0.0, %v2554
        %v2556 = vpop.f32.mrf.mxu0
        %2557 = vmatprep.mubr.f32.mxu0 0.0
        %2558 = vmatmul.mubr.f32.gmra.mxu0 %v2393
        %v2559 = vpop.f32.mrf.mxu0
        %v2560 = vadd.f32 0.0, %v2559
        %v2561 = vpop.f32.mrf.mxu0
        %2562 = vmatprep.mubr.f32.mxu0 0.0
        %2563 = vmatmul.mubr.f32.gmra.mxu0 %v2395
        %v2564 = vpop.f32.mrf.mxu0
        %v2565 = vadd.f32 0.0, %v2564
        %v2566 = vpop.f32.mrf.mxu0
        %2567 = vmatprep.mubr.f32.mxu0 0.0
        %2568 = vmatmul.mubr.f32.gmra.mxu0 %v2397
        %v2569 = vpop.f32.mrf.mxu0
        %v2570 = vadd.f32 0.0, %v2569
        %v2571 = vpop.f32.mrf.mxu0
        %2572 = vmatprep.mubr.f32.mxu0 0.0
        %2573 = vmatmul.mubr.f32.gmra.mxu0 %v2399
        %v2574 = vpop.f32.mrf.mxu0
        %v2575 = vadd.f32 0.0, %v2574
        %v2576 = vpop.f32.mrf.mxu0
        %2577 = vmatprep.mubr.f32.mxu0 0.0
        %2578 = vmatmul.mubr.f32.gmra.mxu0 %v2401
        %v2579 = vpop.f32.mrf.mxu0
        %v2580 = vadd.f32 0.0, %v2579
        %v2581 = vpop.f32.mrf.mxu0
        %2582 = vmatprep.mubr.f32.mxu0 0.0
        %2583 = vmatmul.mubr.f32.gmra.mxu0 %v2403
        %v2584 = vpop.f32.mrf.mxu0
        %v2585 = vadd.f32 0.0, %v2584
        %v2586 = vpop.f32.mrf.mxu0
        %2587 = vmatprep.mubr.f32.mxu0 0.0
        %2588 = vmatmul.mubr.f32.gmra.mxu0 %v2405
        %v2589 = vpop.f32.mrf.mxu0
        %v2590 = vadd.f32 0.0, %v2589
        %v2591 = vpop.f32.mrf.mxu0
        %2592 = vmatprep.mubr.f32.mxu0 0.0
        %2593 = vmatmul.mubr.f32.gmra.mxu0 %v2407
        %v2594 = vpop.f32.mrf.mxu0
        %v2595 = vadd.f32 0.0, %v2594
        %v2596 = vpop.f32.mrf.mxu0
        %2597 = vmatprep.mubr.f32.mxu0 0.0
        %2598 = vmatmul.mubr.f32.gmra.mxu0 %v2409
        %v2599 = vpop.f32.mrf.mxu0
        %v2600 = vadd.f32 0.0, %v2599
        %v2601 = vpop.f32.mrf.mxu0
        %2602 = vmatprep.mubr.f32.mxu0 0.0
        %2603 = vmatmul.mubr.f32.gmra.mxu0 %v2411
        %v2604 = vpop.f32.mrf.mxu0
        %v2605 = vadd.f32 0.0, %v2604
        %v2606 = vpop.f32.mrf.mxu0
        %2607 = vmatprep.mubr.f32.mxu0 0.0
        %2608 = vmatmul.mubr.f32.gmra.mxu0 %v2413
        %v2609 = vpop.f32.mrf.mxu0
        %v2610 = vadd.f32 0.0, %v2609
        %v2611 = vpop.f32.mrf.mxu0
        %2612 = vmatprep.mubr.f32.mxu0 0.0
        %2613 = vmatmul.mubr.f32.gmra.mxu0 %v2415
        %v2614 = vpop.f32.mrf.mxu0
        %v2615 = vadd.f32 0.0, %v2614
        %v2616 = vpop.f32.mrf.mxu0
        %2617 = vmatprep.mubr.f32.mxu0 0.0
        %2618 = vmatmul.mubr.f32.gmra.mxu0 %v2417
        %v2619 = vpop.f32.mrf.mxu0
        %v2620 = vadd.f32 0.0, %v2619
        %v2621 = vpop.f32.mrf.mxu0
        %2622 = vmatprep.mubr.f32.mxu0 0.0
        %2623 = vmatmul.mubr.f32.gmra.mxu0 %v2419
        %v2624 = vpop.f32.mrf.mxu0
        %v2625 = vadd.f32 0.0, %v2624
        %v2626 = vpop.f32.mrf.mxu0
        %2627 = vmatprep.mubr.f32.mxu0 0.0
        %2628 = vmatmul.mubr.f32.gmra.mxu0 %v2421
        %v2629 = vpop.f32.mrf.mxu0
        %v2630 = vadd.f32 0.0, %v2629
        %v2631 = vpop.f32.mrf.mxu0
        %2632 = vmatprep.mubr.f32.mxu0 0.0
        %2633 = vmatmul.mubr.f32.gmra.mxu0 %v2423
        %v2634 = vpop.f32.mrf.mxu0
        %v2635 = vadd.f32 0.0, %v2634
        %v2636 = vpop.f32.mrf.mxu0
        %2637 = vmatprep.mubr.f32.mxu0 0.0
        %2638 = vmatmul.mubr.f32.gmra.mxu0 %v2425
        %v2639 = vpop.f32.mrf.mxu0
        %v2640 = vadd.f32 0.0, %v2639
        %v2641 = vpop.f32.mrf.mxu0
        %2642 = vmatprep.mubr.f32.mxu0 0.0
        %2643 = vmatmul.mubr.f32.gmra.mxu0 %v2427
        %v2644 = vpop.f32.mrf.mxu0
        %v2645 = vadd.f32 0.0, %v2644
        %v2646 = vpop.f32.mrf.mxu0
        %2647 = vmatprep.mubr.f32.mxu0 0.0
        %2648 = vmatmul.mubr.f32.gmra.mxu0 %v2429
        %v2649 = vpop.f32.mrf.mxu0
        %v2650 = vadd.f32 0.0, %v2649
        %v2651 = vpop.f32.mrf.mxu0
        %2652 = vmatprep.mubr.f32.mxu0 0.0
        %2653 = vmatmul.mubr.f32.gmra.mxu0 %v2431
        %v2654 = vpop.f32.mrf.mxu0
        %v2655 = vadd.f32 0.0, %v2654
        %v2656 = vpop.f32.mrf.mxu0
        %2657 = vmatprep.mubr.f32.mxu0 0.0
        %2658 = vmatmul.mubr.f32.gmra.mxu0 %v2433
        %v2659 = vpop.f32.mrf.mxu0
        %v2660 = vadd.f32 0.0, %v2659
        %v2661 = vpop.f32.mrf.mxu0
        %2662 = vdwg.mxu0
        %v2663 = vadd.f32 %v2246, %v2505
        %v2664 = vadd.f32 %v2247, %v2510
        %v2665 = vadd.f32 %v2248, %v2515
        %v2666 = vadd.f32 %v2249, %v2520
        %v2667 = vadd.f32 %v2250, %v2525
        %v2668 = vadd.f32 %v2251, %v2530
        %v2669 = vadd.f32 %v2252, %v2535
        %v2670 = vadd.f32 %v2253, %v2540
        %v2671 = vadd.f32 %v2254, %v2545
        %v2672 = vadd.f32 %v2255, %v2550
        %v2673 = vadd.f32 %v2256, %v2555
        %v2674 = vadd.f32 %v2257, %v2560
        %v2675 = vadd.f32 %v2258, %v2565
        %v2676 = vadd.f32 %v2259, %v2570
        %v2677 = vadd.f32 %v2260, %v2575
        %v2678 = vadd.f32 %v2261, %v2580
        %v2679 = vadd.f32 %v2262, %v2585
        %v2680 = vadd.f32 %v2263, %v2590
        %v2681 = vadd.f32 %v2264, %v2595
        %v2682 = vadd.f32 %v2265, %v2600
        %v2683 = vadd.f32 %v2266, %v2605
        %v2684 = vadd.f32 %v2267, %v2610
        %v2685 = vadd.f32 %v2268, %v2615
        %v2686 = vadd.f32 %v2269, %v2620
        %v2687 = vadd.f32 %v2270, %v2625
        %v2688 = vadd.f32 %v2271, %v2630
        %v2689 = vadd.f32 %v2272, %v2635
        %v2690 = vadd.f32 %v2273, %v2640
        %v2691 = vadd.f32 %v2274, %v2645
        %v2692 = vadd.f32 %v2275, %v2650
        %v2693 = vadd.f32 %v2276, %v2655
        %v2694 = vadd.f32 %v2277, %v2660
        %s2695 = scalar_lea.vmem %s1, 20
        %v2696 = vld [vmem:[%s2695] sm:$0xf]
        %v2697 = vsel %vm244, %v2361, 0
        %v2699 = vsel %vm244, %v2363, 0
        %v2702 = vsel %vm514, %v2696, 0
        %2704 = vmatprep.subr.mxu0 0.0
        %2705 = vmatpush1.msra.mxu0 0.0
        %2706 = vmatprep.subr.mxu0 0.0
        %2707 = vmatpush1.msra.mxu0 0.0
        %2708 = vmatprep.subr.mxu0 0.0
        %2709 = vmatpush1.msra.mxu0 0.0
        %2710 = vmatprep.subr.mxu0 0.0
        %2711 = vmatpush1.msra.mxu0 0.0
        %2712 = vmatprep.subr.mxu0 0.0
        %2713 = vmatpush1.msra.mxu0 0.0
        %2714 = vmatprep.subr.mxu0 0.0
        %2715 = vmatpush1.msra.mxu0 0.0
        %2716 = vmatprep.subr.mxu0 0.0
        %2717 = vmatpush1.msra.mxu0 0.0
        %2718 = vmatprep.subr.mxu0 0.0
        %2719 = vmatpush1.msra.mxu0 0.0
        %2720 = vmatprep.subr.mxu0 0.0
        %2721 = vmatpush1.msra.mxu0 0.0
        %2722 = vmatprep.subr.mxu0 0.0
        %2723 = vmatpush1.msra.mxu0 0.0
        %2724 = vmatprep.subr.mxu0 0.0
        %2725 = vmatpush1.msra.mxu0 0.0
        %2726 = vmatprep.subr.mxu0 0.0
        %2727 = vmatpush1.msra.mxu0 0.0
        %2728 = vmatprep.subr.mxu0 0.0
        %2729 = vmatpush1.msra.mxu0 0.0
        %2730 = vmatprep.subr.mxu0 0.0
        %2731 = vmatpush1.msra.mxu0 0.0
        %2732 = vmatprep.subr.mxu0 0.0
        %2733 = vmatpush1.msra.mxu0 0.0
        %2734 = vmatprep.subr.mxu0 0.0
        %2735 = vmatpush1.msra.mxu0 %v2702
        %2736 = vmatprep.subr.mxu0 0.0
        %2737 = vmatpush2.msra.mxu0 0.0
        %2738 = vmatprep.subr.mxu0 0.0
        %2739 = vmatpush2.msra.mxu0 0.0
        %2740 = vmatprep.subr.mxu0 0.0
        %2741 = vmatpush2.msra.mxu0 0.0
        %2742 = vmatprep.subr.mxu0 0.0
        %2743 = vmatpush2.msra.mxu0 0.0
        %2744 = vmatprep.subr.mxu0 0.0
        %2745 = vmatpush2.msra.mxu0 0.0
        %2746 = vmatprep.subr.mxu0 0.0
        %2747 = vmatpush2.msra.mxu0 0.0
        %2748 = vmatprep.subr.mxu0 0.0
        %2749 = vmatpush2.msra.mxu0 0.0
        %2750 = vmatprep.subr.mxu0 0.0
        %2751 = vmatpush2.msra.mxu0 0.0
        %2752 = vmatprep.subr.mxu0 0.0
        %2753 = vmatpush2.msra.mxu0 0.0
        %2754 = vmatprep.subr.mxu0 0.0
        %2755 = vmatpush2.msra.mxu0 0.0
        %2756 = vmatprep.subr.mxu0 0.0
        %2757 = vmatpush2.msra.mxu0 0.0
        %2758 = vmatprep.subr.mxu0 0.0
        %2759 = vmatpush2.msra.mxu0 0.0
        %2760 = vmatprep.subr.mxu0 0.0
        %2761 = vmatpush2.msra.mxu0 0.0
        %2762 = vmatprep.subr.mxu0 0.0
        %2763 = vmatpush2.msra.mxu0 0.0
        %2764 = vmatprep.subr.mxu0 0.0
        %2765 = vmatpush2.msra.mxu0 0.0
        %2766 = vmatprep.subr.mxu0 0.0
        %2767 = vmatpush2.msra.mxu0 0.0
        %2768 = vmatprep.mubr.f32.mxu0 0.0
        %2769 = vmatmul.mubr.f32.gmra.mxu0 %v2375
        %v2770 = vpop.f32.mrf.mxu0
        %v2771 = vadd.f32 0.0, %v2770
        %v2772 = vpop.f32.mrf.mxu0
        %2773 = vmatprep.mubr.f32.mxu0 0.0
        %2774 = vmatmul.mubr.f32.gmra.mxu0 %v2377
        %v2775 = vpop.f32.mrf.mxu0
        %v2776 = vadd.f32 0.0, %v2775
        %v2777 = vpop.f32.mrf.mxu0
        %2778 = vmatprep.mubr.f32.mxu0 0.0
        %2779 = vmatmul.mubr.f32.gmra.mxu0 %v2379
        %v2780 = vpop.f32.mrf.mxu0
        %v2781 = vadd.f32 0.0, %v2780
        %v2782 = vpop.f32.mrf.mxu0
        %2783 = vmatprep.mubr.f32.mxu0 0.0
        %2784 = vmatmul.mubr.f32.gmra.mxu0 %v2381
        %v2785 = vpop.f32.mrf.mxu0
        %v2786 = vadd.f32 0.0, %v2785
        %v2787 = vpop.f32.mrf.mxu0
        %2788 = vmatprep.mubr.f32.mxu0 0.0
        %2789 = vmatmul.mubr.f32.gmra.mxu0 %v2383
        %v2790 = vpop.f32.mrf.mxu0
        %v2791 = vadd.f32 0.0, %v2790
        %v2792 = vpop.f32.mrf.mxu0
        %2793 = vmatprep.mubr.f32.mxu0 0.0
        %2794 = vmatmul.mubr.f32.gmra.mxu0 %v2385
        %v2795 = vpop.f32.mrf.mxu0
        %v2796 = vadd.f32 0.0, %v2795
        %v2797 = vpop.f32.mrf.mxu0
        %2798 = vmatprep.mubr.f32.mxu0 0.0
        %2799 = vmatmul.mubr.f32.gmra.mxu0 %v2387
        %v2800 = vpop.f32.mrf.mxu0
        %v2801 = vadd.f32 0.0, %v2800
        %v2802 = vpop.f32.mrf.mxu0
        %2803 = vmatprep.mubr.f32.mxu0 0.0
        %2804 = vmatmul.mubr.f32.gmra.mxu0 %v2389
        %v2805 = vpop.f32.mrf.mxu0
        %v2806 = vadd.f32 0.0, %v2805
        %v2807 = vpop.f32.mrf.mxu0
        %2808 = vmatprep.mubr.f32.mxu0 0.0
        %2809 = vmatmul.mubr.f32.gmra.mxu0 %v2391
        %v2810 = vpop.f32.mrf.mxu0
        %v2811 = vadd.f32 0.0, %v2810
        %v2812 = vpop.f32.mrf.mxu0
        %2813 = vmatprep.mubr.f32.mxu0 0.0
        %2814 = vmatmul.mubr.f32.gmra.mxu0 %v2393
        %v2815 = vpop.f32.mrf.mxu0
        %v2816 = vadd.f32 0.0, %v2815
        %v2817 = vpop.f32.mrf.mxu0
        %2818 = vmatprep.mubr.f32.mxu0 0.0
        %2819 = vmatmul.mubr.f32.gmra.mxu0 %v2395
        %v2820 = vpop.f32.mrf.mxu0
        %v2821 = vadd.f32 0.0, %v2820
        %v2822 = vpop.f32.mrf.mxu0
        %2823 = vmatprep.mubr.f32.mxu0 0.0
        %2824 = vmatmul.mubr.f32.gmra.mxu0 %v2397
        %v2825 = vpop.f32.mrf.mxu0
        %v2826 = vadd.f32 0.0, %v2825
        %v2827 = vpop.f32.mrf.mxu0
        %2828 = vmatprep.mubr.f32.mxu0 0.0
        %2829 = vmatmul.mubr.f32.gmra.mxu0 %v2399
        %v2830 = vpop.f32.mrf.mxu0
        %v2831 = vadd.f32 0.0, %v2830
        %v2832 = vpop.f32.mrf.mxu0
        %2833 = vmatprep.mubr.f32.mxu0 0.0
        %2834 = vmatmul.mubr.f32.gmra.mxu0 %v2401
        %v2835 = vpop.f32.mrf.mxu0
        %v2836 = vadd.f32 0.0, %v2835
        %v2837 = vpop.f32.mrf.mxu0
        %2838 = vmatprep.mubr.f32.mxu0 0.0
        %2839 = vmatmul.mubr.f32.gmra.mxu0 %v2403
        %v2840 = vpop.f32.mrf.mxu0
        %v2841 = vadd.f32 0.0, %v2840
        %v2842 = vpop.f32.mrf.mxu0
        %2843 = vmatprep.mubr.f32.mxu0 0.0
        %2844 = vmatmul.mubr.f32.gmra.mxu0 %v2405
        %v2845 = vpop.f32.mrf.mxu0
        %v2846 = vadd.f32 0.0, %v2845
        %v2847 = vpop.f32.mrf.mxu0
        %2848 = vmatprep.mubr.f32.mxu0 0.0
        %2849 = vmatmul.mubr.f32.gmra.mxu0 %v2407
        %v2850 = vpop.f32.mrf.mxu0
        %v2851 = vadd.f32 0.0, %v2850
        %v2852 = vpop.f32.mrf.mxu0
        %2853 = vmatprep.mubr.f32.mxu0 0.0
        %2854 = vmatmul.mubr.f32.gmra.mxu0 %v2409
        %v2855 = vpop.f32.mrf.mxu0
        %v2856 = vadd.f32 0.0, %v2855
        %v2857 = vpop.f32.mrf.mxu0
        %2858 = vmatprep.mubr.f32.mxu0 0.0
        %2859 = vmatmul.mubr.f32.gmra.mxu0 %v2411
        %v2860 = vpop.f32.mrf.mxu0
        %v2861 = vadd.f32 0.0, %v2860
        %v2862 = vpop.f32.mrf.mxu0
        %2863 = vmatprep.mubr.f32.mxu0 0.0
        %2864 = vmatmul.mubr.f32.gmra.mxu0 %v2413
        %v2865 = vpop.f32.mrf.mxu0
        %v2866 = vadd.f32 0.0, %v2865
        %v2867 = vpop.f32.mrf.mxu0
        %2868 = vmatprep.mubr.f32.mxu0 0.0
        %2869 = vmatmul.mubr.f32.gmra.mxu0 %v2415
        %v2870 = vpop.f32.mrf.mxu0
        %v2871 = vadd.f32 0.0, %v2870
        %v2872 = vpop.f32.mrf.mxu0
        %2873 = vmatprep.mubr.f32.mxu0 0.0
        %2874 = vmatmul.mubr.f32.gmra.mxu0 %v2417
        %v2875 = vpop.f32.mrf.mxu0
        %v2876 = vadd.f32 0.0, %v2875
        %v2877 = vpop.f32.mrf.mxu0
        %2878 = vmatprep.mubr.f32.mxu0 0.0
        %2879 = vmatmul.mubr.f32.gmra.mxu0 %v2419
        %v2880 = vpop.f32.mrf.mxu0
        %v2881 = vadd.f32 0.0, %v2880
        %v2882 = vpop.f32.mrf.mxu0
        %2883 = vmatprep.mubr.f32.mxu0 0.0
        %2884 = vmatmul.mubr.f32.gmra.mxu0 %v2421
        %v2885 = vpop.f32.mrf.mxu0
        %v2886 = vadd.f32 0.0, %v2885
        %v2887 = vpop.f32.mrf.mxu0
        %2888 = vmatprep.mubr.f32.mxu0 0.0
        %2889 = vmatmul.mubr.f32.gmra.mxu0 %v2423
        %v2890 = vpop.f32.mrf.mxu0
        %v2891 = vadd.f32 0.0, %v2890
        %v2892 = vpop.f32.mrf.mxu0
        %2893 = vmatprep.mubr.f32.mxu0 0.0
        %2894 = vmatmul.mubr.f32.gmra.mxu0 %v2425
        %v2895 = vpop.f32.mrf.mxu0
        %v2896 = vadd.f32 0.0, %v2895
        %v2897 = vpop.f32.mrf.mxu0
        %2898 = vmatprep.mubr.f32.mxu0 0.0
        %2899 = vmatmul.mubr.f32.gmra.mxu0 %v2427
        %v2900 = vpop.f32.mrf.mxu0
        %v2901 = vadd.f32 0.0, %v2900
        %v2902 = vpop.f32.mrf.mxu0
        %2903 = vmatprep.mubr.f32.mxu0 0.0
        %2904 = vmatmul.mubr.f32.gmra.mxu0 %v2429
        %v2905 = vpop.f32.mrf.mxu0
        %v2906 = vadd.f32 0.0, %v2905
        %v2907 = vpop.f32.mrf.mxu0
        %2908 = vmatprep.mubr.f32.mxu0 0.0
        %2909 = vmatmul.mubr.f32.gmra.mxu0 %v2431
        %v2910 = vpop.f32.mrf.mxu0
        %v2911 = vadd.f32 0.0, %v2910
        %v2912 = vpop.f32.mrf.mxu0
        %2913 = vmatprep.mubr.f32.mxu0 0.0
        %2914 = vmatmul.mubr.f32.gmra.mxu0 %v2433
        %v2915 = vpop.f32.mrf.mxu0
        %v2916 = vadd.f32 0.0, %v2915
        %v2917 = vpop.f32.mrf.mxu0
        %2918 = vmatprep.mubr.f32.mxu0 0.0
        %2919 = vmatmul.mubr.f32.gmra.mxu0 %v2697
        %v2920 = vpop.f32.mrf.mxu0
        %v2921 = vadd.f32 0.0, %v2920
        %v2922 = vpop.f32.mrf.mxu0
        %2923 = vmatprep.mubr.f32.mxu0 0.0
        %2924 = vmatmul.mubr.f32.gmra.mxu0 %v2699
        %v2925 = vpop.f32.mrf.mxu0
        %v2926 = vadd.f32 0.0, %v2925
        %v2927 = vpop.f32.mrf.mxu0
        %2928 = vdwg.mxu0
        %v2929 = vadd.f32 %v2663, %v2771
        %v2930 = vadd.f32 %v2664, %v2776
        %v2931 = vadd.f32 %v2665, %v2781
        %v2932 = vadd.f32 %v2666, %v2786
        %v2933 = vadd.f32 %v2667, %v2791
        %v2934 = vadd.f32 %v2668, %v2796
        %v2935 = vadd.f32 %v2669, %v2801
        %v2936 = vadd.f32 %v2670, %v2806
        %v2937 = vadd.f32 %v2671, %v2811
        %v2938 = vadd.f32 %v2672, %v2816
        %v2939 = vadd.f32 %v2673, %v2821
        %v2940 = vadd.f32 %v2674, %v2826
        %v2941 = vadd.f32 %v2675, %v2831
        %v2942 = vadd.f32 %v2676, %v2836
        %v2943 = vadd.f32 %v2677, %v2841
        %v2944 = vadd.f32 %v2678, %v2846
        %v2945 = vadd.f32 %v2679, %v2851
        %v2946 = vadd.f32 %v2680, %v2856
        %v2947 = vadd.f32 %v2681, %v2861
        %v2948 = vadd.f32 %v2682, %v2866
        %v2949 = vadd.f32 %v2683, %v2871
        %v2950 = vadd.f32 %v2684, %v2876
        %v2951 = vadd.f32 %v2685, %v2881
        %v2952 = vadd.f32 %v2686, %v2886
        %v2953 = vadd.f32 %v2687, %v2891
        %v2954 = vadd.f32 %v2688, %v2896
        %v2955 = vadd.f32 %v2689, %v2901
        %v2956 = vadd.f32 %v2690, %v2906
        %v2957 = vadd.f32 %v2691, %v2911
        %v2958 = vadd.f32 %v2692, %v2916
        %v2959 = vadd.f32 %v2693, %v2921
        %v2960 = vadd.f32 %v2694, %v2926
        %s2961 = scalar_lea.vmem %s1, 32
        %v2962 = vld [vmem:[%s2961] sm:$0xf]
        %v2963 = vsel %vm244, %v2366, 0
        %v2965 = vsel %vm244, %v2368, 0
        %v2968 = vsel %vm514, %v2962, 0
        %2970 = vmatprep.subr.mxu0 0.0
        %2971 = vmatpush1.msra.mxu0 0.0
        %2972 = vmatprep.subr.mxu0 0.0
        %2973 = vmatpush1.msra.mxu0 0.0
        %2974 = vmatprep.subr.mxu0 0.0
        %2975 = vmatpush1.msra.mxu0 0.0
        %2976 = vmatprep.subr.mxu0 0.0
        %2977 = vmatpush1.msra.mxu0 0.0
        %2978 = vmatprep.subr.mxu0 0.0
        %2979 = vmatpush1.msra.mxu0 0.0
        %2980 = vmatprep.subr.mxu0 0.0
        %2981 = vmatpush1.msra.mxu0 0.0
        %2982 = vmatprep.subr.mxu0 0.0
        %2983 = vmatpush1.msra.mxu0 0.0
        %2984 = vmatprep.subr.mxu0 0.0
        %2985 = vmatpush1.msra.mxu0 0.0
        %2986 = vmatprep.subr.mxu0 0.0
        %2987 = vmatpush1.msra.mxu0 0.0
        %2988 = vmatprep.subr.mxu0 0.0
        %2989 = vmatpush1.msra.mxu0 0.0
        %2990 = vmatprep.subr.mxu0 0.0
        %2991 = vmatpush1.msra.mxu0 0.0
        %2992 = vmatprep.subr.mxu0 0.0
        %2993 = vmatpush1.msra.mxu0 0.0
        %2994 = vmatprep.subr.mxu0 0.0
        %2995 = vmatpush1.msra.mxu0 0.0
        %2996 = vmatprep.subr.mxu0 0.0
        %2997 = vmatpush1.msra.mxu0 0.0
        %2998 = vmatprep.subr.mxu0 0.0
        %2999 = vmatpush1.msra.mxu0 0.0
        %3000 = vmatprep.subr.mxu0 0.0
        %3001 = vmatpush1.msra.mxu0 %v2968
        %3002 = vmatprep.subr.mxu0 0.0
        %3003 = vmatpush2.msra.mxu0 0.0
        %3004 = vmatprep.subr.mxu0 0.0
        %3005 = vmatpush2.msra.mxu0 0.0
        %3006 = vmatprep.subr.mxu0 0.0
        %3007 = vmatpush2.msra.mxu0 0.0
        %3008 = vmatprep.subr.mxu0 0.0
        %3009 = vmatpush2.msra.mxu0 0.0
        %3010 = vmatprep.subr.mxu0 0.0
        %3011 = vmatpush2.msra.mxu0 0.0
        %3012 = vmatprep.subr.mxu0 0.0
        %3013 = vmatpush2.msra.mxu0 0.0
        %3014 = vmatprep.subr.mxu0 0.0
        %3015 = vmatpush2.msra.mxu0 0.0
        %3016 = vmatprep.subr.mxu0 0.0
        %3017 = vmatpush2.msra.mxu0 0.0
        %3018 = vmatprep.subr.mxu0 0.0
        %3019 = vmatpush2.msra.mxu0 0.0
        %3020 = vmatprep.subr.mxu0 0.0
        %3021 = vmatpush2.msra.mxu0 0.0
        %3022 = vmatprep.subr.mxu0 0.0
        %3023 = vmatpush2.msra.mxu0 0.0
        %3024 = vmatprep.subr.mxu0 0.0
        %3025 = vmatpush2.msra.mxu0 0.0
        %3026 = vmatprep.subr.mxu0 0.0
        %3027 = vmatpush2.msra.mxu0 0.0
        %3028 = vmatprep.subr.mxu0 0.0
        %3029 = vmatpush2.msra.mxu0 0.0
        %3030 = vmatprep.subr.mxu0 0.0
        %3031 = vmatpush2.msra.mxu0 0.0
        %3032 = vmatprep.subr.mxu0 0.0
        %3033 = vmatpush2.msra.mxu0 0.0
        %3034 = vmatprep.mubr.f32.mxu0 0.0
        %3035 = vmatmul.mubr.f32.gmra.mxu0 %v2379
        %v3036 = vpop.f32.mrf.mxu0
        %v3037 = vadd.f32 0.0, %v3036
        %v3038 = vpop.f32.mrf.mxu0
        %3039 = vmatprep.mubr.f32.mxu0 0.0
        %3040 = vmatmul.mubr.f32.gmra.mxu0 %v2381
        %v3041 = vpop.f32.mrf.mxu0
        %v3042 = vadd.f32 0.0, %v3041
        %v3043 = vpop.f32.mrf.mxu0
        %3044 = vmatprep.mubr.f32.mxu0 0.0
        %3045 = vmatmul.mubr.f32.gmra.mxu0 %v2383
        %v3046 = vpop.f32.mrf.mxu0
        %v3047 = vadd.f32 0.0, %v3046
        %v3048 = vpop.f32.mrf.mxu0
        %3049 = vmatprep.mubr.f32.mxu0 0.0
        %3050 = vmatmul.mubr.f32.gmra.mxu0 %v2385
        %v3051 = vpop.f32.mrf.mxu0
        %v3052 = vadd.f32 0.0, %v3051
        %v3053 = vpop.f32.mrf.mxu0
        %3054 = vmatprep.mubr.f32.mxu0 0.0
        %3055 = vmatmul.mubr.f32.gmra.mxu0 %v2387
        %v3056 = vpop.f32.mrf.mxu0
        %v3057 = vadd.f32 0.0, %v3056
        %v3058 = vpop.f32.mrf.mxu0
        %3059 = vmatprep.mubr.f32.mxu0 0.0
        %3060 = vmatmul.mubr.f32.gmra.mxu0 %v2389
        %v3061 = vpop.f32.mrf.mxu0
        %v3062 = vadd.f32 0.0, %v3061
        %v3063 = vpop.f32.mrf.mxu0
        %3064 = vmatprep.mubr.f32.mxu0 0.0
        %3065 = vmatmul.mubr.f32.gmra.mxu0 %v2391
        %v3066 = vpop.f32.mrf.mxu0
        %v3067 = vadd.f32 0.0, %v3066
        %v3068 = vpop.f32.mrf.mxu0
        %3069 = vmatprep.mubr.f32.mxu0 0.0
        %3070 = vmatmul.mubr.f32.gmra.mxu0 %v2393
        %v3071 = vpop.f32.mrf.mxu0
        %v3072 = vadd.f32 0.0, %v3071
        %v3073 = vpop.f32.mrf.mxu0
        %3074 = vmatprep.mubr.f32.mxu0 0.0
        %3075 = vmatmul.mubr.f32.gmra.mxu0 %v2395
        %v3076 = vpop.f32.mrf.mxu0
        %v3077 = vadd.f32 0.0, %v3076
        %v3078 = vpop.f32.mrf.mxu0
        %3079 = vmatprep.mubr.f32.mxu0 0.0
        %3080 = vmatmul.mubr.f32.gmra.mxu0 %v2397
        %v3081 = vpop.f32.mrf.mxu0
        %v3082 = vadd.f32 0.0, %v3081
        %v3083 = vpop.f32.mrf.mxu0
        %3084 = vmatprep.mubr.f32.mxu0 0.0
        %3085 = vmatmul.mubr.f32.gmra.mxu0 %v2399
        %v3086 = vpop.f32.mrf.mxu0
        %v3087 = vadd.f32 0.0, %v3086
        %v3088 = vpop.f32.mrf.mxu0
        %3089 = vmatprep.mubr.f32.mxu0 0.0
        %3090 = vmatmul.mubr.f32.gmra.mxu0 %v2401
        %v3091 = vpop.f32.mrf.mxu0
        %v3092 = vadd.f32 0.0, %v3091
        %v3093 = vpop.f32.mrf.mxu0
        %3094 = vmatprep.mubr.f32.mxu0 0.0
        %3095 = vmatmul.mubr.f32.gmra.mxu0 %v2403
        %v3096 = vpop.f32.mrf.mxu0
        %v3097 = vadd.f32 0.0, %v3096
        %v3098 = vpop.f32.mrf.mxu0
        %3099 = vmatprep.mubr.f32.mxu0 0.0
        %3100 = vmatmul.mubr.f32.gmra.mxu0 %v2405
        %v3101 = vpop.f32.mrf.mxu0
        %v3102 = vadd.f32 0.0, %v3101
        %v3103 = vpop.f32.mrf.mxu0
        %3104 = vmatprep.mubr.f32.mxu0 0.0
        %3105 = vmatmul.mubr.f32.gmra.mxu0 %v2407
        %v3106 = vpop.f32.mrf.mxu0
        %v3107 = vadd.f32 0.0, %v3106
        %v3108 = vpop.f32.mrf.mxu0
        %3109 = vmatprep.mubr.f32.mxu0 0.0
        %3110 = vmatmul.mubr.f32.gmra.mxu0 %v2409
        %v3111 = vpop.f32.mrf.mxu0
        %v3112 = vadd.f32 0.0, %v3111
        %v3113 = vpop.f32.mrf.mxu0
        %3114 = vmatprep.mubr.f32.mxu0 0.0
        %3115 = vmatmul.mubr.f32.gmra.mxu0 %v2411
        %v3116 = vpop.f32.mrf.mxu0
        %v3117 = vadd.f32 0.0, %v3116
        %v3118 = vpop.f32.mrf.mxu0
        %3119 = vmatprep.mubr.f32.mxu0 0.0
        %3120 = vmatmul.mubr.f32.gmra.mxu0 %v2413
        %v3121 = vpop.f32.mrf.mxu0
        %v3122 = vadd.f32 0.0, %v3121
        %v3123 = vpop.f32.mrf.mxu0
        %3124 = vmatprep.mubr.f32.mxu0 0.0
        %3125 = vmatmul.mubr.f32.gmra.mxu0 %v2415
        %v3126 = vpop.f32.mrf.mxu0
        %v3127 = vadd.f32 0.0, %v3126
        %v3128 = vpop.f32.mrf.mxu0
        %3129 = vmatprep.mubr.f32.mxu0 0.0
        %3130 = vmatmul.mubr.f32.gmra.mxu0 %v2417
        %v3131 = vpop.f32.mrf.mxu0
        %v3132 = vadd.f32 0.0, %v3131
        %v3133 = vpop.f32.mrf.mxu0
        %3134 = vmatprep.mubr.f32.mxu0 0.0
        %3135 = vmatmul.mubr.f32.gmra.mxu0 %v2419
        %v3136 = vpop.f32.mrf.mxu0
        %v3137 = vadd.f32 0.0, %v3136
        %v3138 = vpop.f32.mrf.mxu0
        %3139 = vmatprep.mubr.f32.mxu0 0.0
        %3140 = vmatmul.mubr.f32.gmra.mxu0 %v2421
        %v3141 = vpop.f32.mrf.mxu0
        %v3142 = vadd.f32 0.0, %v3141
        %v3143 = vpop.f32.mrf.mxu0
        %3144 = vmatprep.mubr.f32.mxu0 0.0
        %3145 = vmatmul.mubr.f32.gmra.mxu0 %v2423
        %v3146 = vpop.f32.mrf.mxu0
        %v3147 = vadd.f32 0.0, %v3146
        %v3148 = vpop.f32.mrf.mxu0
        %3149 = vmatprep.mubr.f32.mxu0 0.0
        %3150 = vmatmul.mubr.f32.gmra.mxu0 %v2425
        %v3151 = vpop.f32.mrf.mxu0
        %v3152 = vadd.f32 0.0, %v3151
        %v3153 = vpop.f32.mrf.mxu0
        %3154 = vmatprep.mubr.f32.mxu0 0.0
        %3155 = vmatmul.mubr.f32.gmra.mxu0 %v2427
        %v3156 = vpop.f32.mrf.mxu0
        %v3157 = vadd.f32 0.0, %v3156
        %v3158 = vpop.f32.mrf.mxu0
        %3159 = vmatprep.mubr.f32.mxu0 0.0
        %3160 = vmatmul.mubr.f32.gmra.mxu0 %v2429
        %v3161 = vpop.f32.mrf.mxu0
        %v3162 = vadd.f32 0.0, %v3161
        %v3163 = vpop.f32.mrf.mxu0
        %3164 = vmatprep.mubr.f32.mxu0 0.0
        %3165 = vmatmul.mubr.f32.gmra.mxu0 %v2431
        %v3166 = vpop.f32.mrf.mxu0
        %v3167 = vadd.f32 0.0, %v3166
        %v3168 = vpop.f32.mrf.mxu0
        %3169 = vmatprep.mubr.f32.mxu0 0.0
        %3170 = vmatmul.mubr.f32.gmra.mxu0 %v2433
        %v3171 = vpop.f32.mrf.mxu0
        %v3172 = vadd.f32 0.0, %v3171
        %v3173 = vpop.f32.mrf.mxu0
        %3174 = vmatprep.mubr.f32.mxu0 0.0
        %3175 = vmatmul.mubr.f32.gmra.mxu0 %v2697
        %v3176 = vpop.f32.mrf.mxu0
        %v3177 = vadd.f32 0.0, %v3176
        %v3178 = vpop.f32.mrf.mxu0
        %3179 = vmatprep.mubr.f32.mxu0 0.0
        %3180 = vmatmul.mubr.f32.gmra.mxu0 %v2699
        %v3181 = vpop.f32.mrf.mxu0
        %v3182 = vadd.f32 0.0, %v3181
        %v3183 = vpop.f32.mrf.mxu0
        %3184 = vmatprep.mubr.f32.mxu0 0.0
        %3185 = vmatmul.mubr.f32.gmra.mxu0 %v2963
        %v3186 = vpop.f32.mrf.mxu0
        %v3187 = vadd.f32 0.0, %v3186
        %v3188 = vpop.f32.mrf.mxu0
        %3189 = vmatprep.mubr.f32.mxu0 0.0
        %3190 = vmatmul.mubr.f32.gmra.mxu0 %v2965
        %v3191 = vpop.f32.mrf.mxu0
        %v3192 = vadd.f32 0.0, %v3191
        %v3193 = vpop.f32.mrf.mxu0
        %3194 = vdwg.mxu0
        %v3195 = vadd.f32 %v2929, %v3037
        %v3196 = vadd.f32 %v2930, %v3042
        %v3197 = vadd.f32 %v2931, %v3047
        %v3198 = vadd.f32 %v2932, %v3052
        %v3199 = vadd.f32 %v2933, %v3057
        %v3200 = vadd.f32 %v2934, %v3062
        %v3201 = vadd.f32 %v2935, %v3067
        %v3202 = vadd.f32 %v2936, %v3072
        %v3203 = vadd.f32 %v2937, %v3077
        %v3204 = vadd.f32 %v2938, %v3082
        %v3205 = vadd.f32 %v2939, %v3087
        %v3206 = vadd.f32 %v2940, %v3092
        %v3207 = vadd.f32 %v2941, %v3097
        %v3208 = vadd.f32 %v2942, %v3102
        %v3209 = vadd.f32 %v2943, %v3107
        %v3210 = vadd.f32 %v2944, %v3112
        %v3211 = vadd.f32 %v2945, %v3117
        %v3212 = vadd.f32 %v2946, %v3122
        %v3213 = vadd.f32 %v2947, %v3127
        %v3214 = vadd.f32 %v2948, %v3132
        %v3215 = vadd.f32 %v2949, %v3137
        %v3216 = vadd.f32 %v2950, %v3142
        %v3217 = vadd.f32 %v2951, %v3147
        %v3218 = vadd.f32 %v2952, %v3152
        %v3219 = vadd.f32 %v2953, %v3157
        %v3220 = vadd.f32 %v2954, %v3162
        %v3221 = vadd.f32 %v2955, %v3167
        %v3222 = vadd.f32 %v2956, %v3172
        %v3223 = vadd.f32 %v2957, %v3177
        %v3224 = vadd.f32 %v2958, %v3182
        %v3225 = vadd.f32 %v2959, %v3187
        %v3226 = vadd.f32 %v2960, %v3192
        %3227 = vst.msk [vmem:[%s243] sm:$0xff] %vm244, %v3195
        %3228 = vst.msk [vmem:[%s243 + $0x8] sm:$0xff] %vm244, %v3196
        %3229 = vst.msk [vmem:[%s243 + $0x10] sm:$0xff] %vm244, %v3197
        %3230 = vst.msk [vmem:[%s243 + $0x18] sm:$0xff] %vm244, %v3198
        %3231 = vst.msk [vmem:[%s243 + $0x20] sm:$0xff] %vm244, %v3199
        %3232 = vst.msk [vmem:[%s243 + $0x28] sm:$0xff] %vm244, %v3200
        %3233 = vst.msk [vmem:[%s243 + $0x30] sm:$0xff] %vm244, %v3201
        %3234 = vst.msk [vmem:[%s243 + $0x38] sm:$0xff] %vm244, %v3202
        %3235 = vst.msk [vmem:[%s243 + $0x40] sm:$0xff] %vm244, %v3203
        %3236 = vst.msk [vmem:[%s243 + $0x48] sm:$0xff] %vm244, %v3204
        %3237 = vst.msk [vmem:[%s243 + $0x50] sm:$0xff] %vm244, %v3205
        %3238 = vst.msk [vmem:[%s243 + $0x58] sm:$0xff] %vm244, %v3206
        %3239 = vst.msk [vmem:[%s243 + $0x60] sm:$0xff] %vm244, %v3207
        %3240 = vst.msk [vmem:[%s243 + $0x68] sm:$0xff] %vm244, %v3208
        %3241 = vst.msk [vmem:[%s243 + $0x70] sm:$0xff] %vm244, %v3209
        %3242 = vst.msk [vmem:[%s243 + $0x78] sm:$0xff] %vm244, %v3210
        %3243 = vst.msk [vmem:[%s243 + $0x80] sm:$0xff] %vm244, %v3211
        %3244 = vst.msk [vmem:[%s243 + $0x88] sm:$0xff] %vm244, %v3212
        %3245 = vst.msk [vmem:[%s243 + $0x90] sm:$0xff] %vm244, %v3213
        %3246 = vst.msk [vmem:[%s243 + $0x98] sm:$0xff] %vm244, %v3214
        %3247 = vst.msk [vmem:[%s243 + $0xa0] sm:$0xff] %vm244, %v3215
        %3248 = vst.msk [vmem:[%s243 + $0xa8] sm:$0xff] %vm244, %v3216
        %3249 = vst.msk [vmem:[%s243 + $0xb0] sm:$0xff] %vm244, %v3217
        %3250 = vst.msk [vmem:[%s243 + $0xb8] sm:$0xff] %vm244, %v3218
        %3251 = vst.msk [vmem:[%s243 + $0xc0] sm:$0xff] %vm244, %v3219
        %3252 = vst.msk [vmem:[%s243 + $0xc8] sm:$0xff] %vm244, %v3220
        %3253 = vst.msk [vmem:[%s243 + $0xd0] sm:$0xff] %vm244, %v3221
        %3254 = vst.msk [vmem:[%s243 + $0xd8] sm:$0xff] %vm244, %v3222
        %3255 = vst.msk [vmem:[%s243 + $0xe0] sm:$0xff] %vm244, %v3223
        %3256 = vst.msk [vmem:[%s243 + $0xe8] sm:$0xff] %vm244, %v3224
        %3257 = vst.msk [vmem:[%s243 + $0xf0] sm:$0xff] %vm244, %v3225
        %3258 = vst.msk [vmem:[%s243 + $0xf8] sm:$0xff] %vm244, %v3226
        %v3259 = vsel %vm244, %v3195, 0.0
        %v3260 = vsel %vm244, %v3196, 0.0
        %v3261 = vadd.f32 %v3259, %v3260
        %v3262 = vsel %vm244, %v3197, 0.0
        %v3263 = vadd.f32 %v3261, %v3262
        %v3264 = vsel %vm244, %v3198, 0.0
        %v3265 = vadd.f32 %v3263, %v3264
        %v3266 = vsel %vm244, %v3199, 0.0
        %v3267 = vadd.f32 %v3265, %v3266
        %v3268 = vsel %vm244, %v3200, 0.0
        %v3269 = vadd.f32 %v3267, %v3268
        %v3270 = vsel %vm244, %v3201, 0.0
        %v3271 = vadd.f32 %v3269, %v3270
        %v3272 = vsel %vm244, %v3202, 0.0
        %v3273 = vadd.f32 %v3271, %v3272
        %v3274 = vsel %vm244, %v3203, 0.0
        %v3275 = vadd.f32 %v3273, %v3274
        %v3276 = vsel %vm244, %v3204, 0.0
        %v3277 = vadd.f32 %v3275, %v3276
        %v3278 = vsel %vm244, %v3205, 0.0
        %v3279 = vadd.f32 %v3277, %v3278
        %v3280 = vsel %vm244, %v3206, 0.0
        %v3281 = vadd.f32 %v3279, %v3280
        %v3282 = vsel %vm244, %v3207, 0.0
        %v3283 = vadd.f32 %v3281, %v3282
        %v3284 = vsel %vm244, %v3208, 0.0
        %v3285 = vadd.f32 %v3283, %v3284
        %v3286 = vsel %vm244, %v3209, 0.0
        %v3287 = vadd.f32 %v3285, %v3286
        %v3288 = vsel %vm244, %v3210, 0.0
        %v3289 = vadd.f32 %v3287, %v3288
        %v3290 = vsel %vm244, %v3211, 0.0
        %v3291 = vadd.f32 %v3289, %v3290
        %v3292 = vsel %vm244, %v3212, 0.0
        %v3293 = vadd.f32 %v3291, %v3292
        %v3294 = vsel %vm244, %v3213, 0.0
        %v3295 = vadd.f32 %v3293, %v3294
        %v3296 = vsel %vm244, %v3214, 0.0
        %v3297 = vadd.f32 %v3295, %v3296
        %v3298 = vsel %vm244, %v3215, 0.0
        %v3299 = vadd.f32 %v3297, %v3298
        %v3300 = vsel %vm244, %v3216, 0.0
        %v3301 = vadd.f32 %v3299, %v3300
        %v3302 = vsel %vm244, %v3217, 0.0
        %v3303 = vadd.f32 %v3301, %v3302
        %v3304 = vsel %vm244, %v3218, 0.0
        %v3305 = vadd.f32 %v3303, %v3304
        %v3306 = vsel %vm244, %v3219, 0.0
        %v3307 = vadd.f32 %v3305, %v3306
        %v3308 = vsel %vm244, %v3220, 0.0
        %v3309 = vadd.f32 %v3307, %v3308
        %v3310 = vsel %vm244, %v3221, 0.0
        %v3311 = vadd.f32 %v3309, %v3310
        %v3312 = vsel %vm244, %v3222, 0.0
        %v3313 = vadd.f32 %v3311, %v3312
        %v3314 = vsel %vm244, %v3223, 0.0
        %v3315 = vadd.f32 %v3313, %v3314
        %v3316 = vsel %vm244, %v3224, 0.0
        %v3317 = vadd.f32 %v3315, %v3316
        %v3318 = vsel %vm244, %v3225, 0.0
        %v3319 = vadd.f32 %v3317, %v3318
        %v3320 = vsel %vm244, %v3226, 0.0
        %v3321 = vadd.f32 %v3319, %v3320
        %v3322 = vrot.slane %v3321, 4
        %v3323 = vadd.f32 %v3321, %v3322
        %v3324 = vrot.slane %v3323, 2
        %v3325 = vadd.f32 %v3323, %v3324
        %v3326 = vrot.slane %v3325, 1
        %v3327 = vadd.f32 %v3325, %v3326
        %v3328 = vmul.f32 %v3327, 0.00390625
        %3329 = vst.msk [vmem:[%s227] sm:$0x1] %vm253, %v3327
        %v3330 = vsub.f32 %v3195, %v3328
        %v3331 = vsub.f32 %v3196, %v3328
        %v3332 = vsub.f32 %v3197, %v3328
        %v3333 = vsub.f32 %v3198, %v3328
        %v3334 = vsub.f32 %v3199, %v3328
        %v3335 = vsub.f32 %v3200, %v3328
        %v3336 = vsub.f32 %v3201, %v3328
        %v3337 = vsub.f32 %v3202, %v3328
        %v3338 = vsub.f32 %v3203, %v3328
        %v3339 = vsub.f32 %v3204, %v3328
        %v3340 = vsub.f32 %v3205, %v3328
        %v3341 = vsub.f32 %v3206, %v3328
        %v3342 = vsub.f32 %v3207, %v3328
        %v3343 = vsub.f32 %v3208, %v3328
        %v3344 = vsub.f32 %v3209, %v3328
        %v3345 = vsub.f32 %v3210, %v3328
        %v3346 = vsub.f32 %v3211, %v3328
        %v3347 = vsub.f32 %v3212, %v3328
        %v3348 = vsub.f32 %v3213, %v3328
        %v3349 = vsub.f32 %v3214, %v3328
        %v3350 = vsub.f32 %v3215, %v3328
        %v3351 = vsub.f32 %v3216, %v3328
        %v3352 = vsub.f32 %v3217, %v3328
        %v3353 = vsub.f32 %v3218, %v3328
        %v3354 = vsub.f32 %v3219, %v3328
        %v3355 = vsub.f32 %v3220, %v3328
        %v3356 = vsub.f32 %v3221, %v3328
        %v3357 = vsub.f32 %v3222, %v3328
        %v3358 = vsub.f32 %v3223, %v3328
        %v3359 = vsub.f32 %v3224, %v3328
        %v3360 = vsub.f32 %v3225, %v3328
        %v3361 = vsub.f32 %v3226, %v3328
        %v3362 = vmul.f32 %v3330, %v3330
        %v3363 = vmul.f32 %v3331, %v3331
        %v3364 = vmul.f32 %v3332, %v3332
        %v3365 = vmul.f32 %v3333, %v3333
        %v3366 = vmul.f32 %v3334, %v3334
        %v3367 = vmul.f32 %v3335, %v3335
        %v3368 = vmul.f32 %v3336, %v3336
        %v3369 = vmul.f32 %v3337, %v3337
        %v3370 = vmul.f32 %v3338, %v3338
        %v3371 = vmul.f32 %v3339, %v3339
        %v3372 = vmul.f32 %v3340, %v3340
        %v3373 = vmul.f32 %v3341, %v3341
        %v3374 = vmul.f32 %v3342, %v3342
        %v3375 = vmul.f32 %v3343, %v3343
        %v3376 = vmul.f32 %v3344, %v3344
        %v3377 = vmul.f32 %v3345, %v3345
        %v3378 = vmul.f32 %v3346, %v3346
        %v3379 = vmul.f32 %v3347, %v3347
        %v3380 = vmul.f32 %v3348, %v3348
        %v3381 = vmul.f32 %v3349, %v3349
        %v3382 = vmul.f32 %v3350, %v3350
        %v3383 = vmul.f32 %v3351, %v3351
        %v3384 = vmul.f32 %v3352, %v3352
        %v3385 = vmul.f32 %v3353, %v3353
        %v3386 = vmul.f32 %v3354, %v3354
        %v3387 = vmul.f32 %v3355, %v3355
        %v3388 = vmul.f32 %v3356, %v3356
        %v3389 = vmul.f32 %v3357, %v3357
        %v3390 = vmul.f32 %v3358, %v3358
        %v3391 = vmul.f32 %v3359, %v3359
        %v3392 = vmul.f32 %v3360, %v3360
        %v3393 = vmul.f32 %v3361, %v3361
        %v3394 = vsel %vm244, %v3362, 0.0
        %v3395 = vsel %vm244, %v3363, 0.0
        %v3396 = vadd.f32 %v3394, %v3395
        %v3397 = vsel %vm244, %v3364, 0.0
        %v3398 = vadd.f32 %v3396, %v3397
        %v3399 = vsel %vm244, %v3365, 0.0
        %v3400 = vadd.f32 %v3398, %v3399
        %v3401 = vsel %vm244, %v3366, 0.0
        %v3402 = vadd.f32 %v3400, %v3401
        %v3403 = vsel %vm244, %v3367, 0.0
        %v3404 = vadd.f32 %v3402, %v3403
        %v3405 = vsel %vm244, %v3368, 0.0
        %v3406 = vadd.f32 %v3404, %v3405
        %v3407 = vsel %vm244, %v3369, 0.0
        %v3408 = vadd.f32 %v3406, %v3407
        %v3409 = vsel %vm244, %v3370, 0.0
        %v3410 = vadd.f32 %v3408, %v3409
        %v3411 = vsel %vm244, %v3371, 0.0
        %v3412 = vadd.f32 %v3410, %v3411
        %v3413 = vsel %vm244, %v3372, 0.0
        %v3414 = vadd.f32 %v3412, %v3413
        %v3415 = vsel %vm244, %v3373, 0.0
        %v3416 = vadd.f32 %v3414, %v3415
        %v3417 = vsel %vm244, %v3374, 0.0
        %v3418 = vadd.f32 %v3416, %v3417
        %v3419 = vsel %vm244, %v3375, 0.0
        %v3420 = vadd.f32 %v3418, %v3419
        %v3421 = vsel %vm244, %v3376, 0.0
        %v3422 = vadd.f32 %v3420, %v3421
        %v3423 = vsel %vm244, %v3377, 0.0
        %v3424 = vadd.f32 %v3422, %v3423
        %v3425 = vsel %vm244, %v3378, 0.0
        %v3426 = vadd.f32 %v3424, %v3425
        %v3427 = vsel %vm244, %v3379, 0.0
        %v3428 = vadd.f32 %v3426, %v3427
        %v3429 = vsel %vm244, %v3380, 0.0
        %v3430 = vadd.f32 %v3428, %v3429
        %v3431 = vsel %vm244, %v3381, 0.0
        %v3432 = vadd.f32 %v3430, %v3431
        %v3433 = vsel %vm244, %v3382, 0.0
        %v3434 = vadd.f32 %v3432, %v3433
        %v3435 = vsel %vm244, %v3383, 0.0
        %v3436 = vadd.f32 %v3434, %v3435
        %v3437 = vsel %vm244, %v3384, 0.0
        %v3438 = vadd.f32 %v3436, %v3437
        %v3439 = vsel %vm244, %v3385, 0.0
        %v3440 = vadd.f32 %v3438, %v3439
        %v3441 = vsel %vm244, %v3386, 0.0
        %v3442 = vadd.f32 %v3440, %v3441
        %v3443 = vsel %vm244, %v3387, 0.0
        %v3444 = vadd.f32 %v3442, %v3443
        %v3445 = vsel %vm244, %v3388, 0.0
        %v3446 = vadd.f32 %v3444, %v3445
        %v3447 = vsel %vm244, %v3389, 0.0
        %v3448 = vadd.f32 %v3446, %v3447
        %v3449 = vsel %vm244, %v3390, 0.0
        %v3450 = vadd.f32 %v3448, %v3449
        %v3451 = vsel %vm244, %v3391, 0.0
        %v3452 = vadd.f32 %v3450, %v3451
        %v3453 = vsel %vm244, %v3392, 0.0
        %v3454 = vadd.f32 %v3452, %v3453
        %v3455 = vsel %vm244, %v3393, 0.0
        %v3456 = vadd.f32 %v3454, %v3455
        %v3457 = vrot.slane %v3456, 4
        %v3458 = vadd.f32 %v3456, %v3457
        %v3459 = vrot.slane %v3458, 2
        %v3460 = vadd.f32 %v3458, %v3459
        %v3461 = vrot.slane %v3460, 1
        %v3462 = vadd.f32 %v3460, %v3461
        %3463 = vst.msk [vmem:[%s233] sm:$0x1] %vm253, %v3462
        %p3464 = scmp.lt.s32.totalorder %s23, 1
        %s3465 = scalar_select %p3464, %s23, 1
        %s3466 = smul.addr %s3465, 32
        %s3467 = smul.addr %s3466, 8
        %s3468 = scalar_lea.vmem %s3, %s3467
        %s3469 = sand.u32 %s125, 1
        %s3470 = scalar_lea.sflag [#allocation4], %s3469
        %s3471 = sand.u32 %s125, 1
        %s3472 = scalar_lea.vmem [#allocation3], %s3471
        %s3473 = sand.u32 %s151, 1
        %s3474 = scalar_lea.sflag [#allocation6], %s3473
        %s3475 = sand.u32 %s151, 1
        %s3476 = scalar_lea.vmem [#allocation5], %s3475
        // Predicated region
        $region33: #{tpu_custom_call.1} parent=31 // pred_check
          %p3477 = pneg %p109
        $region34: #{tpu_custom_call.1} parent=31 // pred_check_branch
          %3479 = sbr.rel (%p3477) target = $region36
        $region35: #{tpu_custom_call.1} parent=31 // pred_region
          _
        $region36: #{tpu_custom_call.1} parent=31 // pred_fallthru
          _
        // Predicated region
        $region37: #{tpu_custom_call.1} parent=31 // pred_check
          %p3480 = pneg %p135
        $region38: #{tpu_custom_call.1} parent=31 // pred_check_branch
          %3482 = sbr.rel (%p3480) target = $region40
        $region39: #{tpu_custom_call.1} parent=31 // pred_region
          %s3484 = ssub.s32 16, 16
          %3485 = vsyncadd %s3470, %s3484
          %s3486 = smul.addr %s23, 16
          %s3487 = scalar_lea.hbm %s4, %s3486
          %s3489 = sshll.u32 %s3472, 4
          %s3490 = int_to_ptr.vmem [resolvable:$true] %s3489
          %3492 = dma.vmem_to_hbm [thread:$0]  %s3490, 16, %s3487, %s3470
        $region40: #{tpu_custom_call.1} parent=31 // pred_fallthru
          _
        // Predicated region
        $region41: #{tpu_custom_call.1} parent=31 // pred_check
          %p3493 = pneg %p161
        $region42: #{tpu_custom_call.1} parent=31 // pred_check_branch
          %3495 = sbr.rel (%p3493) target = $region44
        $region43: #{tpu_custom_call.1} parent=31 // pred_region
          %s3497 = ssub.s32 16, 16
          %3498 = vsyncadd %s3474, %s3497
          %s3499 = smul.addr %s23, 16
          %s3500 = scalar_lea.hbm %s5, %s3499
          %s3502 = sshll.u32 %s3476, 4
          %s3503 = int_to_ptr.vmem [resolvable:$true] %s3502
          %3505 = dma.vmem_to_hbm [thread:$0]  %s3503, 16, %s3500, %s3474
        $region44: #{tpu_custom_call.1} parent=31 // pred_fallthru
          _
      $region32: #{tpu_custom_call.1} parent=5 // pred_fallthru
        _
      %p3506 = scmp.le.s32.totalorder 2, %s18
      // Predicated region
      $region45: #{tpu_custom_call.1} parent=5 // pred_check
        %p3507 = pneg %p3506
      $region46: #{tpu_custom_call.1} parent=5 // pred_check_branch
        %3509 = sbr.rel (%p3507) target = $region48
      $region47: #{tpu_custom_call.1} parent=5 // pred_region
        %s3510 = ssub.s32 %s18, 2
        // Predicated region
        $region49: #{tpu_custom_call.1} parent=47 // pred_check
          %p3511 = pneg %p115
        $region50: #{tpu_custom_call.1} parent=47 // pred_check_branch
          %3513 = sbr.rel (%p3511) target = $region52
        $region51: #{tpu_custom_call.1} parent=47 // pred_region
          %p3514 = scmp.lt.s32.totalorder %s24, 1
          %s3515 = scalar_select %p3514, %s24, 1
          %s3516 = smul.addr %s3515, 32
          %s3517 = smul.addr %s3516, 8
          %s3518 = scalar_lea.vmem %s3, %s3517
        $region52: #{tpu_custom_call.1} parent=47 // pred_fallthru
          _
        // Predicated region
        $region53: #{tpu_custom_call.1} parent=47 // pred_check
          %p3519 = pneg %p141
        $region54: #{tpu_custom_call.1} parent=47 // pred_check_branch
          %3521 = sbr.rel (%p3519) target = $region56
        $region55: #{tpu_custom_call.1} parent=47 // pred_region
          %s3522 = sand.u32 %s126, 1
          %s3523 = scalar_lea.sflag [#allocation4], %s3522
          %s3524 = sand.u32 %s126, 1
          %s3525 = scalar_lea.vmem [#allocation3], %s3524
          %3526 = dma.done %s3523, 16
        $region56: #{tpu_custom_call.1} parent=47 // pred_fallthru
          _
        // Predicated region
        $region57: #{tpu_custom_call.1} parent=47 // pred_check
          %p3527 = pneg %p167
        $region58: #{tpu_custom_call.1} parent=47 // pred_check_branch
          %3529 = sbr.rel (%p3527) target = $region60
        $region59: #{tpu_custom_call.1} parent=47 // pred_region
          %s3530 = sand.u32 %s152, 1
          %s3531 = scalar_lea.sflag [#allocation6], %s3530
          %s3532 = sand.u32 %s152, 1
          %s3533 = scalar_lea.vmem [#allocation5], %s3532
          %3534 = dma.done %s3531, 16
        $region60: #{tpu_custom_call.1} parent=47 // pred_fallthru
          _
      $region48: #{tpu_custom_call.1} parent=5 // pred_fallthru
        _
    $region6: #{tpu_custom_call.1} parent=1 // loop_footer
      %s22 = sadd.s32 1, %s18
    $region7: #{tpu_custom_call.1} parent=1 // loop_footer_branch
      %17 = sbr.rel target = $region3
    $region8: #{tpu_custom_call.1} parent=1 // loop_exit
      _
    %3535 = vsyncpa [#allocation4], 1
    %s3536 = scalar_lea.sflag [#allocation4], 1
    %3537 = vsyncpa %s3536, 1
    %3538 = vsyncpa [#allocation6], 1
    %s3539 = scalar_lea.sflag [#allocation6], 1
    %3540 = vsyncpa %s3539, 1

</llo_original>
